<compile_context>
chip_gen: v5e
topology: v5e:2x2
jax: 0.10.0
libtpu: 0.0.40
codegen_flags: <defaults>
</compile_context>

<pallas_src>
import jax
import jax.numpy as jnp
from jax import lax
from jax.experimental import pallas as pl
from jax.experimental.pallas import tpu as pltpu

EPS = 1e-5          # PyTorch GroupNorm default eps
NUM_GROUPS = 8


def _make_enblock_kernel(C, D, H, W):
    DHW = D * H * W
    HW = H * W
    cpg = C // NUM_GROUPS
    inv_n = 1.0 / float(DHW * cpg)

    # 27 taps, kd-major (kd, kh, kw) — matches (3,3,3,Cin,Cout)->(Cout,27*Cin).
    deltas = [(dd, dh, dw) for dd in (-1, 0, 1)
              for dh in (-1, 0, 1) for dw in (-1, 0, 1)]
    taps = []
    for dd, dh, dw in deltas:
        off = dd * HW + dh * W + dw
        taps.append(((-off) % DHW, (dd, dh, dw) != (0, 0, 0)))  # shift, needs-mask

    def kernel(x_ref, m_ref, tmask_ref,
               w1_ref, b1_ref, g1_ref, be1_ref,
               w2_ref, b2_ref, g2_ref, be2_ref,
               out_ref, col_ref):
        # x_ref/out_ref: (1, C, DHW)      one sample per grid step (lane-dense)
        # m_ref:         (C, C) f32       group-membership matrix
        # tmask_ref:     (27, DHW) f32    hoisted halo masks per tap
        # w*_ref:        (C, 27*C) bf16   conv weights, [Cout, tap*Cin]
        # b*/g*/be*_ref: (C, 1) f32
        # col_ref:       (2, 9*C, DHW) bf16  double-buffered kd-plane im2col

        # ---- GroupNorm(8) + ReLU: lane reduce, then tiny group-combine ------
        def gn_relu(v, gamma_ref, beta_ref):
            s = jnp.sum(v, axis=1, keepdims=True)                       # (C,1)
            mean = jnp.dot(m_ref[...], s,
                           preferred_element_type=jnp.float32) * inv_n  # (C,1)
            d = v - mean
            s2 = jnp.sum(d * d, axis=1, keepdims=True)                  # (C,1)
            var = jnp.dot(m_ref[...], s2,
                          preferred_element_type=jnp.float32) * inv_n   # (C,1)
            y = d * lax.rsqrt(var + EPS) * gamma_ref[...] + beta_ref[...]
            return jnp.maximum(y, 0.0)

        # ---- 3x3x3 conv: 3 kd-plane chunks of roll-im2col + MXU accumulate --
        def conv(a, w_ref, b_ref):
            acc = None
            for p in range(3):                     # kd plane
                slot = p & 1                       # double buffer -> overlap
                for q in range(9):                 # (kh, kw) within plane
                    k = p * 9 + q
                    shift, needs_mask = taps[k]
                    v = a if shift == 0 else pltpu.roll(a, shift=shift, axis=1)
                    if needs_mask:
                        v = v * tmask_ref[k:k + 1, :]          # f32 (v5e-safe)
                    col_ref[slot, q * C:(q + 1) * C, :] = v.astype(jnp.bfloat16)
                part = jnp.dot(w_ref[:, p * 9 * C:(p + 1) * 9 * C],
                               col_ref[slot],
                               preferred_element_type=jnp.float32)       # f32 acc
                acc = part if acc is None else acc + part
            return acc + b_ref[...]

        x = x_ref[0].astype(jnp.float32)
        a1 = gn_relu(x, g1_ref, be1_ref)
        c1 = conv(a1, w1_ref, b1_ref)
        a2 = gn_relu(c1, g2_ref, be2_ref)
        c2 = conv(a2, w2_ref, b2_ref)
        out_ref[0] = (c2 + x).astype(out_ref.dtype)            # residual add

    return kernel


def enblock_forward(x_ncdhw, params):
    """x_ncdhw: (N, C, D, H, W) float32 — same layout as the PyTorch module."""
    N, C, D, H, W = x_ncdhw.shape
    assert C % NUM_GROUPS == 0
    DHW = D * H * W
    HW = H * W
    # NCDHW flattened is already (N, C, DHW): channels on sublanes, DHW on
    # lanes — lane-dense in/out with no transpose (free reshape).
    x2 = x_ncdhw.reshape(N, C, DHW)

    cpg = C // NUM_GROUPS
    gid = jnp.arange(C) // cpg
    group_mat = (gid[:, None] == gid[None, :]).astype(jnp.float32)      # (C,C)

    # Hoisted halo masks per tap (kd-major), grid-invariant.
    pos = jnp.arange(DHW)
    d_idx, h_idx, w_idx = pos // HW, (pos // W) % H, pos % W

    def axis_ok(idx, delta, lim):
        if delta == -1:
            return idx >= 1
        if delta == 1:
            return idx <= lim - 2
        return jnp.ones_like(idx, dtype=bool)

    tap_masks = jnp.stack([
        axis_ok(d_idx, dd, D) & axis_ok(h_idx, dh, H) & axis_ok(w_idx, dw, W)
        for dd in (-1, 0, 1) for dh in (-1, 0, 1) for dw in (-1, 0, 1)
    ]).astype(jnp.float32)                                              # (27,DHW)

    # Conv weights (3,3,3,Cin,Cout) -> (Cout, 27*Cin) bf16 (f32 MXU accumulate).
    w1 = params["w1"].reshape(27 * C, C).T.astype(jnp.bfloat16)
    w2 = params["w2"].reshape(27 * C, C).T.astype(jnp.bfloat16)
    b1 = params["b1"].reshape(C, 1).astype(jnp.float32)
    b2 = params["b2"].reshape(C, 1).astype(jnp.float32)
    g1 = params["g1"].reshape(C, 1).astype(jnp.float32)
    be1 = params["be1"].reshape(C, 1).astype(jnp.float32)
    g2 = params["g2"].reshape(C, 1).astype(jnp.float32)
    be2 = params["be2"].reshape(C, 1).astype(jnp.float32)

    def full(shape):
        return pl.BlockSpec(shape, lambda n, _r=len(shape): (0,) * _r)

    grid_spec = pltpu.PrefetchScalarGridSpec(
        num_scalar_prefetch=0,
        grid=(N,),
        in_specs=[
            pl.BlockSpec((1, C, DHW), lambda n: (n, 0, 0)),
            full((C, C)),
            full((27, DHW)),
            full((C, 27 * C)), full((C, 1)), full((C, 1)), full((C, 1)),
            full((C, 27 * C)), full((C, 1)), full((C, 1)), full((C, 1)),
        ],
        out_specs=pl.BlockSpec((1, C, DHW), lambda n: (n, 0, 0)),
        scratch_shapes=[pltpu.VMEM((2, 9 * C, DHW), jnp.bfloat16)],
    )

    out = pl.pallas_call(
        _make_enblock_kernel(C, D, H, W),
        out_shape=jax.ShapeDtypeStruct((N, C, DHW), x_ncdhw.dtype),
        grid_spec=grid_spec,
        compiler_params=pltpu.CompilerParams(
            # batch axis is independent -> shard across v7x's two TensorCores
            dimension_semantics=("parallel",),
        ),
    )(x2, group_mat, tap_masks, w1, b1, g1, be1, w2, b2, g2, be2)

    return out.reshape(N, C, D, H, W)


def enblock_reference(x, params, conv_input_dtype=jnp.float32):
    """Pure-JAX reference mirroring the PyTorch module (NCDHW).

    conv_input_dtype=jnp.bfloat16 reproduces the kernel's quantization points
    (conv inputs in bf16, f32 accumulation) for a tight correctness check.
    """
    N, C, D, H, W = x.shape

    def gn(v, gamma, beta):
        vg = v.reshape(N, NUM_GROUPS, C // NUM_GROUPS, D, H, W)
        mean = jnp.mean(vg, axis=(2, 3, 4, 5), keepdims=True)
        var = jnp.mean((vg - mean) ** 2, axis=(2, 3, 4, 5), keepdims=True)
        vn = ((vg - mean) / jnp.sqrt(var + EPS)).reshape(N, C, D, H, W)
        return vn * gamma.reshape(1, C, 1, 1, 1) + beta.reshape(1, C, 1, 1, 1)

    def conv(v, w, b):
        o = lax.conv_general_dilated(
            v.astype(conv_input_dtype), w.astype(conv_input_dtype),
            (1, 1, 1), "SAME",
            dimension_numbers=("NCDHW", "DHWIO", "NCDHW"),
            preferred_element_type=jnp.float32)
        return o + b.reshape(1, C, 1, 1, 1)

    x1 = jnp.maximum(gn(x, params["g1"], params["be1"]), 0.0)
    x1 = conv(x1, params["w1"], params["b1"])
    y = jnp.maximum(gn(x1, params["g2"], params["be2"]), 0.0)
    y = conv(y, params["w2"], params["b2"])
    return y + x


if __name__ == "__main__":
    key = jax.random.PRNGKey(0)
    N, C, D, H, W = 2, 16, 8, 8, 8     # C divisible by 8 (GroupNorm), DHW=512

    ks = jax.random.split(key, 9)
    x = jax.random.normal(ks[0], (N, C, D, H, W), jnp.float32)
    params = {
        # conv weights kept as (kd, kh, kw, Cin, Cout)
        "w1": 0.1 * jax.random.normal(ks[1], (3, 3, 3, C, C), jnp.float32),
        "b1": 0.05 * jax.random.normal(ks[2], (C,), jnp.float32),
        "w2": 0.1 * jax.random.normal(ks[3], (3, 3, 3, C, C), jnp.float32),
        "b2": 0.05 * jax.random.normal(ks[4], (C,), jnp.float32),
        "g1": 1.0 + 0.1 * jax.random.normal(ks[5], (C,), jnp.float32),
        "be1": 0.1 * jax.random.normal(ks[6], (C,), jnp.float32),
        "g2": 1.0 + 0.1 * jax.random.normal(ks[7], (C,), jnp.float32),
        "be2": 0.1 * jax.random.normal(ks[8], (C,), jnp.float32),
    }

    out = jax.block_until_ready(enblock_forward(x, params))
    assert out.shape == (N, C, D, H, W)

    # Tight check vs. a reference with matching bf16 conv-input quantization.
    ref_bf16 = jax.block_until_ready(
        enblock_reference(x, params, conv_input_dtype=jnp.bfloat16))
    err_bf16 = float(jnp.max(jnp.abs(out - ref_bf16)))
    assert err_bf16 < 5e-3, f"mismatch vs bf16-matched reference: {err_bf16}"

    # Semantic sanity check vs. the full-f32 module reference (bf16 conv inputs
    # give O(1e-2) abs deviation at these magnitudes).
    ref_f32 = jax.block_until_ready(
        enblock_reference(x, params, conv_input_dtype=jnp.float32))
    err_f32 = float(jnp.max(jnp.abs(out - ref_f32)))
    assert err_f32 < 1e-1, f"mismatch vs f32 module reference: {err_f32}"

    print("KERNEL_OK")
</pallas_src>

<mosaic_0001>
module attributes {stable_mosaic.version = 11 : i64} {
  func.func @kernel(%arg0: i32, %arg1: memref<1x16x512xf32, #tpu.memory_space<vmem>>, %arg2: memref<16x16xf32, #tpu.memory_space<vmem>>, %arg3: memref<27x512xf32, #tpu.memory_space<vmem>>, %arg4: memref<16x432xbf16, #tpu.memory_space<vmem>>, %arg5: memref<16x1xf32, #tpu.memory_space<vmem>>, %arg6: memref<16x1xf32, #tpu.memory_space<vmem>>, %arg7: memref<16x1xf32, #tpu.memory_space<vmem>>, %arg8: memref<16x432xbf16, #tpu.memory_space<vmem>>, %arg9: memref<16x1xf32, #tpu.memory_space<vmem>>, %arg10: memref<16x1xf32, #tpu.memory_space<vmem>>, %arg11: memref<16x1xf32, #tpu.memory_space<vmem>>, %arg12: memref<1x16x512xf32, #tpu.memory_space<vmem>>, %arg13: memref<2x144x512xbf16, #tpu.memory_space<vmem>>) attributes {dimension_semantics = [#tpu.dimension_semantics<parallel>], iteration_bounds = array<i64: 2>, scalar_prefetch = 0 : i64, scratch_operands = 1 : i64, tpu.core_type = #tpu.core_type<tc>, window_params = [{transform_indices = @transform_0, window_bounds = array<i64: 1, 16, 512>}, {pipeline_mode = #tpu.pipeline_mode<synchronous>, transform_indices = @transform_1, window_bounds = array<i64: 16, 16>}, {pipeline_mode = #tpu.pipeline_mode<synchronous>, transform_indices = @transform_2, window_bounds = array<i64: 27, 512>}, {pipeline_mode = #tpu.pipeline_mode<synchronous>, transform_indices = @transform_3, window_bounds = array<i64: 16, 432>}, {pipeline_mode = #tpu.pipeline_mode<synchronous>, transform_indices = @transform_4, window_bounds = array<i64: 16, 1>}, {pipeline_mode = #tpu.pipeline_mode<synchronous>, transform_indices = @transform_5, window_bounds = array<i64: 16, 1>}, {pipeline_mode = #tpu.pipeline_mode<synchronous>, transform_indices = @transform_6, window_bounds = array<i64: 16, 1>}, {pipeline_mode = #tpu.pipeline_mode<synchronous>, transform_indices = @transform_7, window_bounds = array<i64: 16, 432>}, {pipeline_mode = #tpu.pipeline_mode<synchronous>, transform_indices = @transform_8, window_bounds = array<i64: 16, 1>}, {pipeline_mode = #tpu.pipeline_mode<synchronous>, transform_indices = @transform_9, window_bounds = array<i64: 16, 1>}, {pipeline_mode = #tpu.pipeline_mode<synchronous>, transform_indices = @transform_10, window_bounds = array<i64: 16, 1>}, {transform_indices = @transform_11, window_bounds = array<i64: 1, 16, 512>}]} {
    %c0 = arith.constant 0 : index
    %c0_0 = arith.constant 0 : index
    %c0_1 = arith.constant 0 : index
    %0 = vector.load %arg1[%c0, %c0_0, %c0_1] : memref<1x16x512xf32, #tpu.memory_space<vmem>>, vector<1x16x512xf32>
    %1 = vector.shape_cast %0 : vector<1x16x512xf32> to vector<16x512xf32>
    %cst = arith.constant dense<0.000000e+00> : vector<16xf32>
    %2 = vector.multi_reduction <add>, %1, %cst [1] : vector<16x512xf32> to vector<16xf32>
    %3 = vector.shape_cast %2 : vector<16xf32> to vector<16x1xf32>
    %c0_2 = arith.constant 0 : index
    %c0_3 = arith.constant 0 : index
    %4 = vector.load %arg2[%c0_2, %c0_3] : memref<16x16xf32, #tpu.memory_space<vmem>>, vector<16x16xf32>
    %cst_4 = arith.constant dense<0.000000e+00> : vector<16x1xf32>
    %5 = tpu.matmul %4, %3, %cst_4 {dimension_numbers = #tpu.dot_dimension_numbers<[1], [0], [0], [1], [0, 0, 1, 1], [], []>} : vector<16x16xf32>, vector<16x1xf32>, vector<16x1xf32> -> vector<16x1xf32>
    %cst_5 = arith.constant 9.765625E-4 : f32
    %6 = vector.broadcast %cst_5 : f32 to vector<16x1xf32>
    %7 = arith.mulf %5, %6 : vector<16x1xf32>
    %8 = vector.broadcast %7 : vector<16x1xf32> to vector<16x512xf32>
    %9 = arith.subf %1, %8 : vector<16x512xf32>
    %10 = arith.mulf %9, %9 : vector<16x512xf32>
    %cst_6 = arith.constant dense<0.000000e+00> : vector<16xf32>
    %11 = vector.multi_reduction <add>, %10, %cst_6 [1] : vector<16x512xf32> to vector<16xf32>
    %12 = vector.shape_cast %11 : vector<16xf32> to vector<16x1xf32>
    %c0_7 = arith.constant 0 : index
    %c0_8 = arith.constant 0 : index
    %13 = vector.load %arg2[%c0_7, %c0_8] : memref<16x16xf32, #tpu.memory_space<vmem>>, vector<16x16xf32>
    %cst_9 = arith.constant dense<0.000000e+00> : vector<16x1xf32>
    %14 = tpu.matmul %13, %12, %cst_9 {dimension_numbers = #tpu.dot_dimension_numbers<[1], [0], [0], [1], [0, 0, 1, 1], [], []>} : vector<16x16xf32>, vector<16x1xf32>, vector<16x1xf32> -> vector<16x1xf32>
    %cst_10 = arith.constant 9.765625E-4 : f32
    %15 = vector.broadcast %cst_10 : f32 to vector<16x1xf32>
    %16 = arith.mulf %14, %15 : vector<16x1xf32>
    %cst_11 = arith.constant 9.99999974E-6 : f32
    %17 = vector.broadcast %cst_11 : f32 to vector<16x1xf32>
    %18 = arith.addf %16, %17 : vector<16x1xf32>
    %19 = math.rsqrt %18 : vector<16x1xf32>
    %20 = vector.broadcast %19 : vector<16x1xf32> to vector<16x512xf32>
    %21 = arith.mulf %9, %20 : vector<16x512xf32>
    %c0_12 = arith.constant 0 : index
    %c0_13 = arith.constant 0 : index
    %22 = vector.load %arg6[%c0_12, %c0_13] : memref<16x1xf32, #tpu.memory_space<vmem>>, vector<16x1xf32>
    %23 = vector.broadcast %22 : vector<16x1xf32> to vector<16x512xf32>
    %24 = arith.mulf %21, %23 : vector<16x512xf32>
    %c0_14 = arith.constant 0 : index
    %c0_15 = arith.constant 0 : index
    %25 = vector.load %arg7[%c0_14, %c0_15] : memref<16x1xf32, #tpu.memory_space<vmem>>, vector<16x1xf32>
    %26 = vector.broadcast %25 : vector<16x1xf32> to vector<16x512xf32>
    %27 = arith.addf %24, %26 : vector<16x512xf32>
    %cst_16 = arith.constant 0.000000e+00 : f32
    %28 = vector.broadcast %cst_16 : f32 to vector<16x512xf32>
    %29 = arith.maximumf %27, %28 : vector<16x512xf32>
    %c73_i32 = arith.constant 73 : i32
    %30 = tpu.dynamic_rotate %29 by %c73_i32 dim 1 : vector<16x512xf32>, i32 -> vector<16x512xf32>
    %c0_17 = arith.constant 0 : index
    %c0_18 = arith.constant 0 : index
    %31 = vector.load %arg3[%c0_17, %c0_18] : memref<27x512xf32, #tpu.memory_space<vmem>>, vector<1x512xf32>
    %32 = vector.broadcast %31 : vector<1x512xf32> to vector<16x512xf32>
    %33 = arith.mulf %30, %32 : vector<16x512xf32>
    %34 = arith.truncf %33 : vector<16x512xf32> to vector<16x512xbf16>
    %c0_19 = arith.constant 0 : index
    %c0_20 = arith.constant 0 : index
    %c0_21 = arith.constant 0 : index
    %35 = vector.load %arg13[%c0_19, %c0_20, %c0_21] : memref<2x144x512xbf16, #tpu.memory_space<vmem>>, vector<1x16x512xbf16>
    %36 = vector.shape_cast %35 : vector<1x16x512xbf16> to vector<16x512xbf16>
    %37 = vector.shape_cast %34 : vector<16x512xbf16> to vector<1x16x512xbf16>
    tpu.vector_store %arg13[%c0_19, %c0_20, %c0_21], %37 {strides = array<i32>} : memref<2x144x512xbf16, #tpu.memory_space<vmem>>, vector<1x16x512xbf16>,
    %c72_i32 = arith.constant 72 : i32
    %38 = tpu.dynamic_rotate %29 by %c72_i32 dim 1 : vector<16x512xf32>, i32 -> vector<16x512xf32>
    %c1 = arith.constant 1 : index
    %c0_22 = arith.constant 0 : index
    %39 = vector.load %arg3[%c1, %c0_22] : memref<27x512xf32, #tpu.memory_space<vmem>>, vector<1x512xf32>
    %40 = vector.broadcast %39 : vector<1x512xf32> to vector<16x512xf32>
    %41 = arith.mulf %38, %40 : vector<16x512xf32>
    %42 = arith.truncf %41 : vector<16x512xf32> to vector<16x512xbf16>
    %c0_23 = arith.constant 0 : index
    %c16 = arith.constant 16 : index
    %c0_24 = arith.constant 0 : index
    %43 = vector.load %arg13[%c0_23, %c16, %c0_24] : memref<2x144x512xbf16, #tpu.memory_space<vmem>>, vector<1x16x512xbf16>
    %44 = vector.shape_cast %43 : vector<1x16x512xbf16> to vector<16x512xbf16>
    %45 = vector.shape_cast %42 : vector<16x512xbf16> to vector<1x16x512xbf16>
    tpu.vector_store %arg13[%c0_23, %c16, %c0_24], %45 {strides = array<i32>} : memref<2x144x512xbf16, #tpu.memory_space<vmem>>, vector<1x16x512xbf16>,
    %c71_i32 = arith.constant 71 : i32
    %46 = tpu.dynamic_rotate %29 by %c71_i32 dim 1 : vector<16x512xf32>, i32 -> vector<16x512xf32>
    %c2 = arith.constant 2 : index
    %c0_25 = arith.constant 0 : index
    %47 = vector.load %arg3[%c2, %c0_25] : memref<27x512xf32, #tpu.memory_space<vmem>>, vector<1x512xf32>
    %48 = vector.broadcast %47 : vector<1x512xf32> to vector<16x512xf32>
    %49 = arith.mulf %46, %48 : vector<16x512xf32>
    %50 = arith.truncf %49 : vector<16x512xf32> to vector<16x512xbf16>
    %c0_26 = arith.constant 0 : index
    %c32 = arith.constant 32 : index
    %c0_27 = arith.constant 0 : index
    %51 = vector.load %arg13[%c0_26, %c32, %c0_27] : memref<2x144x512xbf16, #tpu.memory_space<vmem>>, vector<1x16x512xbf16>
    %52 = vector.shape_cast %51 : vector<1x16x512xbf16> to vector<16x512xbf16>
    %53 = vector.shape_cast %50 : vector<16x512xbf16> to vector<1x16x512xbf16>
    tpu.vector_store %arg13[%c0_26, %c32, %c0_27], %53 {strides = array<i32>} : memref<2x144x512xbf16, #tpu.memory_space<vmem>>, vector<1x16x512xbf16>,
    %c65_i32 = arith.constant 65 : i32
    %54 = tpu.dynamic_rotate %29 by %c65_i32 dim 1 : vector<16x512xf32>, i32 -> vector<16x512xf32>
    %c3 = arith.constant 3 : index
    %c0_28 = arith.constant 0 : index
    %55 = vector.load %arg3[%c3, %c0_28] : memref<27x512xf32, #tpu.memory_space<vmem>>, vector<1x512xf32>
    %56 = vector.broadcast %55 : vector<1x512xf32> to vector<16x512xf32>
    %57 = arith.mulf %54, %56 : vector<16x512xf32>
    %58 = arith.truncf %57 : vector<16x512xf32> to vector<16x512xbf16>
    %c0_29 = arith.constant 0 : index
    %c48 = arith.constant 48 : index
    %c0_30 = arith.constant 0 : index
    %59 = vector.load %arg13[%c0_29, %c48, %c0_30] : memref<2x144x512xbf16, #tpu.memory_space<vmem>>, vector<1x16x512xbf16>
    %60 = vector.shape_cast %59 : vector<1x16x512xbf16> to vector<16x512xbf16>
    %61 = vector.shape_cast %58 : vector<16x512xbf16> to vector<1x16x512xbf16>
    tpu.vector_store %arg13[%c0_29, %c48, %c0_30], %61 {strides = array<i32>} : memref<2x144x512xbf16, #tpu.memory_space<vmem>>, vector<1x16x512xbf16>,
    %c64_i32 = arith.constant 64 : i32
    %62 = tpu.dynamic_rotate %29 by %c64_i32 dim 1 : vector<16x512xf32>, i32 -> vector<16x512xf32>
    %c4 = arith.constant 4 : index
    %c0_31 = arith.constant 0 : index
    %63 = vector.load %arg3[%c4, %c0_31] : memref<27x512xf32, #tpu.memory_space<vmem>>, vector<1x512xf32>
    %64 = vector.broadcast %63 : vector<1x512xf32> to vector<16x512xf32>
    %65 = arith.mulf %62, %64 : vector<16x512xf32>
    %66 = arith.truncf %65 : vector<16x512xf32> to vector<16x512xbf16>
    %c0_32 = arith.constant 0 : index
    %c64 = arith.constant 64 : index
    %c0_33 = arith.constant 0 : index
    %67 = vector.load %arg13[%c0_32, %c64, %c0_33] : memref<2x144x512xbf16, #tpu.memory_space<vmem>>, vector<1x16x512xbf16>
    %68 = vector.shape_cast %67 : vector<1x16x512xbf16> to vector<16x512xbf16>
    %69 = vector.shape_cast %66 : vector<16x512xbf16> to vector<1x16x512xbf16>
    tpu.vector_store %arg13[%c0_32, %c64, %c0_33], %69 {strides = array<i32>} : memref<2x144x512xbf16, #tpu.memory_space<vmem>>, vector<1x16x512xbf16>,
    %c63_i32 = arith.constant 63 : i32
    %70 = tpu.dynamic_rotate %29 by %c63_i32 dim 1 : vector<16x512xf32>, i32 -> vector<16x512xf32>
    %c5 = arith.constant 5 : index
    %c0_34 = arith.constant 0 : index
    %71 = vector.load %arg3[%c5, %c0_34] : memref<27x512xf32, #tpu.memory_space<vmem>>, vector<1x512xf32>
    %72 = vector.broadcast %71 : vector<1x512xf32> to vector<16x512xf32>
    %73 = arith.mulf %70, %72 : vector<16x512xf32>
    %74 = arith.truncf %73 : vector<16x512xf32> to vector<16x512xbf16>
    %c0_35 = arith.constant 0 : index
    %c80 = arith.constant 80 : index
    %c0_36 = arith.constant 0 : index
    %75 = vector.load %arg13[%c0_35, %c80, %c0_36] : memref<2x144x512xbf16, #tpu.memory_space<vmem>>, vector<1x16x512xbf16>
    %76 = vector.shape_cast %75 : vector<1x16x512xbf16> to vector<16x512xbf16>
    %77 = vector.shape_cast %74 : vector<16x512xbf16> to vector<1x16x512xbf16>
    tpu.vector_store %arg13[%c0_35, %c80, %c0_36], %77 {strides = array<i32>} : memref<2x144x512xbf16, #tpu.memory_space<vmem>>, vector<1x16x512xbf16>,
    %c57_i32 = arith.constant 57 : i32
    %78 = tpu.dynamic_rotate %29 by %c57_i32 dim 1 : vector<16x512xf32>, i32 -> vector<16x512xf32>
    %c6 = arith.constant 6 : index
    %c0_37 = arith.constant 0 : index
    %79 = vector.load %arg3[%c6, %c0_37] : memref<27x512xf32, #tpu.memory_space<vmem>>, vector<1x512xf32>
    %80 = vector.broadcast %79 : vector<1x512xf32> to vector<16x512xf32>
    %81 = arith.mulf %78, %80 : vector<16x512xf32>
    %82 = arith.truncf %81 : vector<16x512xf32> to vector<16x512xbf16>
    %c0_38 = arith.constant 0 : index
    %c96 = arith.constant 96 : index
    %c0_39 = arith.constant 0 : index
    %83 = vector.load %arg13[%c0_38, %c96, %c0_39] : memref<2x144x512xbf16, #tpu.memory_space<vmem>>, vector<1x16x512xbf16>
    %84 = vector.shape_cast %83 : vector<1x16x512xbf16> to vector<16x512xbf16>
    %85 = vector.shape_cast %82 : vector<16x512xbf16> to vector<1x16x512xbf16>
    tpu.vector_store %arg13[%c0_38, %c96, %c0_39], %85 {strides = array<i32>} : memref<2x144x512xbf16, #tpu.memory_space<vmem>>, vector<1x16x512xbf16>,
    %c56_i32 = arith.constant 56 : i32
    %86 = tpu.dynamic_rotate %29 by %c56_i32 dim 1 : vector<16x512xf32>, i32 -> vector<16x512xf32>
    %c7 = arith.constant 7 : index
    %c0_40 = arith.constant 0 : index
    %87 = vector.load %arg3[%c7, %c0_40] : memref<27x512xf32, #tpu.memory_space<vmem>>, vector<1x512xf32>
    %88 = vector.broadcast %87 : vector<1x512xf32> to vector<16x512xf32>
    %89 = arith.mulf %86, %88 : vector<16x512xf32>
    %90 = arith.truncf %89 : vector<16x512xf32> to vector<16x512xbf16>
    %c0_41 = arith.constant 0 : index
    %c112 = arith.constant 112 : index
    %c0_42 = arith.constant 0 : index
    %91 = vector.load %arg13[%c0_41, %c112, %c0_42] : memref<2x144x512xbf16, #tpu.memory_space<vmem>>, vector<1x16x512xbf16>
    %92 = vector.shape_cast %91 : vector<1x16x512xbf16> to vector<16x512xbf16>
    %93 = vector.shape_cast %90 : vector<16x512xbf16> to vector<1x16x512xbf16>
    tpu.vector_store %arg13[%c0_41, %c112, %c0_42], %93 {strides = array<i32>} : memref<2x144x512xbf16, #tpu.memory_space<vmem>>, vector<1x16x512xbf16>,
    %c55_i32 = arith.constant 55 : i32
    %94 = tpu.dynamic_rotate %29 by %c55_i32 dim 1 : vector<16x512xf32>, i32 -> vector<16x512xf32>
    %c8 = arith.constant 8 : index
    %c0_43 = arith.constant 0 : index
    %95 = vector.load %arg3[%c8, %c0_43] : memref<27x512xf32, #tpu.memory_space<vmem>>, vector<1x512xf32>
    %96 = vector.broadcast %95 : vector<1x512xf32> to vector<16x512xf32>
    %97 = arith.mulf %94, %96 : vector<16x512xf32>
    %98 = arith.truncf %97 : vector<16x512xf32> to vector<16x512xbf16>
    %c0_44 = arith.constant 0 : index
    %c128 = arith.constant 128 : index
    %c0_45 = arith.constant 0 : index
    %99 = vector.load %arg13[%c0_44, %c128, %c0_45] : memref<2x144x512xbf16, #tpu.memory_space<vmem>>, vector<1x16x512xbf16>
    %100 = vector.shape_cast %99 : vector<1x16x512xbf16> to vector<16x512xbf16>
    %101 = vector.shape_cast %98 : vector<16x512xbf16> to vector<1x16x512xbf16>
    tpu.vector_store %arg13[%c0_44, %c128, %c0_45], %101 {strides = array<i32>} : memref<2x144x512xbf16, #tpu.memory_space<vmem>>, vector<1x16x512xbf16>,
    %c0_46 = arith.constant 0 : index
    %c0_47 = arith.constant 0 : index
    %102 = vector.load %arg4[%c0_46, %c0_47] : memref<16x432xbf16, #tpu.memory_space<vmem>>, vector<16x144xbf16>
    %c0_48 = arith.constant 0 : index
    %c0_49 = arith.constant 0 : index
    %c0_50 = arith.constant 0 : index
    %103 = vector.load %arg13[%c0_48, %c0_49, %c0_50] : memref<2x144x512xbf16, #tpu.memory_space<vmem>>, vector<1x144x512xbf16>
    %104 = vector.shape_cast %103 : vector<1x144x512xbf16> to vector<144x512xbf16>
    %cst_51 = arith.constant dense<0.000000e+00> : vector<16x512xf32>
    %105 = tpu.matmul %102, %104, %cst_51 {dimension_numbers = #tpu.dot_dimension_numbers<[1], [0], [0], [1], [0, 0, 1, 1], [], []>} : vector<16x144xbf16>, vector<144x512xbf16>, vector<16x512xf32> -> vector<16x512xf32>
    %c9_i32 = arith.constant 9 : i32
    %106 = tpu.dynamic_rotate %29 by %c9_i32 dim 1 : vector<16x512xf32>, i32 -> vector<16x512xf32>
    %c9 = arith.constant 9 : index
    %c0_52 = arith.constant 0 : index
    %107 = vector.load %arg3[%c9, %c0_52] : memref<27x512xf32, #tpu.memory_space<vmem>>, vector<1x512xf32>
    %108 = vector.broadcast %107 : vector<1x512xf32> to vector<16x512xf32>
    %109 = arith.mulf %106, %108 : vector<16x512xf32>
    %110 = arith.truncf %109 : vector<16x512xf32> to vector<16x512xbf16>
    %c1_53 = arith.constant 1 : index
    %c0_54 = arith.constant 0 : index
    %c0_55 = arith.constant 0 : index
    %111 = vector.load %arg13[%c1_53, %c0_54, %c0_55] : memref<2x144x512xbf16, #tpu.memory_space<vmem>>, vector<1x16x512xbf16>
    %112 = vector.shape_cast %111 : vector<1x16x512xbf16> to vector<16x512xbf16>
    %113 = vector.shape_cast %110 : vector<16x512xbf16> to vector<1x16x512xbf16>
    tpu.vector_store %arg13[%c1_53, %c0_54, %c0_55], %113 {strides = array<i32>} : memref<2x144x512xbf16, #tpu.memory_space<vmem>>, vector<1x16x512xbf16>,
    %c8_i32 = arith.constant 8 : i32
    %114 = tpu.dynamic_rotate %29 by %c8_i32 dim 1 : vector<16x512xf32>, i32 -> vector<16x512xf32>
    %c10 = arith.constant 10 : index
    %c0_56 = arith.constant 0 : index
    %115 = vector.load %arg3[%c10, %c0_56] : memref<27x512xf32, #tpu.memory_space<vmem>>, vector<1x512xf32>
    %116 = vector.broadcast %115 : vector<1x512xf32> to vector<16x512xf32>
    %117 = arith.mulf %114, %116 : vector<16x512xf32>
    %118 = arith.truncf %117 : vector<16x512xf32> to vector<16x512xbf16>
    %c1_57 = arith.constant 1 : index
    %c16_58 = arith.constant 16 : index
    %c0_59 = arith.constant 0 : index
    %119 = vector.load %arg13[%c1_57, %c16_58, %c0_59] : memref<2x144x512xbf16, #tpu.memory_space<vmem>>, vector<1x16x512xbf16>
    %120 = vector.shape_cast %119 : vector<1x16x512xbf16> to vector<16x512xbf16>
    %121 = vector.shape_cast %118 : vector<16x512xbf16> to vector<1x16x512xbf16>
    tpu.vector_store %arg13[%c1_57, %c16_58, %c0_59], %121 {strides = array<i32>} : memref<2x144x512xbf16, #tpu.memory_space<vmem>>, vector<1x16x512xbf16>,
    %c7_i32 = arith.constant 7 : i32
    %122 = tpu.dynamic_rotate %29 by %c7_i32 dim 1 : vector<16x512xf32>, i32 -> vector<16x512xf32>
    %c11 = arith.constant 11 : index
    %c0_60 = arith.constant 0 : index
    %123 = vector.load %arg3[%c11, %c0_60] : memref<27x512xf32, #tpu.memory_space<vmem>>, vector<1x512xf32>
    %124 = vector.broadcast %123 : vector<1x512xf32> to vector<16x512xf32>
    %125 = arith.mulf %122, %124 : vector<16x512xf32>
    %126 = arith.truncf %125 : vector<16x512xf32> to vector<16x512xbf16>
    %c1_61 = arith.constant 1 : index
    %c32_62 = arith.constant 32 : index
    %c0_63 = arith.constant 0 : index
    %127 = vector.load %arg13[%c1_61, %c32_62, %c0_63] : memref<2x144x512xbf16, #tpu.memory_space<vmem>>, vector<1x16x512xbf16>
    %128 = vector.shape_cast %127 : vector<1x16x512xbf16> to vector<16x512xbf16>
    %129 = vector.shape_cast %126 : vector<16x512xbf16> to vector<1x16x512xbf16>
    tpu.vector_store %arg13[%c1_61, %c32_62, %c0_63], %129 {strides = array<i32>} : memref<2x144x512xbf16, #tpu.memory_space<vmem>>, vector<1x16x512xbf16>,
    %c1_i32 = arith.constant 1 : i32
    %130 = tpu.dynamic_rotate %29 by %c1_i32 dim 1 : vector<16x512xf32>, i32 -> vector<16x512xf32>
    %c12 = arith.constant 12 : index
    %c0_64 = arith.constant 0 : index
    %131 = vector.load %arg3[%c12, %c0_64] : memref<27x512xf32, #tpu.memory_space<vmem>>, vector<1x512xf32>
    %132 = vector.broadcast %131 : vector<1x512xf32> to vector<16x512xf32>
    %133 = arith.mulf %130, %132 : vector<16x512xf32>
    %134 = arith.truncf %133 : vector<16x512xf32> to vector<16x512xbf16>
    %c1_65 = arith.constant 1 : index
    %c48_66 = arith.constant 48 : index
    %c0_67 = arith.constant 0 : index
    %135 = vector.load %arg13[%c1_65, %c48_66, %c0_67] : memref<2x144x512xbf16, #tpu.memory_space<vmem>>, vector<1x16x512xbf16>
    %136 = vector.shape_cast %135 : vector<1x16x512xbf16> to vector<16x512xbf16>
    %137 = vector.shape_cast %134 : vector<16x512xbf16> to vector<1x16x512xbf16>
    tpu.vector_store %arg13[%c1_65, %c48_66, %c0_67], %137 {strides = array<i32>} : memref<2x144x512xbf16, #tpu.memory_space<vmem>>, vector<1x16x512xbf16>,
    %138 = arith.truncf %29 : vector<16x512xf32> to vector<16x512xbf16>
    %c1_68 = arith.constant 1 : index
    %c64_69 = arith.constant 64 : index
    %c0_70 = arith.constant 0 : index
    %139 = vector.load %arg13[%c1_68, %c64_69, %c0_70] : memref<2x144x512xbf16, #tpu.memory_space<vmem>>, vector<1x16x512xbf16>
    %140 = vector.shape_cast %139 : vector<1x16x512xbf16> to vector<16x512xbf16>
    %141 = vector.shape_cast %138 : vector<16x512xbf16> to vector<1x16x512xbf16>
    tpu.vector_store %arg13[%c1_68, %c64_69, %c0_70], %141 {strides = array<i32>} : memref<2x144x512xbf16, #tpu.memory_space<vmem>>, vector<1x16x512xbf16>,
    %c511_i32 = arith.constant 511 : i32
    %142 = tpu.dynamic_rotate %29 by %c511_i32 dim 1 : vector<16x512xf32>, i32 -> vector<16x512xf32>
    %c14 = arith.constant 14 : index
    %c0_71 = arith.constant 0 : index
    %143 = vector.load %arg3[%c14, %c0_71] : memref<27x512xf32, #tpu.memory_space<vmem>>, vector<1x512xf32>
    %144 = vector.broadcast %143 : vector<1x512xf32> to vector<16x512xf32>
    %145 = arith.mulf %142, %144 : vector<16x512xf32>
    %146 = arith.truncf %145 : vector<16x512xf32> to vector<16x512xbf16>
    %c1_72 = arith.constant 1 : index
    %c80_73 = arith.constant 80 : index
    %c0_74 = arith.constant 0 : index
    %147 = vector.load %arg13[%c1_72, %c80_73, %c0_74] : memref<2x144x512xbf16, #tpu.memory_space<vmem>>, vector<1x16x512xbf16>
    %148 = vector.shape_cast %147 : vector<1x16x512xbf16> to vector<16x512xbf16>
    %149 = vector.shape_cast %146 : vector<16x512xbf16> to vector<1x16x512xbf16>
    tpu.vector_store %arg13[%c1_72, %c80_73, %c0_74], %149 {strides = array<i32>} : memref<2x144x512xbf16, #tpu.memory_space<vmem>>, vector<1x16x512xbf16>,
    %c505_i32 = arith.constant 505 : i32
    %150 = tpu.dynamic_rotate %29 by %c505_i32 dim 1 : vector<16x512xf32>, i32 -> vector<16x512xf32>
    %c15 = arith.constant 15 : index
    %c0_75 = arith.constant 0 : index
    %151 = vector.load %arg3[%c15, %c0_75] : memref<27x512xf32, #tpu.memory_space<vmem>>, vector<1x512xf32>
    %152 = vector.broadcast %151 : vector<1x512xf32> to vector<16x512xf32>
    %153 = arith.mulf %150, %152 : vector<16x512xf32>
    %154 = arith.truncf %153 : vector<16x512xf32> to vector<16x512xbf16>
    %c1_76 = arith.constant 1 : index
    %c96_77 = arith.constant 96 : index
    %c0_78 = arith.constant 0 : index
    %155 = vector.load %arg13[%c1_76, %c96_77, %c0_78] : memref<2x144x512xbf16, #tpu.memory_space<vmem>>, vector<1x16x512xbf16>
    %156 = vector.shape_cast %155 : vector<1x16x512xbf16> to vector<16x512xbf16>
    %157 = vector.shape_cast %154 : vector<16x512xbf16> to vector<1x16x512xbf16>
    tpu.vector_store %arg13[%c1_76, %c96_77, %c0_78], %157 {strides = array<i32>} : memref<2x144x512xbf16, #tpu.memory_space<vmem>>, vector<1x16x512xbf16>,
    %c504_i32 = arith.constant 504 : i32
    %158 = tpu.dynamic_rotate %29 by %c504_i32 dim 1 : vector<16x512xf32>, i32 -> vector<16x512xf32>
    %c16_79 = arith.constant 16 : index
    %c0_80 = arith.constant 0 : index
    %159 = vector.load %arg3[%c16_79, %c0_80] : memref<27x512xf32, #tpu.memory_space<vmem>>, vector<1x512xf32>
    %160 = vector.broadcast %159 : vector<1x512xf32> to vector<16x512xf32>
    %161 = arith.mulf %158, %160 : vector<16x512xf32>
    %162 = arith.truncf %161 : vector<16x512xf32> to vector<16x512xbf16>
    %c1_81 = arith.constant 1 : index
    %c112_82 = arith.constant 112 : index
    %c0_83 = arith.constant 0 : index
    %163 = vector.load %arg13[%c1_81, %c112_82, %c0_83] : memref<2x144x512xbf16, #tpu.memory_space<vmem>>, vector<1x16x512xbf16>
    %164 = vector.shape_cast %163 : vector<1x16x512xbf16> to vector<16x512xbf16>
    %165 = vector.shape_cast %162 : vector<16x512xbf16> to vector<1x16x512xbf16>
    tpu.vector_store %arg13[%c1_81, %c112_82, %c0_83], %165 {strides = array<i32>} : memref<2x144x512xbf16, #tpu.memory_space<vmem>>, vector<1x16x512xbf16>,
    %c503_i32 = arith.constant 503 : i32
    %166 = tpu.dynamic_rotate %29 by %c503_i32 dim 1 : vector<16x512xf32>, i32 -> vector<16x512xf32>
    %c17 = arith.constant 17 : index
    %c0_84 = arith.constant 0 : index
    %167 = vector.load %arg3[%c17, %c0_84] : memref<27x512xf32, #tpu.memory_space<vmem>>, vector<1x512xf32>
    %168 = vector.broadcast %167 : vector<1x512xf32> to vector<16x512xf32>
    %169 = arith.mulf %166, %168 : vector<16x512xf32>
    %170 = arith.truncf %169 : vector<16x512xf32> to vector<16x512xbf16>
    %c1_85 = arith.constant 1 : index
    %c128_86 = arith.constant 128 : index
    %c0_87 = arith.constant 0 : index
    %171 = vector.load %arg13[%c1_85, %c128_86, %c0_87] : memref<2x144x512xbf16, #tpu.memory_space<vmem>>, vector<1x16x512xbf16>
    %172 = vector.shape_cast %171 : vector<1x16x512xbf16> to vector<16x512xbf16>
    %173 = vector.shape_cast %170 : vector<16x512xbf16> to vector<1x16x512xbf16>
    tpu.vector_store %arg13[%c1_85, %c128_86, %c0_87], %173 {strides = array<i32>} : memref<2x144x512xbf16, #tpu.memory_space<vmem>>, vector<1x16x512xbf16>,
    %c0_88 = arith.constant 0 : index
    %c144 = arith.constant 144 : index
    %174 = vector.load %arg4[%c0_88, %c144] : memref<16x432xbf16, #tpu.memory_space<vmem>>, vector<16x144xbf16>
    %c1_89 = arith.constant 1 : index
    %c0_90 = arith.constant 0 : index
    %c0_91 = arith.constant 0 : index
    %175 = vector.load %arg13[%c1_89, %c0_90, %c0_91] : memref<2x144x512xbf16, #tpu.memory_space<vmem>>, vector<1x144x512xbf16>
    %176 = vector.shape_cast %175 : vector<1x144x512xbf16> to vector<144x512xbf16>
    %cst_92 = arith.constant dense<0.000000e+00> : vector<16x512xf32>
    %177 = tpu.matmul %174, %176, %cst_92 {dimension_numbers = #tpu.dot_dimension_numbers<[1], [0], [0], [1], [0, 0, 1, 1], [], []>} : vector<16x144xbf16>, vector<144x512xbf16>, vector<16x512xf32> -> vector<16x512xf32>
    %178 = arith.addf %105, %177 : vector<16x512xf32>
    %c457_i32 = arith.constant 457 : i32
    %179 = tpu.dynamic_rotate %29 by %c457_i32 dim 1 : vector<16x512xf32>, i32 -> vector<16x512xf32>
    %c18 = arith.constant 18 : index
    %c0_93 = arith.constant 0 : index
    %180 = vector.load %arg3[%c18, %c0_93] : memref<27x512xf32, #tpu.memory_space<vmem>>, vector<1x512xf32>
    %181 = vector.broadcast %180 : vector<1x512xf32> to vector<16x512xf32>
    %182 = arith.mulf %179, %181 : vector<16x512xf32>
    %183 = arith.truncf %182 : vector<16x512xf32> to vector<16x512xbf16>
    %c0_94 = arith.constant 0 : index
    %c0_95 = arith.constant 0 : index
    %c0_96 = arith.constant 0 : index
    %184 = vector.load %arg13[%c0_94, %c0_95, %c0_96] : memref<2x144x512xbf16, #tpu.memory_space<vmem>>, vector<1x16x512xbf16>
    %185 = vector.shape_cast %184 : vector<1x16x512xbf16> to vector<16x512xbf16>
    %186 = vector.shape_cast %183 : vector<16x512xbf16> to vector<1x16x512xbf16>
    tpu.vector_store %arg13[%c0_94, %c0_95, %c0_96], %186 {strides = array<i32>} : memref<2x144x512xbf16, #tpu.memory_space<vmem>>, vector<1x16x512xbf16>,
    %c456_i32 = arith.constant 456 : i32
    %187 = tpu.dynamic_rotate %29 by %c456_i32 dim 1 : vector<16x512xf32>, i32 -> vector<16x512xf32>
    %c19 = arith.constant 19 : index
    %c0_97 = arith.constant 0 : index
    %188 = vector.load %arg3[%c19, %c0_97] : memref<27x512xf32, #tpu.memory_space<vmem>>, vector<1x512xf32>
    %189 = vector.broadcast %188 : vector<1x512xf32> to vector<16x512xf32>
    %190 = arith.mulf %187, %189 : vector<16x512xf32>
    %191 = arith.truncf %190 : vector<16x512xf32> to vector<16x512xbf16>
    %c0_98 = arith.constant 0 : index
    %c16_99 = arith.constant 16 : index
    %c0_100 = arith.constant 0 : index
    %192 = vector.load %arg13[%c0_98, %c16_99, %c0_100] : memref<2x144x512xbf16, #tpu.memory_space<vmem>>, vector<1x16x512xbf16>
    %193 = vector.shape_cast %192 : vector<1x16x512xbf16> to vector<16x512xbf16>
    %194 = vector.shape_cast %191 : vector<16x512xbf16> to vector<1x16x512xbf16>
    tpu.vector_store %arg13[%c0_98, %c16_99, %c0_100], %194 {strides = array<i32>} : memref<2x144x512xbf16, #tpu.memory_space<vmem>>, vector<1x16x512xbf16>,
    %c455_i32 = arith.constant 455 : i32
    %195 = tpu.dynamic_rotate %29 by %c455_i32 dim 1 : vector<16x512xf32>, i32 -> vector<16x512xf32>
    %c20 = arith.constant 20 : index
    %c0_101 = arith.constant 0 : index
    %196 = vector.load %arg3[%c20, %c0_101] : memref<27x512xf32, #tpu.memory_space<vmem>>, vector<1x512xf32>
    %197 = vector.broadcast %196 : vector<1x512xf32> to vector<16x512xf32>
    %198 = arith.mulf %195, %197 : vector<16x512xf32>
    %199 = arith.truncf %198 : vector<16x512xf32> to vector<16x512xbf16>
    %c0_102 = arith.constant 0 : index
    %c32_103 = arith.constant 32 : index
    %c0_104 = arith.constant 0 : index
    %200 = vector.load %arg13[%c0_102, %c32_103, %c0_104] : memref<2x144x512xbf16, #tpu.memory_space<vmem>>, vector<1x16x512xbf16>
    %201 = vector.shape_cast %200 : vector<1x16x512xbf16> to vector<16x512xbf16>
    %202 = vector.shape_cast %199 : vector<16x512xbf16> to vector<1x16x512xbf16>
    tpu.vector_store %arg13[%c0_102, %c32_103, %c0_104], %202 {strides = array<i32>} : memref<2x144x512xbf16, #tpu.memory_space<vmem>>, vector<1x16x512xbf16>,
    %c449_i32 = arith.constant 449 : i32
    %203 = tpu.dynamic_rotate %29 by %c449_i32 dim 1 : vector<16x512xf32>, i32 -> vector<16x512xf32>
    %c21 = arith.constant 21 : index
    %c0_105 = arith.constant 0 : index
    %204 = vector.load %arg3[%c21, %c0_105] : memref<27x512xf32, #tpu.memory_space<vmem>>, vector<1x512xf32>
    %205 = vector.broadcast %204 : vector<1x512xf32> to vector<16x512xf32>
    %206 = arith.mulf %203, %205 : vector<16x512xf32>
    %207 = arith.truncf %206 : vector<16x512xf32> to vector<16x512xbf16>
    %c0_106 = arith.constant 0 : index
    %c48_107 = arith.constant 48 : index
    %c0_108 = arith.constant 0 : index
    %208 = vector.load %arg13[%c0_106, %c48_107, %c0_108] : memref<2x144x512xbf16, #tpu.memory_space<vmem>>, vector<1x16x512xbf16>
    %209 = vector.shape_cast %208 : vector<1x16x512xbf16> to vector<16x512xbf16>
    %210 = vector.shape_cast %207 : vector<16x512xbf16> to vector<1x16x512xbf16>
    tpu.vector_store %arg13[%c0_106, %c48_107, %c0_108], %210 {strides = array<i32>} : memref<2x144x512xbf16, #tpu.memory_space<vmem>>, vector<1x16x512xbf16>,
    %c448_i32 = arith.constant 448 : i32
    %211 = tpu.dynamic_rotate %29 by %c448_i32 dim 1 : vector<16x512xf32>, i32 -> vector<16x512xf32>
    %c22 = arith.constant 22 : index
    %c0_109 = arith.constant 0 : index
    %212 = vector.load %arg3[%c22, %c0_109] : memref<27x512xf32, #tpu.memory_space<vmem>>, vector<1x512xf32>
    %213 = vector.broadcast %212 : vector<1x512xf32> to vector<16x512xf32>
    %214 = arith.mulf %211, %213 : vector<16x512xf32>
    %215 = arith.truncf %214 : vector<16x512xf32> to vector<16x512xbf16>
    %c0_110 = arith.constant 0 : index
    %c64_111 = arith.constant 64 : index
    %c0_112 = arith.constant 0 : index
    %216 = vector.load %arg13[%c0_110, %c64_111, %c0_112] : memref<2x144x512xbf16, #tpu.memory_space<vmem>>, vector<1x16x512xbf16>
    %217 = vector.shape_cast %216 : vector<1x16x512xbf16> to vector<16x512xbf16>
    %218 = vector.shape_cast %215 : vector<16x512xbf16> to vector<1x16x512xbf16>
    tpu.vector_store %arg13[%c0_110, %c64_111, %c0_112], %218 {strides = array<i32>} : memref<2x144x512xbf16, #tpu.memory_space<vmem>>, vector<1x16x512xbf16>,
    %c447_i32 = arith.constant 447 : i32
    %219 = tpu.dynamic_rotate %29 by %c447_i32 dim 1 : vector<16x512xf32>, i32 -> vector<16x512xf32>
    %c23 = arith.constant 23 : index
    %c0_113 = arith.constant 0 : index
    %220 = vector.load %arg3[%c23, %c0_113] : memref<27x512xf32, #tpu.memory_space<vmem>>, vector<1x512xf32>
    %221 = vector.broadcast %220 : vector<1x512xf32> to vector<16x512xf32>
    %222 = arith.mulf %219, %221 : vector<16x512xf32>
    %223 = arith.truncf %222 : vector<16x512xf32> to vector<16x512xbf16>
    %c0_114 = arith.constant 0 : index
    %c80_115 = arith.constant 80 : index
    %c0_116 = arith.constant 0 : index
    %224 = vector.load %arg13[%c0_114, %c80_115, %c0_116] : memref<2x144x512xbf16, #tpu.memory_space<vmem>>, vector<1x16x512xbf16>
    %225 = vector.shape_cast %224 : vector<1x16x512xbf16> to vector<16x512xbf16>
    %226 = vector.shape_cast %223 : vector<16x512xbf16> to vector<1x16x512xbf16>
    tpu.vector_store %arg13[%c0_114, %c80_115, %c0_116], %226 {strides = array<i32>} : memref<2x144x512xbf16, #tpu.memory_space<vmem>>, vector<1x16x512xbf16>,
    %c441_i32 = arith.constant 441 : i32
    %227 = tpu.dynamic_rotate %29 by %c441_i32 dim 1 : vector<16x512xf32>, i32 -> vector<16x512xf32>
    %c24 = arith.constant 24 : index
    %c0_117 = arith.constant 0 : index
    %228 = vector.load %arg3[%c24, %c0_117] : memref<27x512xf32, #tpu.memory_space<vmem>>, vector<1x512xf32>
    %229 = vector.broadcast %228 : vector<1x512xf32> to vector<16x512xf32>
    %230 = arith.mulf %227, %229 : vector<16x512xf32>
    %231 = arith.truncf %230 : vector<16x512xf32> to vector<16x512xbf16>
    %c0_118 = arith.constant 0 : index
    %c96_119 = arith.constant 96 : index
    %c0_120 = arith.constant 0 : index
    %232 = vector.load %arg13[%c0_118, %c96_119, %c0_120] : memref<2x144x512xbf16, #tpu.memory_space<vmem>>, vector<1x16x512xbf16>
    %233 = vector.shape_cast %232 : vector<1x16x512xbf16> to vector<16x512xbf16>
    %234 = vector.shape_cast %231 : vector<16x512xbf16> to vector<1x16x512xbf16>
    tpu.vector_store %arg13[%c0_118, %c96_119, %c0_120], %234 {strides = array<i32>} : memref<2x144x512xbf16, #tpu.memory_space<vmem>>, vector<1x16x512xbf16>,
    %c440_i32 = arith.constant 440 : i32
    %235 = tpu.dynamic_rotate %29 by %c440_i32 dim 1 : vector<16x512xf32>, i32 -> vector<16x512xf32>
    %c25 = arith.constant 25 : index
    %c0_121 = arith.constant 0 : index
    %236 = vector.load %arg3[%c25, %c0_121] : memref<27x512xf32, #tpu.memory_space<vmem>>, vector<1x512xf32>
    %237 = vector.broadcast %236 : vector<1x512xf32> to vector<16x512xf32>
    %238 = arith.mulf %235, %237 : vector<16x512xf32>
    %239 = arith.truncf %238 : vector<16x512xf32> to vector<16x512xbf16>
    %c0_122 = arith.constant 0 : index
    %c112_123 = arith.constant 112 : index
    %c0_124 = arith.constant 0 : index
    %240 = vector.load %arg13[%c0_122, %c112_123, %c0_124] : memref<2x144x512xbf16, #tpu.memory_space<vmem>>, vector<1x16x512xbf16>
    %241 = vector.shape_cast %240 : vector<1x16x512xbf16> to vector<16x512xbf16>
    %242 = vector.shape_cast %239 : vector<16x512xbf16> to vector<1x16x512xbf16>
    tpu.vector_store %arg13[%c0_122, %c112_123, %c0_124], %242 {strides = array<i32>} : memref<2x144x512xbf16, #tpu.memory_space<vmem>>, vector<1x16x512xbf16>,
    %c439_i32 = arith.constant 439 : i32
    %243 = tpu.dynamic_rotate %29 by %c439_i32 dim 1 : vector<16x512xf32>, i32 -> vector<16x512xf32>
    %c26 = arith.constant 26 : index
    %c0_125 = arith.constant 0 : index
    %244 = vector.load %arg3[%c26, %c0_125] : memref<27x512xf32, #tpu.memory_space<vmem>>, vector<1x512xf32>
    %245 = vector.broadcast %244 : vector<1x512xf32> to vector<16x512xf32>
    %246 = arith.mulf %243, %245 : vector<16x512xf32>
    %247 = arith.truncf %246 : vector<16x512xf32> to vector<16x512xbf16>
    %c0_126 = arith.constant 0 : index
    %c128_127 = arith.constant 128 : index
    %c0_128 = arith.constant 0 : index
    %248 = vector.load %arg13[%c0_126, %c128_127, %c0_128] : memref<2x144x512xbf16, #tpu.memory_space<vmem>>, vector<1x16x512xbf16>
    %249 = vector.shape_cast %248 : vector<1x16x512xbf16> to vector<16x512xbf16>
    %250 = vector.shape_cast %247 : vector<16x512xbf16> to vector<1x16x512xbf16>
    tpu.vector_store %arg13[%c0_126, %c128_127, %c0_128], %250 {strides = array<i32>} : memref<2x144x512xbf16, #tpu.memory_space<vmem>>, vector<1x16x512xbf16>,
    %c0_129 = arith.constant 0 : index
    %c288 = arith.constant 288 : index
    %251 = vector.load %arg4[%c0_129, %c288] : memref<16x432xbf16, #tpu.memory_space<vmem>>, vector<16x144xbf16>
    %c0_130 = arith.constant 0 : index
    %c0_131 = arith.constant 0 : index
    %c0_132 = arith.constant 0 : index
    %252 = vector.load %arg13[%c0_130, %c0_131, %c0_132] : memref<2x144x512xbf16, #tpu.memory_space<vmem>>, vector<1x144x512xbf16>
    %253 = vector.shape_cast %252 : vector<1x144x512xbf16> to vector<144x512xbf16>
    %cst_133 = arith.constant dense<0.000000e+00> : vector<16x512xf32>
    %254 = tpu.matmul %251, %253, %cst_133 {dimension_numbers = #tpu.dot_dimension_numbers<[1], [0], [0], [1], [0, 0, 1, 1], [], []>} : vector<16x144xbf16>, vector<144x512xbf16>, vector<16x512xf32> -> vector<16x512xf32>
    %255 = arith.addf %178, %254 : vector<16x512xf32>
    %c0_134 = arith.constant 0 : index
    %c0_135 = arith.constant 0 : index
    %256 = vector.load %arg5[%c0_134, %c0_135] : memref<16x1xf32, #tpu.memory_space<vmem>>, vector<16x1xf32>
    %257 = vector.broadcast %256 : vector<16x1xf32> to vector<16x512xf32>
    %258 = arith.addf %255, %257 : vector<16x512xf32>
    %cst_136 = arith.constant dense<0.000000e+00> : vector<16xf32>
    %259 = vector.multi_reduction <add>, %258, %cst_136 [1] : vector<16x512xf32> to vector<16xf32>
    %260 = vector.shape_cast %259 : vector<16xf32> to vector<16x1xf32>
    %c0_137 = arith.constant 0 : index
    %c0_138 = arith.constant 0 : index
    %261 = vector.load %arg2[%c0_137, %c0_138] : memref<16x16xf32, #tpu.memory_space<vmem>>, vector<16x16xf32>
    %cst_139 = arith.constant dense<0.000000e+00> : vector<16x1xf32>
    %262 = tpu.matmul %261, %260, %cst_139 {dimension_numbers = #tpu.dot_dimension_numbers<[1], [0], [0], [1], [0, 0, 1, 1], [], []>} : vector<16x16xf32>, vector<16x1xf32>, vector<16x1xf32> -> vector<16x1xf32>
    %cst_140 = arith.constant 9.765625E-4 : f32
    %263 = vector.broadcast %cst_140 : f32 to vector<16x1xf32>
    %264 = arith.mulf %262, %263 : vector<16x1xf32>
    %265 = vector.broadcast %264 : vector<16x1xf32> to vector<16x512xf32>
    %266 = arith.subf %258, %265 : vector<16x512xf32>
    %267 = arith.mulf %266, %266 : vector<16x512xf32>
    %cst_141 = arith.constant dense<0.000000e+00> : vector<16xf32>
    %268 = vector.multi_reduction <add>, %267, %cst_141 [1] : vector<16x512xf32> to vector<16xf32>
    %269 = vector.shape_cast %268 : vector<16xf32> to vector<16x1xf32>
    %c0_142 = arith.constant 0 : index
    %c0_143 = arith.constant 0 : index
    %270 = vector.load %arg2[%c0_142, %c0_143] : memref<16x16xf32, #tpu.memory_space<vmem>>, vector<16x16xf32>
    %cst_144 = arith.constant dense<0.000000e+00> : vector<16x1xf32>
    %271 = tpu.matmul %270, %269, %cst_144 {dimension_numbers = #tpu.dot_dimension_numbers<[1], [0], [0], [1], [0, 0, 1, 1], [], []>} : vector<16x16xf32>, vector<16x1xf32>, vector<16x1xf32> -> vector<16x1xf32>
    %cst_145 = arith.constant 9.765625E-4 : f32
    %272 = vector.broadcast %cst_145 : f32 to vector<16x1xf32>
    %273 = arith.mulf %271, %272 : vector<16x1xf32>
    %cst_146 = arith.constant 9.99999974E-6 : f32
    %274 = vector.broadcast %cst_146 : f32 to vector<16x1xf32>
    %275 = arith.addf %273, %274 : vector<16x1xf32>
    %276 = math.rsqrt %275 : vector<16x1xf32>
    %277 = vector.broadcast %276 : vector<16x1xf32> to vector<16x512xf32>
    %278 = arith.mulf %266, %277 : vector<16x512xf32>
    %c0_147 = arith.constant 0 : index
    %c0_148 = arith.constant 0 : index
    %279 = vector.load %arg10[%c0_147, %c0_148] : memref<16x1xf32, #tpu.memory_space<vmem>>, vector<16x1xf32>
    %280 = vector.broadcast %279 : vector<16x1xf32> to vector<16x512xf32>
    %281 = arith.mulf %278, %280 : vector<16x512xf32>
    %c0_149 = arith.constant 0 : index
    %c0_150 = arith.constant 0 : index
    %282 = vector.load %arg11[%c0_149, %c0_150] : memref<16x1xf32, #tpu.memory_space<vmem>>, vector<16x1xf32>
    %283 = vector.broadcast %282 : vector<16x1xf32> to vector<16x512xf32>
    %284 = arith.addf %281, %283 : vector<16x512xf32>
    %cst_151 = arith.constant 0.000000e+00 : f32
    %285 = vector.broadcast %cst_151 : f32 to vector<16x512xf32>
    %286 = arith.maximumf %284, %285 : vector<16x512xf32>
    %c73_i32_152 = arith.constant 73 : i32
    %287 = tpu.dynamic_rotate %286 by %c73_i32_152 dim 1 : vector<16x512xf32>, i32 -> vector<16x512xf32>
    %c0_153 = arith.constant 0 : index
    %c0_154 = arith.constant 0 : index
    %288 = vector.load %arg3[%c0_153, %c0_154] : memref<27x512xf32, #tpu.memory_space<vmem>>, vector<1x512xf32>
    %289 = vector.broadcast %288 : vector<1x512xf32> to vector<16x512xf32>
    %290 = arith.mulf %287, %289 : vector<16x512xf32>
    %291 = arith.truncf %290 : vector<16x512xf32> to vector<16x512xbf16>
    %c0_155 = arith.constant 0 : index
    %c0_156 = arith.constant 0 : index
    %c0_157 = arith.constant 0 : index
    %292 = vector.load %arg13[%c0_155, %c0_156, %c0_157] : memref<2x144x512xbf16, #tpu.memory_space<vmem>>, vector<1x16x512xbf16>
    %293 = vector.shape_cast %292 : vector<1x16x512xbf16> to vector<16x512xbf16>
    %294 = vector.shape_cast %291 : vector<16x512xbf16> to vector<1x16x512xbf16>
    tpu.vector_store %arg13[%c0_155, %c0_156, %c0_157], %294 {strides = array<i32>} : memref<2x144x512xbf16, #tpu.memory_space<vmem>>, vector<1x16x512xbf16>,
    %c72_i32_158 = arith.constant 72 : i32
    %295 = tpu.dynamic_rotate %286 by %c72_i32_158 dim 1 : vector<16x512xf32>, i32 -> vector<16x512xf32>
    %c1_159 = arith.constant 1 : index
    %c0_160 = arith.constant 0 : index
    %296 = vector.load %arg3[%c1_159, %c0_160] : memref<27x512xf32, #tpu.memory_space<vmem>>, vector<1x512xf32>
    %297 = vector.broadcast %296 : vector<1x512xf32> to vector<16x512xf32>
    %298 = arith.mulf %295, %297 : vector<16x512xf32>
    %299 = arith.truncf %298 : vector<16x512xf32> to vector<16x512xbf16>
    %c0_161 = arith.constant 0 : index
    %c16_162 = arith.constant 16 : index
    %c0_163 = arith.constant 0 : index
    %300 = vector.load %arg13[%c0_161, %c16_162, %c0_163] : memref<2x144x512xbf16, #tpu.memory_space<vmem>>, vector<1x16x512xbf16>
    %301 = vector.shape_cast %300 : vector<1x16x512xbf16> to vector<16x512xbf16>
    %302 = vector.shape_cast %299 : vector<16x512xbf16> to vector<1x16x512xbf16>
    tpu.vector_store %arg13[%c0_161, %c16_162, %c0_163], %302 {strides = array<i32>} : memref<2x144x512xbf16, #tpu.memory_space<vmem>>, vector<1x16x512xbf16>,
    %c71_i32_164 = arith.constant 71 : i32
    %303 = tpu.dynamic_rotate %286 by %c71_i32_164 dim 1 : vector<16x512xf32>, i32 -> vector<16x512xf32>
    %c2_165 = arith.constant 2 : index
    %c0_166 = arith.constant 0 : index
    %304 = vector.load %arg3[%c2_165, %c0_166] : memref<27x512xf32, #tpu.memory_space<vmem>>, vector<1x512xf32>
    %305 = vector.broadcast %304 : vector<1x512xf32> to vector<16x512xf32>
    %306 = arith.mulf %303, %305 : vector<16x512xf32>
    %307 = arith.truncf %306 : vector<16x512xf32> to vector<16x512xbf16>
    %c0_167 = arith.constant 0 : index
    %c32_168 = arith.constant 32 : index
    %c0_169 = arith.constant 0 : index
    %308 = vector.load %arg13[%c0_167, %c32_168, %c0_169] : memref<2x144x512xbf16, #tpu.memory_space<vmem>>, vector<1x16x512xbf16>
    %309 = vector.shape_cast %308 : vector<1x16x512xbf16> to vector<16x512xbf16>
    %310 = vector.shape_cast %307 : vector<16x512xbf16> to vector<1x16x512xbf16>
    tpu.vector_store %arg13[%c0_167, %c32_168, %c0_169], %310 {strides = array<i32>} : memref<2x144x512xbf16, #tpu.memory_space<vmem>>, vector<1x16x512xbf16>,
    %c65_i32_170 = arith.constant 65 : i32
    %311 = tpu.dynamic_rotate %286 by %c65_i32_170 dim 1 : vector<16x512xf32>, i32 -> vector<16x512xf32>
    %c3_171 = arith.constant 3 : index
    %c0_172 = arith.constant 0 : index
    %312 = vector.load %arg3[%c3_171, %c0_172] : memref<27x512xf32, #tpu.memory_space<vmem>>, vector<1x512xf32>
    %313 = vector.broadcast %312 : vector<1x512xf32> to vector<16x512xf32>
    %314 = arith.mulf %311, %313 : vector<16x512xf32>
    %315 = arith.truncf %314 : vector<16x512xf32> to vector<16x512xbf16>
    %c0_173 = arith.constant 0 : index
    %c48_174 = arith.constant 48 : index
    %c0_175 = arith.constant 0 : index
    %316 = vector.load %arg13[%c0_173, %c48_174, %c0_175] : memref<2x144x512xbf16, #tpu.memory_space<vmem>>, vector<1x16x512xbf16>
    %317 = vector.shape_cast %316 : vector<1x16x512xbf16> to vector<16x512xbf16>
    %318 = vector.shape_cast %315 : vector<16x512xbf16> to vector<1x16x512xbf16>
    tpu.vector_store %arg13[%c0_173, %c48_174, %c0_175], %318 {strides = array<i32>} : memref<2x144x512xbf16, #tpu.memory_space<vmem>>, vector<1x16x512xbf16>,
    %c64_i32_176 = arith.constant 64 : i32
    %319 = tpu.dynamic_rotate %286 by %c64_i32_176 dim 1 : vector<16x512xf32>, i32 -> vector<16x512xf32>
    %c4_177 = arith.constant 4 : index
    %c0_178 = arith.constant 0 : index
    %320 = vector.load %arg3[%c4_177, %c0_178] : memref<27x512xf32, #tpu.memory_space<vmem>>, vector<1x512xf32>
    %321 = vector.broadcast %320 : vector<1x512xf32> to vector<16x512xf32>
    %322 = arith.mulf %319, %321 : vector<16x512xf32>
    %323 = arith.truncf %322 : vector<16x512xf32> to vector<16x512xbf16>
    %c0_179 = arith.constant 0 : index
    %c64_180 = arith.constant 64 : index
    %c0_181 = arith.constant 0 : index
    %324 = vector.load %arg13[%c0_179, %c64_180, %c0_181] : memref<2x144x512xbf16, #tpu.memory_space<vmem>>, vector<1x16x512xbf16>
    %325 = vector.shape_cast %324 : vector<1x16x512xbf16> to vector<16x512xbf16>
    %326 = vector.shape_cast %323 : vector<16x512xbf16> to vector<1x16x512xbf16>
    tpu.vector_store %arg13[%c0_179, %c64_180, %c0_181], %326 {strides = array<i32>} : memref<2x144x512xbf16, #tpu.memory_space<vmem>>, vector<1x16x512xbf16>,
    %c63_i32_182 = arith.constant 63 : i32
    %327 = tpu.dynamic_rotate %286 by %c63_i32_182 dim 1 : vector<16x512xf32>, i32 -> vector<16x512xf32>
    %c5_183 = arith.constant 5 : index
    %c0_184 = arith.constant 0 : index
    %328 = vector.load %arg3[%c5_183, %c0_184] : memref<27x512xf32, #tpu.memory_space<vmem>>, vector<1x512xf32>
    %329 = vector.broadcast %328 : vector<1x512xf32> to vector<16x512xf32>
    %330 = arith.mulf %327, %329 : vector<16x512xf32>
    %331 = arith.truncf %330 : vector<16x512xf32> to vector<16x512xbf16>
    %c0_185 = arith.constant 0 : index
    %c80_186 = arith.constant 80 : index
    %c0_187 = arith.constant 0 : index
    %332 = vector.load %arg13[%c0_185, %c80_186, %c0_187] : memref<2x144x512xbf16, #tpu.memory_space<vmem>>, vector<1x16x512xbf16>
    %333 = vector.shape_cast %332 : vector<1x16x512xbf16> to vector<16x512xbf16>
    %334 = vector.shape_cast %331 : vector<16x512xbf16> to vector<1x16x512xbf16>
    tpu.vector_store %arg13[%c0_185, %c80_186, %c0_187], %334 {strides = array<i32>} : memref<2x144x512xbf16, #tpu.memory_space<vmem>>, vector<1x16x512xbf16>,
    %c57_i32_188 = arith.constant 57 : i32
    %335 = tpu.dynamic_rotate %286 by %c57_i32_188 dim 1 : vector<16x512xf32>, i32 -> vector<16x512xf32>
    %c6_189 = arith.constant 6 : index
    %c0_190 = arith.constant 0 : index
    %336 = vector.load %arg3[%c6_189, %c0_190] : memref<27x512xf32, #tpu.memory_space<vmem>>, vector<1x512xf32>
    %337 = vector.broadcast %336 : vector<1x512xf32> to vector<16x512xf32>
    %338 = arith.mulf %335, %337 : vector<16x512xf32>
    %339 = arith.truncf %338 : vector<16x512xf32> to vector<16x512xbf16>
    %c0_191 = arith.constant 0 : index
    %c96_192 = arith.constant 96 : index
    %c0_193 = arith.constant 0 : index
    %340 = vector.load %arg13[%c0_191, %c96_192, %c0_193] : memref<2x144x512xbf16, #tpu.memory_space<vmem>>, vector<1x16x512xbf16>
    %341 = vector.shape_cast %340 : vector<1x16x512xbf16> to vector<16x512xbf16>
    %342 = vector.shape_cast %339 : vector<16x512xbf16> to vector<1x16x512xbf16>
    tpu.vector_store %arg13[%c0_191, %c96_192, %c0_193], %342 {strides = array<i32>} : memref<2x144x512xbf16, #tpu.memory_space<vmem>>, vector<1x16x512xbf16>,
    %c56_i32_194 = arith.constant 56 : i32
    %343 = tpu.dynamic_rotate %286 by %c56_i32_194 dim 1 : vector<16x512xf32>, i32 -> vector<16x512xf32>
    %c7_195 = arith.constant 7 : index
    %c0_196 = arith.constant 0 : index
    %344 = vector.load %arg3[%c7_195, %c0_196] : memref<27x512xf32, #tpu.memory_space<vmem>>, vector<1x512xf32>
    %345 = vector.broadcast %344 : vector<1x512xf32> to vector<16x512xf32>
    %346 = arith.mulf %343, %345 : vector<16x512xf32>
    %347 = arith.truncf %346 : vector<16x512xf32> to vector<16x512xbf16>
    %c0_197 = arith.constant 0 : index
    %c112_198 = arith.constant 112 : index
    %c0_199 = arith.constant 0 : index
    %348 = vector.load %arg13[%c0_197, %c112_198, %c0_199] : memref<2x144x512xbf16, #tpu.memory_space<vmem>>, vector<1x16x512xbf16>
    %349 = vector.shape_cast %348 : vector<1x16x512xbf16> to vector<16x512xbf16>
    %350 = vector.shape_cast %347 : vector<16x512xbf16> to vector<1x16x512xbf16>
    tpu.vector_store %arg13[%c0_197, %c112_198, %c0_199], %350 {strides = array<i32>} : memref<2x144x512xbf16, #tpu.memory_space<vmem>>, vector<1x16x512xbf16>,
    %c55_i32_200 = arith.constant 55 : i32
    %351 = tpu.dynamic_rotate %286 by %c55_i32_200 dim 1 : vector<16x512xf32>, i32 -> vector<16x512xf32>
    %c8_201 = arith.constant 8 : index
    %c0_202 = arith.constant 0 : index
    %352 = vector.load %arg3[%c8_201, %c0_202] : memref<27x512xf32, #tpu.memory_space<vmem>>, vector<1x512xf32>
    %353 = vector.broadcast %352 : vector<1x512xf32> to vector<16x512xf32>
    %354 = arith.mulf %351, %353 : vector<16x512xf32>
    %355 = arith.truncf %354 : vector<16x512xf32> to vector<16x512xbf16>
    %c0_203 = arith.constant 0 : index
    %c128_204 = arith.constant 128 : index
    %c0_205 = arith.constant 0 : index
    %356 = vector.load %arg13[%c0_203, %c128_204, %c0_205] : memref<2x144x512xbf16, #tpu.memory_space<vmem>>, vector<1x16x512xbf16>
    %357 = vector.shape_cast %356 : vector<1x16x512xbf16> to vector<16x512xbf16>
    %358 = vector.shape_cast %355 : vector<16x512xbf16> to vector<1x16x512xbf16>
    tpu.vector_store %arg13[%c0_203, %c128_204, %c0_205], %358 {strides = array<i32>} : memref<2x144x512xbf16, #tpu.memory_space<vmem>>, vector<1x16x512xbf16>,
    %c0_206 = arith.constant 0 : index
    %c0_207 = arith.constant 0 : index
    %359 = vector.load %arg8[%c0_206, %c0_207] : memref<16x432xbf16, #tpu.memory_space<vmem>>, vector<16x144xbf16>
    %c0_208 = arith.constant 0 : index
    %c0_209 = arith.constant 0 : index
    %c0_210 = arith.constant 0 : index
    %360 = vector.load %arg13[%c0_208, %c0_209, %c0_210] : memref<2x144x512xbf16, #tpu.memory_space<vmem>>, vector<1x144x512xbf16>
    %361 = vector.shape_cast %360 : vector<1x144x512xbf16> to vector<144x512xbf16>
    %cst_211 = arith.constant dense<0.000000e+00> : vector<16x512xf32>
    %362 = tpu.matmul %359, %361, %cst_211 {dimension_numbers = #tpu.dot_dimension_numbers<[1], [0], [0], [1], [0, 0, 1, 1], [], []>} : vector<16x144xbf16>, vector<144x512xbf16>, vector<16x512xf32> -> vector<16x512xf32>
    %c9_i32_212 = arith.constant 9 : i32
    %363 = tpu.dynamic_rotate %286 by %c9_i32_212 dim 1 : vector<16x512xf32>, i32 -> vector<16x512xf32>
    %c9_213 = arith.constant 9 : index
    %c0_214 = arith.constant 0 : index
    %364 = vector.load %arg3[%c9_213, %c0_214] : memref<27x512xf32, #tpu.memory_space<vmem>>, vector<1x512xf32>
    %365 = vector.broadcast %364 : vector<1x512xf32> to vector<16x512xf32>
    %366 = arith.mulf %363, %365 : vector<16x512xf32>
    %367 = arith.truncf %366 : vector<16x512xf32> to vector<16x512xbf16>
    %c1_215 = arith.constant 1 : index
    %c0_216 = arith.constant 0 : index
    %c0_217 = arith.constant 0 : index
    %368 = vector.load %arg13[%c1_215, %c0_216, %c0_217] : memref<2x144x512xbf16, #tpu.memory_space<vmem>>, vector<1x16x512xbf16>
    %369 = vector.shape_cast %368 : vector<1x16x512xbf16> to vector<16x512xbf16>
    %370 = vector.shape_cast %367 : vector<16x512xbf16> to vector<1x16x512xbf16>
    tpu.vector_store %arg13[%c1_215, %c0_216, %c0_217], %370 {strides = array<i32>} : memref<2x144x512xbf16, #tpu.memory_space<vmem>>, vector<1x16x512xbf16>,
    %c8_i32_218 = arith.constant 8 : i32
    %371 = tpu.dynamic_rotate %286 by %c8_i32_218 dim 1 : vector<16x512xf32>, i32 -> vector<16x512xf32>
    %c10_219 = arith.constant 10 : index
    %c0_220 = arith.constant 0 : index
    %372 = vector.load %arg3[%c10_219, %c0_220] : memref<27x512xf32, #tpu.memory_space<vmem>>, vector<1x512xf32>
    %373 = vector.broadcast %372 : vector<1x512xf32> to vector<16x512xf32>
    %374 = arith.mulf %371, %373 : vector<16x512xf32>
    %375 = arith.truncf %374 : vector<16x512xf32> to vector<16x512xbf16>
    %c1_221 = arith.constant 1 : index
    %c16_222 = arith.constant 16 : index
    %c0_223 = arith.constant 0 : index
    %376 = vector.load %arg13[%c1_221, %c16_222, %c0_223] : memref<2x144x512xbf16, #tpu.memory_space<vmem>>, vector<1x16x512xbf16>
    %377 = vector.shape_cast %376 : vector<1x16x512xbf16> to vector<16x512xbf16>
    %378 = vector.shape_cast %375 : vector<16x512xbf16> to vector<1x16x512xbf16>
    tpu.vector_store %arg13[%c1_221, %c16_222, %c0_223], %378 {strides = array<i32>} : memref<2x144x512xbf16, #tpu.memory_space<vmem>>, vector<1x16x512xbf16>,
    %c7_i32_224 = arith.constant 7 : i32
    %379 = tpu.dynamic_rotate %286 by %c7_i32_224 dim 1 : vector<16x512xf32>, i32 -> vector<16x512xf32>
    %c11_225 = arith.constant 11 : index
    %c0_226 = arith.constant 0 : index
    %380 = vector.load %arg3[%c11_225, %c0_226] : memref<27x512xf32, #tpu.memory_space<vmem>>, vector<1x512xf32>
    %381 = vector.broadcast %380 : vector<1x512xf32> to vector<16x512xf32>
    %382 = arith.mulf %379, %381 : vector<16x512xf32>
    %383 = arith.truncf %382 : vector<16x512xf32> to vector<16x512xbf16>
    %c1_227 = arith.constant 1 : index
    %c32_228 = arith.constant 32 : index
    %c0_229 = arith.constant 0 : index
    %384 = vector.load %arg13[%c1_227, %c32_228, %c0_229] : memref<2x144x512xbf16, #tpu.memory_space<vmem>>, vector<1x16x512xbf16>
    %385 = vector.shape_cast %384 : vector<1x16x512xbf16> to vector<16x512xbf16>
    %386 = vector.shape_cast %383 : vector<16x512xbf16> to vector<1x16x512xbf16>
    tpu.vector_store %arg13[%c1_227, %c32_228, %c0_229], %386 {strides = array<i32>} : memref<2x144x512xbf16, #tpu.memory_space<vmem>>, vector<1x16x512xbf16>,
    %c1_i32_230 = arith.constant 1 : i32
    %387 = tpu.dynamic_rotate %286 by %c1_i32_230 dim 1 : vector<16x512xf32>, i32 -> vector<16x512xf32>
    %c12_231 = arith.constant 12 : index
    %c0_232 = arith.constant 0 : index
    %388 = vector.load %arg3[%c12_231, %c0_232] : memref<27x512xf32, #tpu.memory_space<vmem>>, vector<1x512xf32>
    %389 = vector.broadcast %388 : vector<1x512xf32> to vector<16x512xf32>
    %390 = arith.mulf %387, %389 : vector<16x512xf32>
    %391 = arith.truncf %390 : vector<16x512xf32> to vector<16x512xbf16>
    %c1_233 = arith.constant 1 : index
    %c48_234 = arith.constant 48 : index
    %c0_235 = arith.constant 0 : index
    %392 = vector.load %arg13[%c1_233, %c48_234, %c0_235] : memref<2x144x512xbf16, #tpu.memory_space<vmem>>, vector<1x16x512xbf16>
    %393 = vector.shape_cast %392 : vector<1x16x512xbf16> to vector<16x512xbf16>
    %394 = vector.shape_cast %391 : vector<16x512xbf16> to vector<1x16x512xbf16>
    tpu.vector_store %arg13[%c1_233, %c48_234, %c0_235], %394 {strides = array<i32>} : memref<2x144x512xbf16, #tpu.memory_space<vmem>>, vector<1x16x512xbf16>,
    %395 = arith.truncf %286 : vector<16x512xf32> to vector<16x512xbf16>
    %c1_236 = arith.constant 1 : index
    %c64_237 = arith.constant 64 : index
    %c0_238 = arith.constant 0 : index
    %396 = vector.load %arg13[%c1_236, %c64_237, %c0_238] : memref<2x144x512xbf16, #tpu.memory_space<vmem>>, vector<1x16x512xbf16>
    %397 = vector.shape_cast %396 : vector<1x16x512xbf16> to vector<16x512xbf16>
    %398 = vector.shape_cast %395 : vector<16x512xbf16> to vector<1x16x512xbf16>
    tpu.vector_store %arg13[%c1_236, %c64_237, %c0_238], %398 {strides = array<i32>} : memref<2x144x512xbf16, #tpu.memory_space<vmem>>, vector<1x16x512xbf16>,
    %c511_i32_239 = arith.constant 511 : i32
    %399 = tpu.dynamic_rotate %286 by %c511_i32_239 dim 1 : vector<16x512xf32>, i32 -> vector<16x512xf32>
    %c14_240 = arith.constant 14 : index
    %c0_241 = arith.constant 0 : index
    %400 = vector.load %arg3[%c14_240, %c0_241] : memref<27x512xf32, #tpu.memory_space<vmem>>, vector<1x512xf32>
    %401 = vector.broadcast %400 : vector<1x512xf32> to vector<16x512xf32>
    %402 = arith.mulf %399, %401 : vector<16x512xf32>
    %403 = arith.truncf %402 : vector<16x512xf32> to vector<16x512xbf16>
    %c1_242 = arith.constant 1 : index
    %c80_243 = arith.constant 80 : index
    %c0_244 = arith.constant 0 : index
    %404 = vector.load %arg13[%c1_242, %c80_243, %c0_244] : memref<2x144x512xbf16, #tpu.memory_space<vmem>>, vector<1x16x512xbf16>
    %405 = vector.shape_cast %404 : vector<1x16x512xbf16> to vector<16x512xbf16>
    %406 = vector.shape_cast %403 : vector<16x512xbf16> to vector<1x16x512xbf16>
    tpu.vector_store %arg13[%c1_242, %c80_243, %c0_244], %406 {strides = array<i32>} : memref<2x144x512xbf16, #tpu.memory_space<vmem>>, vector<1x16x512xbf16>,
    %c505_i32_245 = arith.constant 505 : i32
    %407 = tpu.dynamic_rotate %286 by %c505_i32_245 dim 1 : vector<16x512xf32>, i32 -> vector<16x512xf32>
    %c15_246 = arith.constant 15 : index
    %c0_247 = arith.constant 0 : index
    %408 = vector.load %arg3[%c15_246, %c0_247] : memref<27x512xf32, #tpu.memory_space<vmem>>, vector<1x512xf32>
    %409 = vector.broadcast %408 : vector<1x512xf32> to vector<16x512xf32>
    %410 = arith.mulf %407, %409 : vector<16x512xf32>
    %411 = arith.truncf %410 : vector<16x512xf32> to vector<16x512xbf16>
    %c1_248 = arith.constant 1 : index
    %c96_249 = arith.constant 96 : index
    %c0_250 = arith.constant 0 : index
    %412 = vector.load %arg13[%c1_248, %c96_249, %c0_250] : memref<2x144x512xbf16, #tpu.memory_space<vmem>>, vector<1x16x512xbf16>
    %413 = vector.shape_cast %412 : vector<1x16x512xbf16> to vector<16x512xbf16>
    %414 = vector.shape_cast %411 : vector<16x512xbf16> to vector<1x16x512xbf16>
    tpu.vector_store %arg13[%c1_248, %c96_249, %c0_250], %414 {strides = array<i32>} : memref<2x144x512xbf16, #tpu.memory_space<vmem>>, vector<1x16x512xbf16>,
    %c504_i32_251 = arith.constant 504 : i32
    %415 = tpu.dynamic_rotate %286 by %c504_i32_251 dim 1 : vector<16x512xf32>, i32 -> vector<16x512xf32>
    %c16_252 = arith.constant 16 : index
    %c0_253 = arith.constant 0 : index
    %416 = vector.load %arg3[%c16_252, %c0_253] : memref<27x512xf32, #tpu.memory_space<vmem>>, vector<1x512xf32>
    %417 = vector.broadcast %416 : vector<1x512xf32> to vector<16x512xf32>
    %418 = arith.mulf %415, %417 : vector<16x512xf32>
    %419 = arith.truncf %418 : vector<16x512xf32> to vector<16x512xbf16>
    %c1_254 = arith.constant 1 : index
    %c112_255 = arith.constant 112 : index
    %c0_256 = arith.constant 0 : index
    %420 = vector.load %arg13[%c1_254, %c112_255, %c0_256] : memref<2x144x512xbf16, #tpu.memory_space<vmem>>, vector<1x16x512xbf16>
    %421 = vector.shape_cast %420 : vector<1x16x512xbf16> to vector<16x512xbf16>
    %422 = vector.shape_cast %419 : vector<16x512xbf16> to vector<1x16x512xbf16>
    tpu.vector_store %arg13[%c1_254, %c112_255, %c0_256], %422 {strides = array<i32>} : memref<2x144x512xbf16, #tpu.memory_space<vmem>>, vector<1x16x512xbf16>,
    %c503_i32_257 = arith.constant 503 : i32
    %423 = tpu.dynamic_rotate %286 by %c503_i32_257 dim 1 : vector<16x512xf32>, i32 -> vector<16x512xf32>
    %c17_258 = arith.constant 17 : index
    %c0_259 = arith.constant 0 : index
    %424 = vector.load %arg3[%c17_258, %c0_259] : memref<27x512xf32, #tpu.memory_space<vmem>>, vector<1x512xf32>
    %425 = vector.broadcast %424 : vector<1x512xf32> to vector<16x512xf32>
    %426 = arith.mulf %423, %425 : vector<16x512xf32>
    %427 = arith.truncf %426 : vector<16x512xf32> to vector<16x512xbf16>
    %c1_260 = arith.constant 1 : index
    %c128_261 = arith.constant 128 : index
    %c0_262 = arith.constant 0 : index
    %428 = vector.load %arg13[%c1_260, %c128_261, %c0_262] : memref<2x144x512xbf16, #tpu.memory_space<vmem>>, vector<1x16x512xbf16>
    %429 = vector.shape_cast %428 : vector<1x16x512xbf16> to vector<16x512xbf16>
    %430 = vector.shape_cast %427 : vector<16x512xbf16> to vector<1x16x512xbf16>
    tpu.vector_store %arg13[%c1_260, %c128_261, %c0_262], %430 {strides = array<i32>} : memref<2x144x512xbf16, #tpu.memory_space<vmem>>, vector<1x16x512xbf16>,
    %c0_263 = arith.constant 0 : index
    %c144_264 = arith.constant 144 : index
    %431 = vector.load %arg8[%c0_263, %c144_264] : memref<16x432xbf16, #tpu.memory_space<vmem>>, vector<16x144xbf16>
    %c1_265 = arith.constant 1 : index
    %c0_266 = arith.constant 0 : index
    %c0_267 = arith.constant 0 : index
    %432 = vector.load %arg13[%c1_265, %c0_266, %c0_267] : memref<2x144x512xbf16, #tpu.memory_space<vmem>>, vector<1x144x512xbf16>
    %433 = vector.shape_cast %432 : vector<1x144x512xbf16> to vector<144x512xbf16>
    %cst_268 = arith.constant dense<0.000000e+00> : vector<16x512xf32>
    %434 = tpu.matmul %431, %433, %cst_268 {dimension_numbers = #tpu.dot_dimension_numbers<[1], [0], [0], [1], [0, 0, 1, 1], [], []>} : vector<16x144xbf16>, vector<144x512xbf16>, vector<16x512xf32> -> vector<16x512xf32>
    %435 = arith.addf %362, %434 : vector<16x512xf32>
    %c457_i32_269 = arith.constant 457 : i32
    %436 = tpu.dynamic_rotate %286 by %c457_i32_269 dim 1 : vector<16x512xf32>, i32 -> vector<16x512xf32>
    %c18_270 = arith.constant 18 : index
    %c0_271 = arith.constant 0 : index
    %437 = vector.load %arg3[%c18_270, %c0_271] : memref<27x512xf32, #tpu.memory_space<vmem>>, vector<1x512xf32>
    %438 = vector.broadcast %437 : vector<1x512xf32> to vector<16x512xf32>
    %439 = arith.mulf %436, %438 : vector<16x512xf32>
    %440 = arith.truncf %439 : vector<16x512xf32> to vector<16x512xbf16>
    %c0_272 = arith.constant 0 : index
    %c0_273 = arith.constant 0 : index
    %c0_274 = arith.constant 0 : index
    %441 = vector.load %arg13[%c0_272, %c0_273, %c0_274] : memref<2x144x512xbf16, #tpu.memory_space<vmem>>, vector<1x16x512xbf16>
    %442 = vector.shape_cast %441 : vector<1x16x512xbf16> to vector<16x512xbf16>
    %443 = vector.shape_cast %440 : vector<16x512xbf16> to vector<1x16x512xbf16>
    tpu.vector_store %arg13[%c0_272, %c0_273, %c0_274], %443 {strides = array<i32>} : memref<2x144x512xbf16, #tpu.memory_space<vmem>>, vector<1x16x512xbf16>,
    %c456_i32_275 = arith.constant 456 : i32
    %444 = tpu.dynamic_rotate %286 by %c456_i32_275 dim 1 : vector<16x512xf32>, i32 -> vector<16x512xf32>
    %c19_276 = arith.constant 19 : index
    %c0_277 = arith.constant 0 : index
    %445 = vector.load %arg3[%c19_276, %c0_277] : memref<27x512xf32, #tpu.memory_space<vmem>>, vector<1x512xf32>
    %446 = vector.broadcast %445 : vector<1x512xf32> to vector<16x512xf32>
    %447 = arith.mulf %444, %446 : vector<16x512xf32>
    %448 = arith.truncf %447 : vector<16x512xf32> to vector<16x512xbf16>
    %c0_278 = arith.constant 0 : index
    %c16_279 = arith.constant 16 : index
    %c0_280 = arith.constant 0 : index
    %449 = vector.load %arg13[%c0_278, %c16_279, %c0_280] : memref<2x144x512xbf16, #tpu.memory_space<vmem>>, vector<1x16x512xbf16>
    %450 = vector.shape_cast %449 : vector<1x16x512xbf16> to vector<16x512xbf16>
    %451 = vector.shape_cast %448 : vector<16x512xbf16> to vector<1x16x512xbf16>
    tpu.vector_store %arg13[%c0_278, %c16_279, %c0_280], %451 {strides = array<i32>} : memref<2x144x512xbf16, #tpu.memory_space<vmem>>, vector<1x16x512xbf16>,
    %c455_i32_281 = arith.constant 455 : i32
    %452 = tpu.dynamic_rotate %286 by %c455_i32_281 dim 1 : vector<16x512xf32>, i32 -> vector<16x512xf32>
    %c20_282 = arith.constant 20 : index
    %c0_283 = arith.constant 0 : index
    %453 = vector.load %arg3[%c20_282, %c0_283] : memref<27x512xf32, #tpu.memory_space<vmem>>, vector<1x512xf32>
    %454 = vector.broadcast %453 : vector<1x512xf32> to vector<16x512xf32>
    %455 = arith.mulf %452, %454 : vector<16x512xf32>
    %456 = arith.truncf %455 : vector<16x512xf32> to vector<16x512xbf16>
    %c0_284 = arith.constant 0 : index
    %c32_285 = arith.constant 32 : index
    %c0_286 = arith.constant 0 : index
    %457 = vector.load %arg13[%c0_284, %c32_285, %c0_286] : memref<2x144x512xbf16, #tpu.memory_space<vmem>>, vector<1x16x512xbf16>
    %458 = vector.shape_cast %457 : vector<1x16x512xbf16> to vector<16x512xbf16>
    %459 = vector.shape_cast %456 : vector<16x512xbf16> to vector<1x16x512xbf16>
    tpu.vector_store %arg13[%c0_284, %c32_285, %c0_286], %459 {strides = array<i32>} : memref<2x144x512xbf16, #tpu.memory_space<vmem>>, vector<1x16x512xbf16>,
    %c449_i32_287 = arith.constant 449 : i32
    %460 = tpu.dynamic_rotate %286 by %c449_i32_287 dim 1 : vector<16x512xf32>, i32 -> vector<16x512xf32>
    %c21_288 = arith.constant 21 : index
    %c0_289 = arith.constant 0 : index
    %461 = vector.load %arg3[%c21_288, %c0_289] : memref<27x512xf32, #tpu.memory_space<vmem>>, vector<1x512xf32>
    %462 = vector.broadcast %461 : vector<1x512xf32> to vector<16x512xf32>
    %463 = arith.mulf %460, %462 : vector<16x512xf32>
    %464 = arith.truncf %463 : vector<16x512xf32> to vector<16x512xbf16>
    %c0_290 = arith.constant 0 : index
    %c48_291 = arith.constant 48 : index
    %c0_292 = arith.constant 0 : index
    %465 = vector.load %arg13[%c0_290, %c48_291, %c0_292] : memref<2x144x512xbf16, #tpu.memory_space<vmem>>, vector<1x16x512xbf16>
    %466 = vector.shape_cast %465 : vector<1x16x512xbf16> to vector<16x512xbf16>
    %467 = vector.shape_cast %464 : vector<16x512xbf16> to vector<1x16x512xbf16>
    tpu.vector_store %arg13[%c0_290, %c48_291, %c0_292], %467 {strides = array<i32>} : memref<2x144x512xbf16, #tpu.memory_space<vmem>>, vector<1x16x512xbf16>,
    %c448_i32_293 = arith.constant 448 : i32
    %468 = tpu.dynamic_rotate %286 by %c448_i32_293 dim 1 : vector<16x512xf32>, i32 -> vector<16x512xf32>
    %c22_294 = arith.constant 22 : index
    %c0_295 = arith.constant 0 : index
    %469 = vector.load %arg3[%c22_294, %c0_295] : memref<27x512xf32, #tpu.memory_space<vmem>>, vector<1x512xf32>
    %470 = vector.broadcast %469 : vector<1x512xf32> to vector<16x512xf32>
    %471 = arith.mulf %468, %470 : vector<16x512xf32>
    %472 = arith.truncf %471 : vector<16x512xf32> to vector<16x512xbf16>
    %c0_296 = arith.constant 0 : index
    %c64_297 = arith.constant 64 : index
    %c0_298 = arith.constant 0 : index
    %473 = vector.load %arg13[%c0_296, %c64_297, %c0_298] : memref<2x144x512xbf16, #tpu.memory_space<vmem>>, vector<1x16x512xbf16>
    %474 = vector.shape_cast %473 : vector<1x16x512xbf16> to vector<16x512xbf16>
    %475 = vector.shape_cast %472 : vector<16x512xbf16> to vector<1x16x512xbf16>
    tpu.vector_store %arg13[%c0_296, %c64_297, %c0_298], %475 {strides = array<i32>} : memref<2x144x512xbf16, #tpu.memory_space<vmem>>, vector<1x16x512xbf16>,
    %c447_i32_299 = arith.constant 447 : i32
    %476 = tpu.dynamic_rotate %286 by %c447_i32_299 dim 1 : vector<16x512xf32>, i32 -> vector<16x512xf32>
    %c23_300 = arith.constant 23 : index
    %c0_301 = arith.constant 0 : index
    %477 = vector.load %arg3[%c23_300, %c0_301] : memref<27x512xf32, #tpu.memory_space<vmem>>, vector<1x512xf32>
    %478 = vector.broadcast %477 : vector<1x512xf32> to vector<16x512xf32>
    %479 = arith.mulf %476, %478 : vector<16x512xf32>
    %480 = arith.truncf %479 : vector<16x512xf32> to vector<16x512xbf16>
    %c0_302 = arith.constant 0 : index
    %c80_303 = arith.constant 80 : index
    %c0_304 = arith.constant 0 : index
    %481 = vector.load %arg13[%c0_302, %c80_303, %c0_304] : memref<2x144x512xbf16, #tpu.memory_space<vmem>>, vector<1x16x512xbf16>
    %482 = vector.shape_cast %481 : vector<1x16x512xbf16> to vector<16x512xbf16>
    %483 = vector.shape_cast %480 : vector<16x512xbf16> to vector<1x16x512xbf16>
    tpu.vector_store %arg13[%c0_302, %c80_303, %c0_304], %483 {strides = array<i32>} : memref<2x144x512xbf16, #tpu.memory_space<vmem>>, vector<1x16x512xbf16>,
    %c441_i32_305 = arith.constant 441 : i32
    %484 = tpu.dynamic_rotate %286 by %c441_i32_305 dim 1 : vector<16x512xf32>, i32 -> vector<16x512xf32>
    %c24_306 = arith.constant 24 : index
    %c0_307 = arith.constant 0 : index
    %485 = vector.load %arg3[%c24_306, %c0_307] : memref<27x512xf32, #tpu.memory_space<vmem>>, vector<1x512xf32>
    %486 = vector.broadcast %485 : vector<1x512xf32> to vector<16x512xf32>
    %487 = arith.mulf %484, %486 : vector<16x512xf32>
    %488 = arith.truncf %487 : vector<16x512xf32> to vector<16x512xbf16>
    %c0_308 = arith.constant 0 : index
    %c96_309 = arith.constant 96 : index
    %c0_310 = arith.constant 0 : index
    %489 = vector.load %arg13[%c0_308, %c96_309, %c0_310] : memref<2x144x512xbf16, #tpu.memory_space<vmem>>, vector<1x16x512xbf16>
    %490 = vector.shape_cast %489 : vector<1x16x512xbf16> to vector<16x512xbf16>
    %491 = vector.shape_cast %488 : vector<16x512xbf16> to vector<1x16x512xbf16>
    tpu.vector_store %arg13[%c0_308, %c96_309, %c0_310], %491 {strides = array<i32>} : memref<2x144x512xbf16, #tpu.memory_space<vmem>>, vector<1x16x512xbf16>,
    %c440_i32_311 = arith.constant 440 : i32
    %492 = tpu.dynamic_rotate %286 by %c440_i32_311 dim 1 : vector<16x512xf32>, i32 -> vector<16x512xf32>
    %c25_312 = arith.constant 25 : index
    %c0_313 = arith.constant 0 : index
    %493 = vector.load %arg3[%c25_312, %c0_313] : memref<27x512xf32, #tpu.memory_space<vmem>>, vector<1x512xf32>
    %494 = vector.broadcast %493 : vector<1x512xf32> to vector<16x512xf32>
    %495 = arith.mulf %492, %494 : vector<16x512xf32>
    %496 = arith.truncf %495 : vector<16x512xf32> to vector<16x512xbf16>
    %c0_314 = arith.constant 0 : index
    %c112_315 = arith.constant 112 : index
    %c0_316 = arith.constant 0 : index
    %497 = vector.load %arg13[%c0_314, %c112_315, %c0_316] : memref<2x144x512xbf16, #tpu.memory_space<vmem>>, vector<1x16x512xbf16>
    %498 = vector.shape_cast %497 : vector<1x16x512xbf16> to vector<16x512xbf16>
    %499 = vector.shape_cast %496 : vector<16x512xbf16> to vector<1x16x512xbf16>
    tpu.vector_store %arg13[%c0_314, %c112_315, %c0_316], %499 {strides = array<i32>} : memref<2x144x512xbf16, #tpu.memory_space<vmem>>, vector<1x16x512xbf16>,
    %c439_i32_317 = arith.constant 439 : i32
    %500 = tpu.dynamic_rotate %286 by %c439_i32_317 dim 1 : vector<16x512xf32>, i32 -> vector<16x512xf32>
    %c26_318 = arith.constant 26 : index
    %c0_319 = arith.constant 0 : index
    %501 = vector.load %arg3[%c26_318, %c0_319] : memref<27x512xf32, #tpu.memory_space<vmem>>, vector<1x512xf32>
    %502 = vector.broadcast %501 : vector<1x512xf32> to vector<16x512xf32>
    %503 = arith.mulf %500, %502 : vector<16x512xf32>
    %504 = arith.truncf %503 : vector<16x512xf32> to vector<16x512xbf16>
    %c0_320 = arith.constant 0 : index
    %c128_321 = arith.constant 128 : index
    %c0_322 = arith.constant 0 : index
    %505 = vector.load %arg13[%c0_320, %c128_321, %c0_322] : memref<2x144x512xbf16, #tpu.memory_space<vmem>>, vector<1x16x512xbf16>
    %506 = vector.shape_cast %505 : vector<1x16x512xbf16> to vector<16x512xbf16>
    %507 = vector.shape_cast %504 : vector<16x512xbf16> to vector<1x16x512xbf16>
    tpu.vector_store %arg13[%c0_320, %c128_321, %c0_322], %507 {strides = array<i32>} : memref<2x144x512xbf16, #tpu.memory_space<vmem>>, vector<1x16x512xbf16>,
    %c0_323 = arith.constant 0 : index
    %c288_324 = arith.constant 288 : index
    %508 = vector.load %arg8[%c0_323, %c288_324] : memref<16x432xbf16, #tpu.memory_space<vmem>>, vector<16x144xbf16>
    %c0_325 = arith.constant 0 : index
    %c0_326 = arith.constant 0 : index
    %c0_327 = arith.constant 0 : index
    %509 = vector.load %arg13[%c0_325, %c0_326, %c0_327] : memref<2x144x512xbf16, #tpu.memory_space<vmem>>, vector<1x144x512xbf16>
    %510 = vector.shape_cast %509 : vector<1x144x512xbf16> to vector<144x512xbf16>
    %cst_328 = arith.constant dense<0.000000e+00> : vector<16x512xf32>
    %511 = tpu.matmul %508, %510, %cst_328 {dimension_numbers = #tpu.dot_dimension_numbers<[1], [0], [0], [1], [0, 0, 1, 1], [], []>} : vector<16x144xbf16>, vector<144x512xbf16>, vector<16x512xf32> -> vector<16x512xf32>
    %512 = arith.addf %435, %511 : vector<16x512xf32>
    %c0_329 = arith.constant 0 : index
    %c0_330 = arith.constant 0 : index
    %513 = vector.load %arg9[%c0_329, %c0_330] : memref<16x1xf32, #tpu.memory_space<vmem>>, vector<16x1xf32>
    %514 = vector.broadcast %513 : vector<16x1xf32> to vector<16x512xf32>
    %515 = arith.addf %512, %514 : vector<16x512xf32>
    %516 = arith.addf %515, %1 : vector<16x512xf32>
    %c0_331 = arith.constant 0 : index
    %c0_332 = arith.constant 0 : index
    %c0_333 = arith.constant 0 : index
    %517 = vector.load %arg12[%c0_331, %c0_332, %c0_333] : memref<1x16x512xf32, #tpu.memory_space<vmem>>, vector<1x16x512xf32>
    %518 = vector.shape_cast %517 : vector<1x16x512xf32> to vector<16x512xf32>
    %519 = vector.shape_cast %516 : vector<16x512xf32> to vector<1x16x512xf32>
    tpu.vector_store %arg12[%c0_331, %c0_332, %c0_333], %519 {strides = array<i32>} : memref<1x16x512xf32, #tpu.memory_space<vmem>>, vector<1x16x512xf32>,
    return
  }
  func.func @transform_0(%arg0: i32) -> (i32, i32, i32) {
    %c0_i32 = arith.constant 0 : i32
    %c0_i32_0 = arith.constant 0 : i32
    %c0_i32_1 = arith.constant 0 : i32
    return %arg0, %c0_i32, %c0_i32_0 : i32, i32, i32
  }
  func.func @transform_1(%arg0: i32) -> (i32, i32) {
    %c0_i32 = arith.constant 0 : i32
    %c0_i32_0 = arith.constant 0 : i32
    %c0_i32_1 = arith.constant 0 : i32
    return %c0_i32, %c0_i32_0 : i32, i32
  }
  func.func @transform_2(%arg0: i32) -> (i32, i32) {
    %c0_i32 = arith.constant 0 : i32
    %c0_i32_0 = arith.constant 0 : i32
    %c0_i32_1 = arith.constant 0 : i32
    return %c0_i32, %c0_i32_0 : i32, i32
  }
  func.func @transform_3(%arg0: i32) -> (i32, i32) {
    %c0_i32 = arith.constant 0 : i32
    %c0_i32_0 = arith.constant 0 : i32
    %c0_i32_1 = arith.constant 0 : i32
    return %c0_i32, %c0_i32_0 : i32, i32
  }
  func.func @transform_4(%arg0: i32) -> (i32, i32) {
    %c0_i32 = arith.constant 0 : i32
    %c0_i32_0 = arith.constant 0 : i32
    %c0_i32_1 = arith.constant 0 : i32
    return %c0_i32, %c0_i32_0 : i32, i32
  }
  func.func @transform_5(%arg0: i32) -> (i32, i32) {
    %c0_i32 = arith.constant 0 : i32
    %c0_i32_0 = arith.constant 0 : i32
    %c0_i32_1 = arith.constant 0 : i32
    return %c0_i32, %c0_i32_0 : i32, i32
  }
  func.func @transform_6(%arg0: i32) -> (i32, i32) {
    %c0_i32 = arith.constant 0 : i32
    %c0_i32_0 = arith.constant 0 : i32
    %c0_i32_1 = arith.constant 0 : i32
    return %c0_i32, %c0_i32_0 : i32, i32
  }
  func.func @transform_7(%arg0: i32) -> (i32, i32) {
    %c0_i32 = arith.constant 0 : i32
    %c0_i32_0 = arith.constant 0 : i32
    %c0_i32_1 = arith.constant 0 : i32
    return %c0_i32, %c0_i32_0 : i32, i32
  }
  func.func @transform_8(%arg0: i32) -> (i32, i32) {
    %c0_i32 = arith.constant 0 : i32
    %c0_i32_0 = arith.constant 0 : i32
    %c0_i32_1 = arith.constant 0 : i32
    return %c0_i32, %c0_i32_0 : i32, i32
  }
  func.func @transform_9(%arg0: i32) -> (i32, i32) {
    %c0_i32 = arith.constant 0 : i32
    %c0_i32_0 = arith.constant 0 : i32
    %c0_i32_1 = arith.constant 0 : i32
    return %c0_i32, %c0_i32_0 : i32, i32
  }
  func.func @transform_10(%arg0: i32) -> (i32, i32) {
    %c0_i32 = arith.constant 0 : i32
    %c0_i32_0 = arith.constant 0 : i32
    %c0_i32_1 = arith.constant 0 : i32
    return %c0_i32, %c0_i32_0 : i32, i32
  }
  func.func @transform_11(%arg0: i32) -> (i32, i32, i32) {
    %c0_i32 = arith.constant 0 : i32
    %c0_i32_0 = arith.constant 0 : i32
    %c0_i32_1 = arith.constant 0 : i32
    return %arg0, %c0_i32, %c0_i32_0 : i32, i32, i32
  }
}

</mosaic_0001>

<llo_original>
// kernel: tpu_custom_call.1
$region0: #{tpu_custom_call.1}
  #allocation0 [shape = 'u32[]', space=smem, size = 0x4, offset = 0x4, fixed_abs, tag = 'smem constant byte address 0x4 - core index']
  #allocation1 [shape = 'u32[72,128]{1,0:T(1,128)}', space=vmem, size = 0x9000, scoped, tag = 'internal scratch']
  #allocation2 [shape = 'bf16[2,144,512]{2,1,0:T(8,128)(2,1)}', space=vmem, size = 0x48000, scoped, tag = 'scratch operand']
  %s0 = inlined_call_operand.hbm [shape: f32[2,16,512], index: 0, kind: input, shape index: {}]
  %s1 = inlined_call_operand.vmem [shape: f32[16,16], index: 1, kind: input, shape index: {}]
  %s2 = inlined_call_operand.hbm [shape: f32[27,512], index: 2, kind: input, shape index: {}]
  %s3 = inlined_call_operand.vmem [shape: bf16[16,432], index: 3, kind: input, shape index: {}]
  %s4 = inlined_call_operand.vmem [shape: f32[16,1], index: 4, kind: input, shape index: {}]
  %s5 = inlined_call_operand.vmem [shape: f32[16,1], index: 5, kind: input, shape index: {}]
  %s6 = inlined_call_operand.vmem [shape: f32[16,1], index: 6, kind: input, shape index: {}]
  %s7 = inlined_call_operand.vmem [shape: bf16[16,432], index: 7, kind: input, shape index: {}]
  %s8 = inlined_call_operand.vmem [shape: f32[16,1], index: 8, kind: input, shape index: {}]
  %s9 = inlined_call_operand.vmem [shape: f32[16,1], index: 9, kind: input, shape index: {}]
  %s10 = inlined_call_operand.vmem [shape: f32[16,1], index: 10, kind: input, shape index: {}]
  %s11 = inlined_call_operand.hbm [shape: f32[2,16,512], index: 11, kind: output, shape index: {}]
  %s12 = sld [smem:[#allocation0]]
  $region85: #{tpu_custom_call.1} parent=0
    _
  %s14 = ssub.s32 1, %s12
  %s15 = scalar_select 0, %s14, %s12
  $region1: #{tpu_custom_call.1} parent=0
    #allocation3 [shape = 'u8[65536]{0}', space=vmem, size = 0x10000, scoped, tag = 'input window, operand 0']
    #allocation4 [shape = 's32[2]{0}', space=sflag, size = 0x8, scoped, tag = 'scoped memory for tpu_custom_call.1']
    #allocation5 [shape = 's32[2]{0}', space=sflag, size = 0x8, scoped, tag = 'scoped memory for tpu_custom_call.1']
    #allocation6 [shape = 'u8[65536]{0}', space=vmem, size = 0x10000, scoped, tag = 'input window, operand 2, single buffered']
    #allocation7 [shape = 's32[1]{0}', space=sflag, size = 0x4, scoped, tag = 'scoped memory for tpu_custom_call.1']
    #allocation8 [shape = 'u8[65536]{0}', space=vmem, size = 0x10000, scoped, tag = 'output window, operand 0']
    %16 = vsyncpa [#allocation4], 0
    %s17 = scalar_lea.sflag [#allocation4], 1
    %18 = vsyncpa %s17, 0
    %19 = vsyncpa [#allocation7], 0
    %20 = vsyncpa [#allocation5], 0
    %s21 = scalar_lea.sflag [#allocation5], 1
    %22 = vsyncpa %s21, 0
    loop: start=0, step=1, limit=4
    $region2: #{tpu_custom_call.1} parent=1 // loop_pre_header
      _
    $region3: #{tpu_custom_call.1} parent=1 // loop_header
      %s24 = sphi 0, %s28
      %p25 = scmp.ge.s32.totalorder %s24, 4
      %s34 = sphi 0, %s36
      %s37 = sphi 0, %s34
      %s38 = sphi 0, %s37
      %s54 = sphi 0, %s38
      %s58 = sphi 0, %s58
      %s60 = sphi 0, %s58
      %s61 = sphi 0, %s60
      %s75 = sphi 0, %s61
      %s79 = sphi 0, %s79
      %s81 = sphi 0, %s79
      %s82 = sphi 0, %s81
      %s96 = sphi 0, %s82
      %s100 = sphi 0, %s100
      %s102 = sphi 0, %s100
      %s103 = sphi 0, %s102
      %s117 = sphi 0, %s103
      %s121 = sphi 0, %s121
      %s123 = sphi 0, %s121
      %s124 = sphi 0, %s123
      %s138 = sphi 0, %s124
      %s142 = sphi 0, %s142
      %s144 = sphi 0, %s142
      %s145 = sphi 0, %s144
      %s159 = sphi 0, %s145
      %s163 = sphi 0, %s163
      %s165 = sphi 0, %s163
      %s166 = sphi 0, %s165
      %s180 = sphi 0, %s166
      %s184 = sphi 0, %s184
      %s186 = sphi 0, %s184
      %s187 = sphi 0, %s186
      %s201 = sphi 0, %s187
      %s205 = sphi 0, %s205
      %s207 = sphi 0, %s205
      %s208 = sphi 0, %s207
      %s222 = sphi 0, %s208
      %s226 = sphi 0, %s226
      %s228 = sphi 0, %s226
      %s229 = sphi 0, %s228
      %s243 = sphi 0, %s229
      %s247 = sphi 0, %s247
      %s249 = sphi 0, %s247
      %s250 = sphi 0, %s249
      %s264 = sphi 0, %s250
      %s270 = sphi 0, %s272
      %s273 = sphi 0, %s270
      %s274 = sphi 0, %s273
      %s290 = sphi 0, %s274
    $region4: #{tpu_custom_call.1} parent=1 // loop_header_branch
      %27 = sbr.rel (%p25) target = $region8
    $region5: #{tpu_custom_call.1} parent=1 // loop_body
      %s29 = ssub.s32 %s24, 1
      %s30 = ssub.s32 %s24, 2
      %s31 = sadd.s32 %s24, 1
      %s32 = ssub.s32 %s24, %s31
      %p33 = scmp.eq.s32.totalorder %s32, 0
      %s35 = sadd.s32 %s34, 1
      %s36 = scalar_select %p33, %s34, %s35
      %p39 = pneg %p33
      %p40 = scmp.eq.s32.totalorder %s24, 1
      %p41 = por %p39, %p40
      %p42 = scmp.ne.s32.totalorder %s34, %s37
      %p43 = scmp.eq.s32.totalorder %s24, 0
      %p44 = por %p42, %p43
      %p45 = scmp.ne.s32.totalorder %s34, %s37
      %p46 = scmp.eq.s32.totalorder %s29, 1
      %p47 = por %p45, %p46
      %p48 = scmp.ne.s32.totalorder %s37, %s38
      %p49 = scmp.eq.s32.totalorder %s29, 0
      %p50 = por %p48, %p49
      %p51 = scmp.ne.s32.totalorder %s37, %s38
      %p52 = scmp.eq.s32.totalorder %s30, 1
      %p53 = por %p51, %p52
      %p55 = scmp.ne.s32.totalorder %s38, %s54
      %p56 = scmp.eq.s32.totalorder %s30, 0
      %p57 = por %p55, %p56
      %s59 = sadd.s32 %s58, 1
      %p62 = scmp.eq.s32.totalorder %s24, 1
      %p63 = scmp.ne.s32.totalorder %s58, %s60
      %p64 = scmp.eq.s32.totalorder %s24, 0
      %p65 = por %p63, %p64
      %p66 = scmp.ne.s32.totalorder %s58, %s60
      %p67 = scmp.eq.s32.totalorder %s29, 1
      %p68 = por %p66, %p67
      %p69 = scmp.ne.s32.totalorder %s60, %s61
      %p70 = scmp.eq.s32.totalorder %s29, 0
      %p71 = por %p69, %p70
      %p72 = scmp.ne.s32.totalorder %s60, %s61
      %p73 = scmp.eq.s32.totalorder %s30, 1
      %p74 = por %p72, %p73
      %p76 = scmp.ne.s32.totalorder %s61, %s75
      %p77 = scmp.eq.s32.totalorder %s30, 0
      %p78 = por %p76, %p77
      %s80 = sadd.s32 %s79, 1
      %p83 = scmp.eq.s32.totalorder %s24, 1
      %p84 = scmp.ne.s32.totalorder %s79, %s81
      %p85 = scmp.eq.s32.totalorder %s24, 0
      %p86 = por %p84, %p85
      %p87 = scmp.ne.s32.totalorder %s79, %s81
      %p88 = scmp.eq.s32.totalorder %s29, 1
      %p89 = por %p87, %p88
      %p90 = scmp.ne.s32.totalorder %s81, %s82
      %p91 = scmp.eq.s32.totalorder %s29, 0
      %p92 = por %p90, %p91
      %p93 = scmp.ne.s32.totalorder %s81, %s82
      %p94 = scmp.eq.s32.totalorder %s30, 1
      %p95 = por %p93, %p94
      %p97 = scmp.ne.s32.totalorder %s82, %s96
      %p98 = scmp.eq.s32.totalorder %s30, 0
      %p99 = por %p97, %p98
      %s101 = sadd.s32 %s100, 1
      %p104 = scmp.eq.s32.totalorder %s24, 1
      %p105 = scmp.ne.s32.totalorder %s100, %s102
      %p106 = scmp.eq.s32.totalorder %s24, 0
      %p107 = por %p105, %p106
      %p108 = scmp.ne.s32.totalorder %s100, %s102
      %p109 = scmp.eq.s32.totalorder %s29, 1
      %p110 = por %p108, %p109
      %p111 = scmp.ne.s32.totalorder %s102, %s103
      %p112 = scmp.eq.s32.totalorder %s29, 0
      %p113 = por %p111, %p112
      %p114 = scmp.ne.s32.totalorder %s102, %s103
      %p115 = scmp.eq.s32.totalorder %s30, 1
      %p116 = por %p114, %p115
      %p118 = scmp.ne.s32.totalorder %s103, %s117
      %p119 = scmp.eq.s32.totalorder %s30, 0
      %p120 = por %p118, %p119
      %s122 = sadd.s32 %s121, 1
      %p125 = scmp.eq.s32.totalorder %s24, 1
      %p126 = scmp.ne.s32.totalorder %s121, %s123
      %p127 = scmp.eq.s32.totalorder %s24, 0
      %p128 = por %p126, %p127
      %p129 = scmp.ne.s32.totalorder %s121, %s123
      %p130 = scmp.eq.s32.totalorder %s29, 1
      %p131 = por %p129, %p130
      %p132 = scmp.ne.s32.totalorder %s123, %s124
      %p133 = scmp.eq.s32.totalorder %s29, 0
      %p134 = por %p132, %p133
      %p135 = scmp.ne.s32.totalorder %s123, %s124
      %p136 = scmp.eq.s32.totalorder %s30, 1
      %p137 = por %p135, %p136
      %p139 = scmp.ne.s32.totalorder %s124, %s138
      %p140 = scmp.eq.s32.totalorder %s30, 0
      %p141 = por %p139, %p140
      %s143 = sadd.s32 %s142, 1
      %p146 = scmp.eq.s32.totalorder %s24, 1
      %p147 = scmp.ne.s32.totalorder %s142, %s144
      %p148 = scmp.eq.s32.totalorder %s24, 0
      %p149 = por %p147, %p148
      %p150 = scmp.ne.s32.totalorder %s142, %s144
      %p151 = scmp.eq.s32.totalorder %s29, 1
      %p152 = por %p150, %p151
      %p153 = scmp.ne.s32.totalorder %s144, %s145
      %p154 = scmp.eq.s32.totalorder %s29, 0
      %p155 = por %p153, %p154
      %p156 = scmp.ne.s32.totalorder %s144, %s145
      %p157 = scmp.eq.s32.totalorder %s30, 1
      %p158 = por %p156, %p157
      %p160 = scmp.ne.s32.totalorder %s145, %s159
      %p161 = scmp.eq.s32.totalorder %s30, 0
      %p162 = por %p160, %p161
      %s164 = sadd.s32 %s163, 1
      %p167 = scmp.eq.s32.totalorder %s24, 1
      %p168 = scmp.ne.s32.totalorder %s163, %s165
      %p169 = scmp.eq.s32.totalorder %s24, 0
      %p170 = por %p168, %p169
      %p171 = scmp.ne.s32.totalorder %s163, %s165
      %p172 = scmp.eq.s32.totalorder %s29, 1
      %p173 = por %p171, %p172
      %p174 = scmp.ne.s32.totalorder %s165, %s166
      %p175 = scmp.eq.s32.totalorder %s29, 0
      %p176 = por %p174, %p175
      %p177 = scmp.ne.s32.totalorder %s165, %s166
      %p178 = scmp.eq.s32.totalorder %s30, 1
      %p179 = por %p177, %p178
      %p181 = scmp.ne.s32.totalorder %s166, %s180
      %p182 = scmp.eq.s32.totalorder %s30, 0
      %p183 = por %p181, %p182
      %s185 = sadd.s32 %s184, 1
      %p188 = scmp.eq.s32.totalorder %s24, 1
      %p189 = scmp.ne.s32.totalorder %s184, %s186
      %p190 = scmp.eq.s32.totalorder %s24, 0
      %p191 = por %p189, %p190
      %p192 = scmp.ne.s32.totalorder %s184, %s186
      %p193 = scmp.eq.s32.totalorder %s29, 1
      %p194 = por %p192, %p193
      %p195 = scmp.ne.s32.totalorder %s186, %s187
      %p196 = scmp.eq.s32.totalorder %s29, 0
      %p197 = por %p195, %p196
      %p198 = scmp.ne.s32.totalorder %s186, %s187
      %p199 = scmp.eq.s32.totalorder %s30, 1
      %p200 = por %p198, %p199
      %p202 = scmp.ne.s32.totalorder %s187, %s201
      %p203 = scmp.eq.s32.totalorder %s30, 0
      %p204 = por %p202, %p203
      %s206 = sadd.s32 %s205, 1
      %p209 = scmp.eq.s32.totalorder %s24, 1
      %p210 = scmp.ne.s32.totalorder %s205, %s207
      %p211 = scmp.eq.s32.totalorder %s24, 0
      %p212 = por %p210, %p211
      %p213 = scmp.ne.s32.totalorder %s205, %s207
      %p214 = scmp.eq.s32.totalorder %s29, 1
      %p215 = por %p213, %p214
      %p216 = scmp.ne.s32.totalorder %s207, %s208
      %p217 = scmp.eq.s32.totalorder %s29, 0
      %p218 = por %p216, %p217
      %p219 = scmp.ne.s32.totalorder %s207, %s208
      %p220 = scmp.eq.s32.totalorder %s30, 1
      %p221 = por %p219, %p220
      %p223 = scmp.ne.s32.totalorder %s208, %s222
      %p224 = scmp.eq.s32.totalorder %s30, 0
      %p225 = por %p223, %p224
      %s227 = sadd.s32 %s226, 1
      %p230 = scmp.eq.s32.totalorder %s24, 1
      %p231 = scmp.ne.s32.totalorder %s226, %s228
      %p232 = scmp.eq.s32.totalorder %s24, 0
      %p233 = por %p231, %p232
      %p234 = scmp.ne.s32.totalorder %s226, %s228
      %p235 = scmp.eq.s32.totalorder %s29, 1
      %p236 = por %p234, %p235
      %p237 = scmp.ne.s32.totalorder %s228, %s229
      %p238 = scmp.eq.s32.totalorder %s29, 0
      %p239 = por %p237, %p238
      %p240 = scmp.ne.s32.totalorder %s228, %s229
      %p241 = scmp.eq.s32.totalorder %s30, 1
      %p242 = por %p240, %p241
      %p244 = scmp.ne.s32.totalorder %s229, %s243
      %p245 = scmp.eq.s32.totalorder %s30, 0
      %p246 = por %p244, %p245
      %s248 = sadd.s32 %s247, 1
      %p251 = scmp.eq.s32.totalorder %s24, 1
      %p252 = scmp.ne.s32.totalorder %s247, %s249
      %p253 = scmp.eq.s32.totalorder %s24, 0
      %p254 = por %p252, %p253
      %p255 = scmp.ne.s32.totalorder %s247, %s249
      %p256 = scmp.eq.s32.totalorder %s29, 1
      %p257 = por %p255, %p256
      %p258 = scmp.ne.s32.totalorder %s249, %s250
      %p259 = scmp.eq.s32.totalorder %s29, 0
      %p260 = por %p258, %p259
      %p261 = scmp.ne.s32.totalorder %s249, %s250
      %p262 = scmp.eq.s32.totalorder %s30, 1
      %p263 = por %p261, %p262
      %p265 = scmp.ne.s32.totalorder %s250, %s264
      %p266 = scmp.eq.s32.totalorder %s30, 0
      %p267 = por %p265, %p266
      %s268 = ssub.s32 %s24, %s31
      %p269 = scmp.eq.s32.totalorder %s268, 0
      %s271 = sadd.s32 %s270, 1
      %s272 = scalar_select %p269, %s270, %s271
      %p275 = pneg %p269
      %p276 = scmp.eq.s32.totalorder %s24, 1
      %p277 = por %p275, %p276
      %p278 = scmp.ne.s32.totalorder %s270, %s273
      %p279 = scmp.eq.s32.totalorder %s24, 0
      %p280 = por %p278, %p279
      %p281 = scmp.ne.s32.totalorder %s270, %s273
      %p282 = scmp.eq.s32.totalorder %s29, 1
      %p283 = por %p281, %p282
      %p284 = scmp.ne.s32.totalorder %s273, %s274
      %p285 = scmp.eq.s32.totalorder %s29, 0
      %p286 = por %p284, %p285
      %p287 = scmp.ne.s32.totalorder %s273, %s274
      %p288 = scmp.eq.s32.totalorder %s30, 1
      %p289 = por %p287, %p288
      %p291 = scmp.ne.s32.totalorder %s274, %s290
      %p292 = scmp.eq.s32.totalorder %s30, 0
      %p293 = por %p291, %p292
      %p294 = scmp.le.s32.totalorder 1, %s24
      %p295 = scmp.lt.s32.totalorder %s24, 3
      %p296 = pnand %p294, %p295
      %p297 = pneg %p296
      // Predicated region
      $region9: #{tpu_custom_call.1} parent=5 // pred_check
        _
      $region10: #{tpu_custom_call.1} parent=5 // pred_check_branch
        %299 = sbr.rel (%p296) target = $region12
      $region11: #{tpu_custom_call.1} parent=5 // pred_region
        %s300 = ssub.s32 %s24, 1
        // Predicated region
        $region13: #{tpu_custom_call.1} parent=11 // pred_check
          %p301 = pneg %p71
        $region14: #{tpu_custom_call.1} parent=11 // pred_check_branch
          %303 = sbr.rel (%p301) target = $region16
        $region15: #{tpu_custom_call.1} parent=11 // pred_region
          _
        $region16: #{tpu_custom_call.1} parent=11 // pred_fallthru
          _
        // Predicated region
        $region17: #{tpu_custom_call.1} parent=11 // pred_check
          %p304 = pneg %p92
        $region18: #{tpu_custom_call.1} parent=11 // pred_check_branch
          %306 = sbr.rel (%p304) target = $region20
        $region19: #{tpu_custom_call.1} parent=11 // pred_region
          %308 = vsyncadd [#allocation7], 0
          %s309 = sshll.u32 %s2, 4
          %s310 = int_to_ptr.hbm [resolvable:$true] %s309
          %s311 = sshll.u32 [#allocation6], 4
          %s312 = int_to_ptr.vmem [resolvable:$true] %s311
          %317 = dma.hbm_to_vmem [thread:$0]  %s310, 2048, %s312, [#allocation7], 512, 512, 32
        $region20: #{tpu_custom_call.1} parent=11 // pred_fallthru
          _
        // Predicated region
        $region21: #{tpu_custom_call.1} parent=11 // pred_check
          %p318 = pneg %p113
        $region22: #{tpu_custom_call.1} parent=11 // pred_check_branch
          %320 = sbr.rel (%p318) target = $region24
        $region23: #{tpu_custom_call.1} parent=11 // pred_region
          _
        $region24: #{tpu_custom_call.1} parent=11 // pred_fallthru
          _
        // Predicated region
        $region25: #{tpu_custom_call.1} parent=11 // pred_check
          %p321 = pneg %p134
        $region26: #{tpu_custom_call.1} parent=11 // pred_check_branch
          %323 = sbr.rel (%p321) target = $region28
        $region27: #{tpu_custom_call.1} parent=11 // pred_region
          _
        $region28: #{tpu_custom_call.1} parent=11 // pred_fallthru
          _
        // Predicated region
        $region29: #{tpu_custom_call.1} parent=11 // pred_check
          %p324 = pneg %p155
        $region30: #{tpu_custom_call.1} parent=11 // pred_check_branch
          %326 = sbr.rel (%p324) target = $region32
        $region31: #{tpu_custom_call.1} parent=11 // pred_region
          _
        $region32: #{tpu_custom_call.1} parent=11 // pred_fallthru
          _
        // Predicated region
        $region33: #{tpu_custom_call.1} parent=11 // pred_check
          %p327 = pneg %p176
        $region34: #{tpu_custom_call.1} parent=11 // pred_check_branch
          %329 = sbr.rel (%p327) target = $region36
        $region35: #{tpu_custom_call.1} parent=11 // pred_region
          _
        $region36: #{tpu_custom_call.1} parent=11 // pred_fallthru
          _
        // Predicated region
        $region37: #{tpu_custom_call.1} parent=11 // pred_check
          %p330 = pneg %p197
        $region38: #{tpu_custom_call.1} parent=11 // pred_check_branch
          %332 = sbr.rel (%p330) target = $region40
        $region39: #{tpu_custom_call.1} parent=11 // pred_region
          _
        $region40: #{tpu_custom_call.1} parent=11 // pred_fallthru
          _
        // Predicated region
        $region41: #{tpu_custom_call.1} parent=11 // pred_check
          %p333 = pneg %p218
        $region42: #{tpu_custom_call.1} parent=11 // pred_check_branch
          %335 = sbr.rel (%p333) target = $region44
        $region43: #{tpu_custom_call.1} parent=11 // pred_region
          _
        $region44: #{tpu_custom_call.1} parent=11 // pred_fallthru
          _
        // Predicated region
        $region45: #{tpu_custom_call.1} parent=11 // pred_check
          %p336 = pneg %p239
        $region46: #{tpu_custom_call.1} parent=11 // pred_check_branch
          %338 = sbr.rel (%p336) target = $region48
        $region47: #{tpu_custom_call.1} parent=11 // pred_region
          _
        $region48: #{tpu_custom_call.1} parent=11 // pred_fallthru
          _
        // Predicated region
        $region49: #{tpu_custom_call.1} parent=11 // pred_check
          %p339 = pneg %p260
        $region50: #{tpu_custom_call.1} parent=11 // pred_check_branch
          %341 = sbr.rel (%p339) target = $region52
        $region51: #{tpu_custom_call.1} parent=11 // pred_region
          _
        $region52: #{tpu_custom_call.1} parent=11 // pred_fallthru
          _
      $region12: #{tpu_custom_call.1} parent=5 // pred_fallthru
        _
      %p342 = scmp.lt.s32.totalorder %s24, 2
      // Predicated region
      $region53: #{tpu_custom_call.1} parent=5 // pred_check
        %p343 = pneg %p342
      $region54: #{tpu_custom_call.1} parent=5 // pred_check_branch
        %345 = sbr.rel (%p343) target = $region56
      $region55: #{tpu_custom_call.1} parent=5 // pred_region
        // Predicated region
        $region57: #{tpu_custom_call.1} parent=55 // pred_check
          %p346 = pneg %p44
        $region58: #{tpu_custom_call.1} parent=55 // pred_check_branch
          %348 = sbr.rel (%p346) target = $region60
        $region59: #{tpu_custom_call.1} parent=55 // pred_region
          %s349 = sand.u32 %s34, 1
          %s350 = scalar_lea.sflag [#allocation4], %s349
          %s351 = sand.u32 %s34, 1
          %s352 = smul.addr %s351, 64
          %s353 = scalar_lea.vmem [#allocation3], %s352
          %355 = vsyncadd %s350, 0
          %s356 = smul.addr %s24, 8
          %s357 = smul.addr %s356, 8
          %s358 = scalar_lea.hbm %s0, %s357
          %s359 = sshll.u32 %s358, 4
          %s360 = int_to_ptr.hbm [resolvable:$true] %s359
          %s361 = sshll.u32 %s353, 4
          %s362 = int_to_ptr.vmem [resolvable:$true] %s361
          %367 = dma.hbm_to_vmem [thread:$0]  %s360, 1024, %s362, %s350, 512, 512, 32
        $region60: #{tpu_custom_call.1} parent=55 // pred_fallthru
          _
      $region56: #{tpu_custom_call.1} parent=5 // pred_fallthru
        _
      %p368 = scmp.le.s32.totalorder 1, %s24
      %p369 = scmp.lt.s32.totalorder %s24, 3
      %p370 = pnand %p368, %p369
      %p371 = pneg %p370
      // Predicated region
      $region61: #{tpu_custom_call.1} parent=5 // pred_check
        _
      $region62: #{tpu_custom_call.1} parent=5 // pred_check_branch
        %373 = sbr.rel (%p370) target = $region64
      $region63: #{tpu_custom_call.1} parent=5 // pred_region
        %s374 = ssub.s32 %s24, 1
        %s375 = sand.u32 %s37, 1
        %s376 = scalar_lea.sflag [#allocation4], %s375
        %s377 = sand.u32 %s37, 1
        %s378 = smul.addr %s377, 64
        %s379 = scalar_lea.vmem [#allocation3], %s378
        // Predicated region
        $region65: #{tpu_custom_call.1} parent=63 // pred_check
          %p380 = pneg %p50
        $region66: #{tpu_custom_call.1} parent=63 // pred_check_branch
          %382 = sbr.rel (%p380) target = $region68
        $region67: #{tpu_custom_call.1} parent=63 // pred_region
          %384 = dma.done %s376, 1024
        $region68: #{tpu_custom_call.1} parent=63 // pred_fallthru
          _
        // Predicated region
        $region69: #{tpu_custom_call.1} parent=63 // pred_check
          %p385 = pneg %p92
        $region70: #{tpu_custom_call.1} parent=63 // pred_check_branch
          %387 = sbr.rel (%p385) target = $region72
        $region71: #{tpu_custom_call.1} parent=63 // pred_region
          %389 = dma.done [#allocation7], 2048
        $region72: #{tpu_custom_call.1} parent=63 // pred_fallthru
          _
        %s390 = sand.u32 %s37, 1
        %s391 = scalar_lea.sflag [#allocation4], %s390
        %s392 = sand.u32 %s37, 1
        %s393 = smul.addr %s392, 64
        %s394 = scalar_lea.vmem [#allocation3], %s393
        %p395 = pneg %p50
        %p396 = pneg %p47
        %p397 = pneg %p71
        %p398 = pneg %p68
        %p399 = pneg %p92
        %p400 = pneg %p89
        %p401 = pneg %p113
        %p402 = pneg %p110
        %p403 = pneg %p134
        %p404 = pneg %p131
        %p405 = pneg %p155
        %p406 = pneg %p152
        %p407 = pneg %p176
        %p408 = pneg %p173
        %p409 = pneg %p197
        %p410 = pneg %p194
        %p411 = pneg %p218
        %p412 = pneg %p215
        %p413 = pneg %p239
        %p414 = pneg %p236
        %p415 = pneg %p260
        %p416 = pneg %p257
        %p417 = pneg %p286
        %p418 = pneg %p283
        %s419 = sand.u32 %s273, 1
        %s420 = scalar_lea.sflag [#allocation5], %s419
        %s421 = sand.u32 %s273, 1
        %s422 = smul.addr %s421, 64
        %s423 = scalar_lea.vmem [#allocation8], %s422
        %v425 = vld [vmem:[%s379] sm:$0xff]
        %v426 = vld [vmem:[%s379 + $0x8] sm:$0xff]
        %v427 = vld [vmem:[%s379 + $0x10] sm:$0xff]
        %v428 = vld [vmem:[%s379 + $0x18] sm:$0xff]
        %v429 = vld [vmem:[%s379 + $0x20] sm:$0xff]
        %v430 = vld [vmem:[%s379 + $0x28] sm:$0xff]
        %v431 = vld [vmem:[%s379 + $0x30] sm:$0xff]
        %v432 = vld [vmem:[%s379 + $0x38] sm:$0xff]
        %v433 = vadd.f32 %v425, %v426
        %v434 = vadd.f32 %v433, %v427
        %v435 = vadd.f32 %v434, %v428
        %436 = vadd.xlane.f32.xlu0 %v435
        %v437 = vpop.xlane.xlu0 %436
        %v438 = vadd.f32 %v429, %v430
        %v439 = vadd.f32 %v438, %v431
        %v440 = vadd.f32 %v439, %v432
        %441 = vadd.xlane.f32.xlu0 %v440
        %v442 = vpop.xlane.xlu0 %441
        %v443 = vld [vmem:[%s1] sm:$0xff]
        %v444 = vld [vmem:[%s1 + $0x8] sm:$0xff]
        %vm445 = vcmask 130048
        %v447 = vsel %vm445, %v443, 0
        %v450 = vsel %vm445, %v444, 0
        %452 = vmatpush.msra.mxu0 0.0
        %453 = vmatpush.msra.mxu0 0.0
        %454 = vmatpush.msra.mxu0 0.0
        %455 = vmatpush.msra.mxu0 0.0
        %456 = vmatpush.msra.mxu0 0.0
        %457 = vmatpush.msra.mxu0 0.0
        %458 = vmatpush.msra.mxu0 0.0
        %459 = vmatpush.msra.mxu0 0.0
        %460 = vmatpush.msra.mxu0 0.0
        %461 = vmatpush.msra.mxu0 0.0
        %462 = vmatpush.msra.mxu0 0.0
        %463 = vmatpush.msra.mxu0 0.0
        %464 = vmatpush.msra.mxu0 0.0
        %465 = vmatpush.msra.mxu0 0.0
        %466 = vmatpush.msra.mxu0 %v442
        %467 = vmatpush.msra.mxu0 %v437
        %468 = vmatmul.f32.gmra.mxu0 %v447
        %v469 = vpop.f32.mrf.mxu0
        %v470 = vadd.f32 0.0, %v469
        %471 = vmatmul.f32.gmra.mxu0 %v450
        %v472 = vpop.f32.mrf.mxu0
        %v473 = vadd.f32 0.0, %v472
        %474 = vdwg.mxu0
        %v475 = vmul.f32 %v470, 0.0009765625
        %v476 = vmul.f32 %v473, 0.0009765625
        %478 = vset.pattern.permute.xlu0 0
        %479 = vperm.xlu0 %478, %v475
        %v480 = vpop.permute.xlu0 %479
        %483 = vset.pattern.permute.xlu0 0
        %484 = vperm.xlu0 %483, %v476
        %v485 = vpop.permute.xlu0 %484
        %v487 = vsub.f32 %v425, %v480
        %v488 = vsub.f32 %v426, %v480
        %v489 = vsub.f32 %v427, %v480
        %v490 = vsub.f32 %v428, %v480
        %v491 = vsub.f32 %v429, %v485
        %v492 = vsub.f32 %v430, %v485
        %v493 = vsub.f32 %v431, %v485
        %v494 = vsub.f32 %v432, %v485
        %v495 = vmul.f32 %v487, %v487
        %v496 = vmul.f32 %v488, %v488
        %v497 = vmul.f32 %v489, %v489
        %v498 = vmul.f32 %v490, %v490
        %v499 = vmul.f32 %v491, %v491
        %v500 = vmul.f32 %v492, %v492
        %v501 = vmul.f32 %v493, %v493
        %v502 = vmul.f32 %v494, %v494
        %v503 = vadd.f32 %v495, %v496
        %v504 = vadd.f32 %v503, %v497
        %v505 = vadd.f32 %v504, %v498
        %506 = vadd.xlane.f32.xlu0 %v505
        %v507 = vpop.xlane.xlu0 %506
        %v508 = vadd.f32 %v499, %v500
        %v509 = vadd.f32 %v508, %v501
        %v510 = vadd.f32 %v509, %v502
        %511 = vadd.xlane.f32.xlu0 %v510
        %v512 = vpop.xlane.xlu0 %511
        %513 = vmatpush.msra.mxu0 0.0
        %514 = vmatpush.msra.mxu0 0.0
        %515 = vmatpush.msra.mxu0 0.0
        %516 = vmatpush.msra.mxu0 0.0
        %517 = vmatpush.msra.mxu0 0.0
        %518 = vmatpush.msra.mxu0 0.0
        %519 = vmatpush.msra.mxu0 0.0
        %520 = vmatpush.msra.mxu0 0.0
        %521 = vmatpush.msra.mxu0 0.0
        %522 = vmatpush.msra.mxu0 0.0
        %523 = vmatpush.msra.mxu0 0.0
        %524 = vmatpush.msra.mxu0 0.0
        %525 = vmatpush.msra.mxu0 0.0
        %526 = vmatpush.msra.mxu0 0.0
        %527 = vmatpush.msra.mxu0 %v512
        %528 = vmatpush.msra.mxu0 %v507
        %529 = vmatmul.f32.gmra.mxu0 %v447
        %v530 = vpop.f32.mrf.mxu0
        %v531 = vadd.f32 0.0, %v530
        %532 = vmatmul.f32.gmra.mxu0 %v450
        %v533 = vpop.f32.mrf.mxu0
        %v534 = vadd.f32 0.0, %v533
        %535 = vdwg.mxu0
        %v536 = vmul.f32 %v531, 0.0009765625
        %v537 = vmul.f32 %v534, 0.0009765625
        %v538 = vadd.f32 %v536, 1e-05
        %v539 = vadd.f32 %v537, 1e-05
        %v540 = vrsqrt.pop %v538
        %v541 = vmul.f32 %v540, %v538
        %v542 = vmul.f32 %v541, %v540
        %v543 = vmul.f32 0.5, %v542
        %v544 = vsub.f32 1.5, %v543
        %v545 = vmul.f32 %v540, %v544
        %vm546 = vweird.f32 %v538
        %vm547 = vweird.f32 %v540
        %vm548 = vmor %vm546, %vm547
        %v549 = vsel %vm548, %v540, %v545
        %v550 = vrsqrt.pop %v539
        %v551 = vmul.f32 %v550, %v539
        %v552 = vmul.f32 %v551, %v550
        %v553 = vmul.f32 0.5, %v552
        %v554 = vsub.f32 1.5, %v553
        %v555 = vmul.f32 %v550, %v554
        %vm556 = vweird.f32 %v539
        %vm557 = vweird.f32 %v550
        %vm558 = vmor %vm556, %vm557
        %v559 = vsel %vm558, %v550, %v555
        %561 = vset.pattern.permute.xlu0 0
        %562 = vperm.xlu0 %561, %v549
        %v563 = vpop.permute.xlu0 %562
        %566 = vset.pattern.permute.xlu0 0
        %567 = vperm.xlu0 %566, %v559
        %v568 = vpop.permute.xlu0 %567
        %v570 = vmul.f32 %v487, %v563
        %v571 = vmul.f32 %v488, %v563
        %v572 = vmul.f32 %v489, %v563
        %v573 = vmul.f32 %v490, %v563
        %v574 = vmul.f32 %v491, %v568
        %v575 = vmul.f32 %v492, %v568
        %v576 = vmul.f32 %v493, %v568
        %v577 = vmul.f32 %v494, %v568
        %v578 = vld [vmem:[%s5] sm:$0xff]
        %v579 = vld [vmem:[%s5 + $0x8] sm:$0xff]
        %581 = vset.pattern.permute.xlu0 0
        %582 = vperm.xlu0 %581, %v578
        %v583 = vpop.permute.xlu0 %582
        %586 = vset.pattern.permute.xlu0 0
        %587 = vperm.xlu0 %586, %v579
        %v588 = vpop.permute.xlu0 %587
        %v590 = vmul.f32 %v570, %v583
        %v591 = vmul.f32 %v571, %v583
        %v592 = vmul.f32 %v572, %v583
        %v593 = vmul.f32 %v573, %v583
        %v594 = vmul.f32 %v574, %v588
        %v595 = vmul.f32 %v575, %v588
        %v596 = vmul.f32 %v576, %v588
        %v597 = vmul.f32 %v577, %v588
        %v598 = vld [vmem:[%s6] sm:$0xff]
        %v599 = vld [vmem:[%s6 + $0x8] sm:$0xff]
        %601 = vset.pattern.permute.xlu0 0
        %602 = vperm.xlu0 %601, %v598
        %v603 = vpop.permute.xlu0 %602
        %606 = vset.pattern.permute.xlu0 0
        %607 = vperm.xlu0 %606, %v599
        %v608 = vpop.permute.xlu0 %607
        %v610 = vadd.f32 %v590, %v603
        %v611 = vadd.f32 %v591, %v603
        %v612 = vadd.f32 %v592, %v603
        %v613 = vadd.f32 %v593, %v603
        %v614 = vadd.f32 %v594, %v608
        %v615 = vadd.f32 %v595, %v608
        %v616 = vadd.f32 %v596, %v608
        %v617 = vadd.f32 %v597, %v608
        %v618 = vmax.f32 %v610, 0.0
        %v619 = vmax.f32 %v611, 0.0
        %v620 = vmax.f32 %v612, 0.0
        %v621 = vmax.f32 %v613, 0.0
        %v622 = vmax.f32 %v614, 0.0
        %v623 = vmax.f32 %v615, 0.0
        %v624 = vmax.f32 %v616, 0.0
        %v625 = vmax.f32 %v617, 0.0
        %626 = vrot.lane.b32.xlu0 %v618, 73
        %v627 = vpop.permute.xlu0 %626
        %628 = vrot.lane.b32.xlu0 %v622, 73
        %v629 = vpop.permute.xlu0 %628
        %630 = vrot.lane.b32.xlu0 %v619, 73
        %v631 = vpop.permute.xlu0 %630
        %632 = vrot.lane.b32.xlu0 %v623, 73
        %v633 = vpop.permute.xlu0 %632
        %634 = vrot.lane.b32.xlu0 %v620, 73
        %v635 = vpop.permute.xlu0 %634
        %636 = vrot.lane.b32.xlu0 %v624, 73
        %v637 = vpop.permute.xlu0 %636
        %638 = vrot.lane.b32.xlu0 %v621, 73
        %v639 = vpop.permute.xlu0 %638
        %640 = vrot.lane.b32.xlu0 %v625, 73
        %v641 = vpop.permute.xlu0 %640
        %v642 = vlaneseq
        %v643 = vand.u32 %v642, 127
        %vm644 = vcmp.lt.s32.totalorder %v643, 73
        %v645 = vsel %vm644, %v635, %v639
        %v646 = vsel %vm644, %v637, %v641
        %v647 = vsel %vm644, %v631, %v635
        %v648 = vsel %vm644, %v633, %v637
        %v649 = vsel %vm644, %v627, %v631
        %v650 = vsel %vm644, %v629, %v633
        %v651 = vsel %vm644, %v639, %v627
        %v652 = vsel %vm644, %v641, %v629
        %v653 = vld [vmem:[#allocation6] ss:$8 sm:$0xf]
        %v655 = vperm.slane %v653, 0
        %v656 = vperm.slane %v653, 1
        %v657 = vperm.slane %v653, 2
        %v658 = vperm.slane %v653, 3
        %v663 = vmul.f32 %v651, %v655
        %v664 = vmul.f32 %v649, %v656
        %v665 = vmul.f32 %v647, %v657
        %v666 = vmul.f32 %v645, %v658
        %v667 = vmul.f32 %v652, %v655
        %v668 = vmul.f32 %v650, %v656
        %v669 = vmul.f32 %v648, %v657
        %v670 = vmul.f32 %v646, %v658
        %v671 = vpack.c.bf16 %v664, %v663
        %v672 = vpack.c.bf16 %v666, %v665
        %v673 = vpack.c.bf16 %v668, %v667
        %v674 = vpack.c.bf16 %v670, %v669
        %675 = vst [vmem:[#allocation2] sm:$0xff] %v671
        %676 = vst [vmem:[#allocation2 + $0x8] sm:$0xff] %v672
        %677 = vst [vmem:[#allocation2 + $0x10] sm:$0xff] %v673
        %678 = vst [vmem:[#allocation2 + $0x18] sm:$0xff] %v674
        %679 = vrot.lane.b32.xlu0 %v618, 72
        %v680 = vpop.permute.xlu0 %679
        %681 = vrot.lane.b32.xlu0 %v622, 72
        %v682 = vpop.permute.xlu0 %681
        %683 = vrot.lane.b32.xlu0 %v619, 72
        %v684 = vpop.permute.xlu0 %683
        %685 = vrot.lane.b32.xlu0 %v623, 72
        %v686 = vpop.permute.xlu0 %685
        %687 = vrot.lane.b32.xlu0 %v620, 72
        %v688 = vpop.permute.xlu0 %687
        %689 = vrot.lane.b32.xlu0 %v624, 72
        %v690 = vpop.permute.xlu0 %689
        %691 = vrot.lane.b32.xlu0 %v621, 72
        %v692 = vpop.permute.xlu0 %691
        %693 = vrot.lane.b32.xlu0 %v625, 72
        %v694 = vpop.permute.xlu0 %693
        %vm695 = vcmp.lt.s32.totalorder %v643, 72
        %v696 = vsel %vm695, %v688, %v692
        %v697 = vsel %vm695, %v690, %v694
        %v698 = vsel %vm695, %v684, %v688
        %v699 = vsel %vm695, %v686, %v690
        %v700 = vsel %vm695, %v680, %v684
        %v701 = vsel %vm695, %v682, %v686
        %v702 = vsel %vm695, %v692, %v680
        %v703 = vsel %vm695, %v694, %v682
        %s704 = scalar_lea.vmem [#allocation6], 1
        %v705 = vld [vmem:[%s704] ss:$8 sm:$0xf]
        %v707 = vperm.slane %v705, 0
        %v708 = vperm.slane %v705, 1
        %v709 = vperm.slane %v705, 2
        %v710 = vperm.slane %v705, 3
        %v715 = vmul.f32 %v702, %v707
        %v716 = vmul.f32 %v700, %v708
        %v717 = vmul.f32 %v698, %v709
        %v718 = vmul.f32 %v696, %v710
        %v719 = vmul.f32 %v703, %v707
        %v720 = vmul.f32 %v701, %v708
        %v721 = vmul.f32 %v699, %v709
        %v722 = vmul.f32 %v697, %v710
        %v723 = vpack.c.bf16 %v716, %v715
        %v724 = vpack.c.bf16 %v718, %v717
        %v725 = vpack.c.bf16 %v720, %v719
        %v726 = vpack.c.bf16 %v722, %v721
        %727 = vst [vmem:[#allocation2 + $0x20] sm:$0xff] %v723
        %728 = vst [vmem:[#allocation2 + $0x28] sm:$0xff] %v724
        %729 = vst [vmem:[#allocation2 + $0x30] sm:$0xff] %v725
        %730 = vst [vmem:[#allocation2 + $0x38] sm:$0xff] %v726
        %731 = vrot.lane.b32.xlu0 %v618, 71
        %v732 = vpop.permute.xlu0 %731
        %733 = vrot.lane.b32.xlu0 %v622, 71
        %v734 = vpop.permute.xlu0 %733
        %735 = vrot.lane.b32.xlu0 %v619, 71
        %v736 = vpop.permute.xlu0 %735
        %737 = vrot.lane.b32.xlu0 %v623, 71
        %v738 = vpop.permute.xlu0 %737
        %739 = vrot.lane.b32.xlu0 %v620, 71
        %v740 = vpop.permute.xlu0 %739
        %741 = vrot.lane.b32.xlu0 %v624, 71
        %v742 = vpop.permute.xlu0 %741
        %743 = vrot.lane.b32.xlu0 %v621, 71
        %v744 = vpop.permute.xlu0 %743
        %745 = vrot.lane.b32.xlu0 %v625, 71
        %v746 = vpop.permute.xlu0 %745
        %vm747 = vcmp.lt.s32.totalorder %v643, 71
        %v748 = vsel %vm747, %v740, %v744
        %v749 = vsel %vm747, %v742, %v746
        %v750 = vsel %vm747, %v736, %v740
        %v751 = vsel %vm747, %v738, %v742
        %v752 = vsel %vm747, %v732, %v736
        %v753 = vsel %vm747, %v734, %v738
        %v754 = vsel %vm747, %v744, %v732
        %v755 = vsel %vm747, %v746, %v734
        %s756 = scalar_lea.vmem [#allocation6], 2
        %v757 = vld [vmem:[%s756] ss:$8 sm:$0xf]
        %v759 = vperm.slane %v757, 0
        %v760 = vperm.slane %v757, 1
        %v761 = vperm.slane %v757, 2
        %v762 = vperm.slane %v757, 3
        %v767 = vmul.f32 %v754, %v759
        %v768 = vmul.f32 %v752, %v760
        %v769 = vmul.f32 %v750, %v761
        %v770 = vmul.f32 %v748, %v762
        %v771 = vmul.f32 %v755, %v759
        %v772 = vmul.f32 %v753, %v760
        %v773 = vmul.f32 %v751, %v761
        %v774 = vmul.f32 %v749, %v762
        %v775 = vpack.c.bf16 %v768, %v767
        %v776 = vpack.c.bf16 %v770, %v769
        %v777 = vpack.c.bf16 %v772, %v771
        %v778 = vpack.c.bf16 %v774, %v773
        %779 = vst [vmem:[#allocation2 + $0x40] sm:$0xff] %v775
        %780 = vst [vmem:[#allocation2 + $0x48] sm:$0xff] %v776
        %781 = vst [vmem:[#allocation2 + $0x50] sm:$0xff] %v777
        %782 = vst [vmem:[#allocation2 + $0x58] sm:$0xff] %v778
        %783 = vrot.lane.b32.xlu0 %v618, 65
        %v784 = vpop.permute.xlu0 %783
        %785 = vrot.lane.b32.xlu0 %v622, 65
        %v786 = vpop.permute.xlu0 %785
        %787 = vrot.lane.b32.xlu0 %v619, 65
        %v788 = vpop.permute.xlu0 %787
        %789 = vrot.lane.b32.xlu0 %v623, 65
        %v790 = vpop.permute.xlu0 %789
        %791 = vrot.lane.b32.xlu0 %v620, 65
        %v792 = vpop.permute.xlu0 %791
        %793 = vrot.lane.b32.xlu0 %v624, 65
        %v794 = vpop.permute.xlu0 %793
        %795 = vrot.lane.b32.xlu0 %v621, 65
        %v796 = vpop.permute.xlu0 %795
        %797 = vrot.lane.b32.xlu0 %v625, 65
        %v798 = vpop.permute.xlu0 %797
        %vm799 = vcmp.lt.s32.totalorder %v643, 65
        %v800 = vsel %vm799, %v792, %v796
        %v801 = vsel %vm799, %v794, %v798
        %v802 = vsel %vm799, %v788, %v792
        %v803 = vsel %vm799, %v790, %v794
        %v804 = vsel %vm799, %v784, %v788
        %v805 = vsel %vm799, %v786, %v790
        %v806 = vsel %vm799, %v796, %v784
        %v807 = vsel %vm799, %v798, %v786
        %s808 = scalar_lea.vmem [#allocation6], 3
        %v809 = vld [vmem:[%s808] ss:$8 sm:$0xf]
        %v811 = vperm.slane %v809, 0
        %v812 = vperm.slane %v809, 1
        %v813 = vperm.slane %v809, 2
        %v814 = vperm.slane %v809, 3
        %v819 = vmul.f32 %v806, %v811
        %v820 = vmul.f32 %v804, %v812
        %v821 = vmul.f32 %v802, %v813
        %v822 = vmul.f32 %v800, %v814
        %v823 = vmul.f32 %v807, %v811
        %v824 = vmul.f32 %v805, %v812
        %v825 = vmul.f32 %v803, %v813
        %v826 = vmul.f32 %v801, %v814
        %v827 = vpack.c.bf16 %v820, %v819
        %v828 = vpack.c.bf16 %v822, %v821
        %v829 = vpack.c.bf16 %v824, %v823
        %v830 = vpack.c.bf16 %v826, %v825
        %831 = vst [vmem:[#allocation2 + $0x60] sm:$0xff] %v827
        %832 = vst [vmem:[#allocation2 + $0x68] sm:$0xff] %v828
        %833 = vst [vmem:[#allocation2 + $0x70] sm:$0xff] %v829
        %834 = vst [vmem:[#allocation2 + $0x78] sm:$0xff] %v830
        %835 = vrot.lane.b32.xlu0 %v618, 64
        %v836 = vpop.permute.xlu0 %835
        %837 = vrot.lane.b32.xlu0 %v622, 64
        %v838 = vpop.permute.xlu0 %837
        %839 = vrot.lane.b32.xlu0 %v619, 64
        %v840 = vpop.permute.xlu0 %839
        %841 = vrot.lane.b32.xlu0 %v623, 64
        %v842 = vpop.permute.xlu0 %841
        %843 = vrot.lane.b32.xlu0 %v620, 64
        %v844 = vpop.permute.xlu0 %843
        %845 = vrot.lane.b32.xlu0 %v624, 64
        %v846 = vpop.permute.xlu0 %845
        %847 = vrot.lane.b32.xlu0 %v621, 64
        %v848 = vpop.permute.xlu0 %847
        %849 = vrot.lane.b32.xlu0 %v625, 64
        %v850 = vpop.permute.xlu0 %849
        %vm851 = vcmp.lt.s32.totalorder %v643, 64
        %v852 = vsel %vm851, %v844, %v848
        %v853 = vsel %vm851, %v846, %v850
        %v854 = vsel %vm851, %v840, %v844
        %v855 = vsel %vm851, %v842, %v846
        %v856 = vsel %vm851, %v836, %v840
        %v857 = vsel %vm851, %v838, %v842
        %v858 = vsel %vm851, %v848, %v836
        %v859 = vsel %vm851, %v850, %v838
        %s860 = scalar_lea.vmem [#allocation6], 4
        %v861 = vld [vmem:[%s860] ss:$8 sm:$0xf]
        %v863 = vperm.slane %v861, 0
        %v864 = vperm.slane %v861, 1
        %v865 = vperm.slane %v861, 2
        %v866 = vperm.slane %v861, 3
        %v871 = vmul.f32 %v858, %v863
        %v872 = vmul.f32 %v856, %v864
        %v873 = vmul.f32 %v854, %v865
        %v874 = vmul.f32 %v852, %v866
        %v875 = vmul.f32 %v859, %v863
        %v876 = vmul.f32 %v857, %v864
        %v877 = vmul.f32 %v855, %v865
        %v878 = vmul.f32 %v853, %v866
        %v879 = vpack.c.bf16 %v872, %v871
        %v880 = vpack.c.bf16 %v874, %v873
        %v881 = vpack.c.bf16 %v876, %v875
        %v882 = vpack.c.bf16 %v878, %v877
        %883 = vst [vmem:[#allocation2 + $0x80] sm:$0xff] %v879
        %884 = vst [vmem:[#allocation2 + $0x88] sm:$0xff] %v880
        %885 = vst [vmem:[#allocation2 + $0x90] sm:$0xff] %v881
        %886 = vst [vmem:[#allocation2 + $0x98] sm:$0xff] %v882
        %887 = vrot.lane.b32.xlu0 %v618, 63
        %v888 = vpop.permute.xlu0 %887
        %889 = vrot.lane.b32.xlu0 %v622, 63
        %v890 = vpop.permute.xlu0 %889
        %891 = vrot.lane.b32.xlu0 %v619, 63
        %v892 = vpop.permute.xlu0 %891
        %893 = vrot.lane.b32.xlu0 %v623, 63
        %v894 = vpop.permute.xlu0 %893
        %895 = vrot.lane.b32.xlu0 %v620, 63
        %v896 = vpop.permute.xlu0 %895
        %897 = vrot.lane.b32.xlu0 %v624, 63
        %v898 = vpop.permute.xlu0 %897
        %899 = vrot.lane.b32.xlu0 %v621, 63
        %v900 = vpop.permute.xlu0 %899
        %901 = vrot.lane.b32.xlu0 %v625, 63
        %v902 = vpop.permute.xlu0 %901
        %vm903 = vcmp.lt.s32.totalorder %v643, 63
        %v904 = vsel %vm903, %v896, %v900
        %v905 = vsel %vm903, %v898, %v902
        %v906 = vsel %vm903, %v892, %v896
        %v907 = vsel %vm903, %v894, %v898
        %v908 = vsel %vm903, %v888, %v892
        %v909 = vsel %vm903, %v890, %v894
        %v910 = vsel %vm903, %v900, %v888
        %v911 = vsel %vm903, %v902, %v890
        %s912 = scalar_lea.vmem [#allocation6], 5
        %v913 = vld [vmem:[%s912] ss:$8 sm:$0xf]
        %v915 = vperm.slane %v913, 0
        %v916 = vperm.slane %v913, 1
        %v917 = vperm.slane %v913, 2
        %v918 = vperm.slane %v913, 3
        %v923 = vmul.f32 %v910, %v915
        %v924 = vmul.f32 %v908, %v916
        %v925 = vmul.f32 %v906, %v917
        %v926 = vmul.f32 %v904, %v918
        %v927 = vmul.f32 %v911, %v915
        %v928 = vmul.f32 %v909, %v916
        %v929 = vmul.f32 %v907, %v917
        %v930 = vmul.f32 %v905, %v918
        %v931 = vpack.c.bf16 %v924, %v923
        %v932 = vpack.c.bf16 %v926, %v925
        %v933 = vpack.c.bf16 %v928, %v927
        %v934 = vpack.c.bf16 %v930, %v929
        %935 = vst [vmem:[#allocation2 + $0xa0] sm:$0xff] %v931
        %936 = vst [vmem:[#allocation2 + $0xa8] sm:$0xff] %v932
        %937 = vst [vmem:[#allocation2 + $0xb0] sm:$0xff] %v933
        %938 = vst [vmem:[#allocation2 + $0xb8] sm:$0xff] %v934
        %939 = vrot.lane.b32.xlu0 %v618, 57
        %v940 = vpop.permute.xlu0 %939
        %941 = vrot.lane.b32.xlu0 %v622, 57
        %v942 = vpop.permute.xlu0 %941
        %943 = vrot.lane.b32.xlu0 %v619, 57
        %v944 = vpop.permute.xlu0 %943
        %945 = vrot.lane.b32.xlu0 %v623, 57
        %v946 = vpop.permute.xlu0 %945
        %947 = vrot.lane.b32.xlu0 %v620, 57
        %v948 = vpop.permute.xlu0 %947
        %949 = vrot.lane.b32.xlu0 %v624, 57
        %v950 = vpop.permute.xlu0 %949
        %951 = vrot.lane.b32.xlu0 %v621, 57
        %v952 = vpop.permute.xlu0 %951
        %953 = vrot.lane.b32.xlu0 %v625, 57
        %v954 = vpop.permute.xlu0 %953
        %vm955 = vcmp.lt.s32.totalorder %v643, 57
        %v956 = vsel %vm955, %v948, %v952
        %v957 = vsel %vm955, %v950, %v954
        %v958 = vsel %vm955, %v944, %v948
        %v959 = vsel %vm955, %v946, %v950
        %v960 = vsel %vm955, %v940, %v944
        %v961 = vsel %vm955, %v942, %v946
        %v962 = vsel %vm955, %v952, %v940
        %v963 = vsel %vm955, %v954, %v942
        %s964 = scalar_lea.vmem [#allocation6], 6
        %v965 = vld [vmem:[%s964] ss:$8 sm:$0xf]
        %v967 = vperm.slane %v965, 0
        %v968 = vperm.slane %v965, 1
        %v969 = vperm.slane %v965, 2
        %v970 = vperm.slane %v965, 3
        %v975 = vmul.f32 %v962, %v967
        %v976 = vmul.f32 %v960, %v968
        %v977 = vmul.f32 %v958, %v969
        %v978 = vmul.f32 %v956, %v970
        %v979 = vmul.f32 %v963, %v967
        %v980 = vmul.f32 %v961, %v968
        %v981 = vmul.f32 %v959, %v969
        %v982 = vmul.f32 %v957, %v970
        %v983 = vpack.c.bf16 %v976, %v975
        %v984 = vpack.c.bf16 %v978, %v977
        %v985 = vpack.c.bf16 %v980, %v979
        %v986 = vpack.c.bf16 %v982, %v981
        %987 = vst [vmem:[#allocation2 + $0xc0] sm:$0xff] %v983
        %988 = vst [vmem:[#allocation2 + $0xc8] sm:$0xff] %v984
        %989 = vst [vmem:[#allocation2 + $0xd0] sm:$0xff] %v985
        %990 = vst [vmem:[#allocation2 + $0xd8] sm:$0xff] %v986
        %991 = vrot.lane.b32.xlu0 %v618, 56
        %v992 = vpop.permute.xlu0 %991
        %993 = vrot.lane.b32.xlu0 %v622, 56
        %v994 = vpop.permute.xlu0 %993
        %995 = vrot.lane.b32.xlu0 %v619, 56
        %v996 = vpop.permute.xlu0 %995
        %997 = vrot.lane.b32.xlu0 %v623, 56
        %v998 = vpop.permute.xlu0 %997
        %999 = vrot.lane.b32.xlu0 %v620, 56
        %v1000 = vpop.permute.xlu0 %999
        %1001 = vrot.lane.b32.xlu0 %v624, 56
        %v1002 = vpop.permute.xlu0 %1001
        %1003 = vrot.lane.b32.xlu0 %v621, 56
        %v1004 = vpop.permute.xlu0 %1003
        %1005 = vrot.lane.b32.xlu0 %v625, 56
        %v1006 = vpop.permute.xlu0 %1005
        %vm1007 = vcmp.lt.s32.totalorder %v643, 56
        %v1008 = vsel %vm1007, %v1000, %v1004
        %v1009 = vsel %vm1007, %v1002, %v1006
        %v1010 = vsel %vm1007, %v996, %v1000
        %v1011 = vsel %vm1007, %v998, %v1002
        %v1012 = vsel %vm1007, %v992, %v996
        %v1013 = vsel %vm1007, %v994, %v998
        %v1014 = vsel %vm1007, %v1004, %v992
        %v1015 = vsel %vm1007, %v1006, %v994
        %s1016 = scalar_lea.vmem [#allocation6], 7
        %v1017 = vld [vmem:[%s1016] ss:$8 sm:$0xf]
        %v1019 = vperm.slane %v1017, 0
        %v1020 = vperm.slane %v1017, 1
        %v1021 = vperm.slane %v1017, 2
        %v1022 = vperm.slane %v1017, 3
        %v1027 = vmul.f32 %v1014, %v1019
        %v1028 = vmul.f32 %v1012, %v1020
        %v1029 = vmul.f32 %v1010, %v1021
        %v1030 = vmul.f32 %v1008, %v1022
        %v1031 = vmul.f32 %v1015, %v1019
        %v1032 = vmul.f32 %v1013, %v1020
        %v1033 = vmul.f32 %v1011, %v1021
        %v1034 = vmul.f32 %v1009, %v1022
        %v1035 = vpack.c.bf16 %v1028, %v1027
        %v1036 = vpack.c.bf16 %v1030, %v1029
        %v1037 = vpack.c.bf16 %v1032, %v1031
        %v1038 = vpack.c.bf16 %v1034, %v1033
        %1039 = vst [vmem:[#allocation2 + $0xe0] sm:$0xff] %v1035
        %1040 = vst [vmem:[#allocation2 + $0xe8] sm:$0xff] %v1036
        %1041 = vst [vmem:[#allocation2 + $0xf0] sm:$0xff] %v1037
        %1042 = vst [vmem:[#allocation2 + $0xf8] sm:$0xff] %v1038
        %1043 = vrot.lane.b32.xlu0 %v618, 55
        %v1044 = vpop.permute.xlu0 %1043
        %1045 = vrot.lane.b32.xlu0 %v622, 55
        %v1046 = vpop.permute.xlu0 %1045
        %1047 = vrot.lane.b32.xlu0 %v619, 55
        %v1048 = vpop.permute.xlu0 %1047
        %1049 = vrot.lane.b32.xlu0 %v623, 55
        %v1050 = vpop.permute.xlu0 %1049
        %1051 = vrot.lane.b32.xlu0 %v620, 55
        %v1052 = vpop.permute.xlu0 %1051
        %1053 = vrot.lane.b32.xlu0 %v624, 55
        %v1054 = vpop.permute.xlu0 %1053
        %1055 = vrot.lane.b32.xlu0 %v621, 55
        %v1056 = vpop.permute.xlu0 %1055
        %1057 = vrot.lane.b32.xlu0 %v625, 55
        %v1058 = vpop.permute.xlu0 %1057
        %vm1059 = vcmp.lt.s32.totalorder %v643, 55
        %v1060 = vsel %vm1059, %v1052, %v1056
        %v1061 = vsel %vm1059, %v1054, %v1058
        %v1062 = vsel %vm1059, %v1048, %v1052
        %v1063 = vsel %vm1059, %v1050, %v1054
        %v1064 = vsel %vm1059, %v1044, %v1048
        %v1065 = vsel %vm1059, %v1046, %v1050
        %v1066 = vsel %vm1059, %v1056, %v1044
        %v1067 = vsel %vm1059, %v1058, %v1046
        %s1068 = scalar_lea.vmem [#allocation6], 32
        %v1069 = vld [vmem:[%s1068] ss:$8 sm:$0xf]
        %v1071 = vperm.slane %v1069, 0
        %v1072 = vperm.slane %v1069, 1
        %v1073 = vperm.slane %v1069, 2
        %v1074 = vperm.slane %v1069, 3
        %v1079 = vmul.f32 %v1066, %v1071
        %v1080 = vmul.f32 %v1064, %v1072
        %v1081 = vmul.f32 %v1062, %v1073
        %v1082 = vmul.f32 %v1060, %v1074
        %v1083 = vmul.f32 %v1067, %v1071
        %v1084 = vmul.f32 %v1065, %v1072
        %v1085 = vmul.f32 %v1063, %v1073
        %v1086 = vmul.f32 %v1061, %v1074
        %v1087 = vpack.c.bf16 %v1080, %v1079
        %v1088 = vpack.c.bf16 %v1082, %v1081
        %v1089 = vpack.c.bf16 %v1084, %v1083
        %v1090 = vpack.c.bf16 %v1086, %v1085
        %1091 = vst [vmem:[#allocation2 + $0x100] sm:$0xff] %v1087
        %1092 = vst [vmem:[#allocation2 + $0x108] sm:$0xff] %v1088
        %1093 = vst [vmem:[#allocation2 + $0x110] sm:$0xff] %v1089
        %1094 = vst [vmem:[#allocation2 + $0x118] sm:$0xff] %v1090
        %v1095 = vld [vmem:[%s3] sm:$0xff]
        %v1096 = vld [vmem:[%s3 + $0x10] sm:$0xff]
        %v1097 = vld [vmem:[#allocation2] sm:$0xff]
        %v1098 = vld [vmem:[#allocation2 + $0x8] sm:$0xff]
        %v1099 = vld [vmem:[#allocation2 + $0x10] sm:$0xff]
        %v1100 = vld [vmem:[#allocation2 + $0x18] sm:$0xff]
        %v1101 = vld [vmem:[#allocation2 + $0x20] sm:$0xff]
        %v1102 = vld [vmem:[#allocation2 + $0x28] sm:$0xff]
        %v1103 = vld [vmem:[#allocation2 + $0x30] sm:$0xff]
        %v1104 = vld [vmem:[#allocation2 + $0x38] sm:$0xff]
        %v1105 = vld [vmem:[#allocation2 + $0x40] sm:$0xff]
        %v1106 = vld [vmem:[#allocation2 + $0x48] sm:$0xff]
        %v1107 = vld [vmem:[#allocation2 + $0x50] sm:$0xff]
        %v1108 = vld [vmem:[#allocation2 + $0x58] sm:$0xff]
        %v1109 = vld [vmem:[#allocation2 + $0x60] sm:$0xff]
        %v1110 = vld [vmem:[#allocation2 + $0x68] sm:$0xff]
        %v1111 = vld [vmem:[#allocation2 + $0x70] sm:$0xff]
        %v1112 = vld [vmem:[#allocation2 + $0x78] sm:$0xff]
        %v1113 = vld [vmem:[#allocation2 + $0x80] sm:$0xff]
        %v1114 = vld [vmem:[#allocation2 + $0x88] sm:$0xff]
        %v1115 = vld [vmem:[#allocation2 + $0x90] sm:$0xff]
        %v1116 = vld [vmem:[#allocation2 + $0x98] sm:$0xff]
        %v1117 = vld [vmem:[#allocation2 + $0xa0] sm:$0xff]
        %v1118 = vld [vmem:[#allocation2 + $0xa8] sm:$0xff]
        %v1119 = vld [vmem:[#allocation2 + $0xb0] sm:$0xff]
        %v1120 = vld [vmem:[#allocation2 + $0xb8] sm:$0xff]
        %v1121 = vld [vmem:[#allocation2 + $0xc0] sm:$0xff]
        %v1122 = vld [vmem:[#allocation2 + $0xc8] sm:$0xff]
        %v1123 = vld [vmem:[#allocation2 + $0xd0] sm:$0xff]
        %v1124 = vld [vmem:[#allocation2 + $0xd8] sm:$0xff]
        %v1125 = vld [vmem:[#allocation2 + $0xe0] sm:$0xff]
        %v1126 = vld [vmem:[#allocation2 + $0xe8] sm:$0xff]
        %v1127 = vld [vmem:[#allocation2 + $0xf0] sm:$0xff]
        %v1128 = vld [vmem:[#allocation2 + $0xf8] sm:$0xff]
        %v1129 = vld [vmem:[#allocation2 + $0x100] sm:$0xff]
        %v1130 = vld [vmem:[#allocation2 + $0x108] sm:$0xff]
        %v1131 = vld [vmem:[#allocation2 + $0x110] sm:$0xff]
        %v1132 = vld [vmem:[#allocation2 + $0x118] sm:$0xff]
        %1133 = vrot.lane.b32.xlu0 %v618, 9
        %v1134 = vpop.permute.xlu0 %1133
        %1135 = vrot.lane.b32.xlu0 %v622, 9
        %v1136 = vpop.permute.xlu0 %1135
        %1137 = vrot.lane.b32.xlu0 %v619, 9
        %v1138 = vpop.permute.xlu0 %1137
        %1139 = vrot.lane.b32.xlu0 %v623, 9
        %v1140 = vpop.permute.xlu0 %1139
        %1141 = vrot.lane.b32.xlu0 %v620, 9
        %v1142 = vpop.permute.xlu0 %1141
        %1143 = vrot.lane.b32.xlu0 %v624, 9
        %v1144 = vpop.permute.xlu0 %1143
        %1145 = vrot.lane.b32.xlu0 %v621, 9
        %v1146 = vpop.permute.xlu0 %1145
        %1147 = vrot.lane.b32.xlu0 %v625, 9
        %v1148 = vpop.permute.xlu0 %1147
        %vm1149 = vcmp.lt.s32.totalorder %v643, 9
        %v1150 = vsel %vm1149, %v1142, %v1146
        %v1151 = vsel %vm1149, %v1144, %v1148
        %v1152 = vsel %vm1149, %v1138, %v1142
        %v1153 = vsel %vm1149, %v1140, %v1144
        %v1154 = vsel %vm1149, %v1134, %v1138
        %v1155 = vsel %vm1149, %v1136, %v1140
        %v1156 = vsel %vm1149, %v1146, %v1134
        %v1157 = vsel %vm1149, %v1148, %v1136
        %s1158 = scalar_lea.vmem [#allocation6], 33
        %v1159 = vld [vmem:[%s1158] ss:$8 sm:$0xf]
        %v1161 = vperm.slane %v1159, 0
        %v1162 = vperm.slane %v1159, 1
        %v1163 = vperm.slane %v1159, 2
        %v1164 = vperm.slane %v1159, 3
        %v1169 = vmul.f32 %v1156, %v1161
        %v1170 = vmul.f32 %v1154, %v1162
        %v1171 = vmul.f32 %v1152, %v1163
        %v1172 = vmul.f32 %v1150, %v1164
        %v1173 = vmul.f32 %v1157, %v1161
        %v1174 = vmul.f32 %v1155, %v1162
        %v1175 = vmul.f32 %v1153, %v1163
        %v1176 = vmul.f32 %v1151, %v1164
        %v1177 = vpack.c.bf16 %v1170, %v1169
        %v1178 = vpack.c.bf16 %v1172, %v1171
        %v1179 = vpack.c.bf16 %v1174, %v1173
        %v1180 = vpack.c.bf16 %v1176, %v1175
        %s1181 = scalar_lea.vmem [#allocation2], 288
        %1182 = vst [vmem:[%s1181] sm:$0xff] %v1177
        %1183 = vst [vmem:[%s1181 + $0x8] sm:$0xff] %v1178
        %1184 = vst [vmem:[%s1181 + $0x10] sm:$0xff] %v1179
        %1185 = vst [vmem:[%s1181 + $0x18] sm:$0xff] %v1180
        %1186 = vrot.lane.b32.xlu0 %v618, 8
        %v1187 = vpop.permute.xlu0 %1186
        %1188 = vrot.lane.b32.xlu0 %v622, 8
        %v1189 = vpop.permute.xlu0 %1188
        %1190 = vrot.lane.b32.xlu0 %v619, 8
        %v1191 = vpop.permute.xlu0 %1190
        %1192 = vrot.lane.b32.xlu0 %v623, 8
        %v1193 = vpop.permute.xlu0 %1192
        %1194 = vrot.lane.b32.xlu0 %v620, 8
        %v1195 = vpop.permute.xlu0 %1194
        %1196 = vrot.lane.b32.xlu0 %v624, 8
        %v1197 = vpop.permute.xlu0 %1196
        %1198 = vrot.lane.b32.xlu0 %v621, 8
        %v1199 = vpop.permute.xlu0 %1198
        %1200 = vrot.lane.b32.xlu0 %v625, 8
        %v1201 = vpop.permute.xlu0 %1200
        %vm1202 = vcmp.lt.s32.totalorder %v643, 8
        %v1203 = vsel %vm1202, %v1195, %v1199
        %v1204 = vsel %vm1202, %v1197, %v1201
        %v1205 = vsel %vm1202, %v1191, %v1195
        %v1206 = vsel %vm1202, %v1193, %v1197
        %v1207 = vsel %vm1202, %v1187, %v1191
        %v1208 = vsel %vm1202, %v1189, %v1193
        %v1209 = vsel %vm1202, %v1199, %v1187
        %v1210 = vsel %vm1202, %v1201, %v1189
        %s1211 = scalar_lea.vmem [#allocation6], 34
        %v1212 = vld [vmem:[%s1211] ss:$8 sm:$0xf]
        %v1214 = vperm.slane %v1212, 0
        %v1215 = vperm.slane %v1212, 1
        %v1216 = vperm.slane %v1212, 2
        %v1217 = vperm.slane %v1212, 3
        %v1222 = vmul.f32 %v1209, %v1214
        %v1223 = vmul.f32 %v1207, %v1215
        %v1224 = vmul.f32 %v1205, %v1216
        %v1225 = vmul.f32 %v1203, %v1217
        %v1226 = vmul.f32 %v1210, %v1214
        %v1227 = vmul.f32 %v1208, %v1215
        %v1228 = vmul.f32 %v1206, %v1216
        %v1229 = vmul.f32 %v1204, %v1217
        %v1230 = vpack.c.bf16 %v1223, %v1222
        %v1231 = vpack.c.bf16 %v1225, %v1224
        %v1232 = vpack.c.bf16 %v1227, %v1226
        %v1233 = vpack.c.bf16 %v1229, %v1228
        %1234 = vst [vmem:[%s1181 + $0x20] sm:$0xff] %v1230
        %1235 = vst [vmem:[%s1181 + $0x28] sm:$0xff] %v1231
        %1236 = vst [vmem:[%s1181 + $0x30] sm:$0xff] %v1232
        %1237 = vst [vmem:[%s1181 + $0x38] sm:$0xff] %v1233
        %1238 = vrot.lane.b32.xlu0 %v618, 7
        %v1239 = vpop.permute.xlu0 %1238
        %1240 = vrot.lane.b32.xlu0 %v622, 7
        %v1241 = vpop.permute.xlu0 %1240
        %1242 = vrot.lane.b32.xlu0 %v619, 7
        %v1243 = vpop.permute.xlu0 %1242
        %1244 = vrot.lane.b32.xlu0 %v623, 7
        %v1245 = vpop.permute.xlu0 %1244
        %1246 = vrot.lane.b32.xlu0 %v620, 7
        %v1247 = vpop.permute.xlu0 %1246
        %1248 = vrot.lane.b32.xlu0 %v624, 7
        %v1249 = vpop.permute.xlu0 %1248
        %1250 = vrot.lane.b32.xlu0 %v621, 7
        %v1251 = vpop.permute.xlu0 %1250
        %1252 = vrot.lane.b32.xlu0 %v625, 7
        %v1253 = vpop.permute.xlu0 %1252
        %vm1254 = vcmp.lt.s32.totalorder %v643, 7
        %v1255 = vsel %vm1254, %v1247, %v1251
        %v1256 = vsel %vm1254, %v1249, %v1253
        %v1257 = vsel %vm1254, %v1243, %v1247
        %v1258 = vsel %vm1254, %v1245, %v1249
        %v1259 = vsel %vm1254, %v1239, %v1243
        %v1260 = vsel %vm1254, %v1241, %v1245
        %v1261 = vsel %vm1254, %v1251, %v1239
        %v1262 = vsel %vm1254, %v1253, %v1241
        %s1263 = scalar_lea.vmem [#allocation6], 35
        %v1264 = vld [vmem:[%s1263] ss:$8 sm:$0xf]
        %v1266 = vperm.slane %v1264, 0
        %v1267 = vperm.slane %v1264, 1
        %v1268 = vperm.slane %v1264, 2
        %v1269 = vperm.slane %v1264, 3
        %v1274 = vmul.f32 %v1261, %v1266
        %v1275 = vmul.f32 %v1259, %v1267
        %v1276 = vmul.f32 %v1257, %v1268
        %v1277 = vmul.f32 %v1255, %v1269
        %v1278 = vmul.f32 %v1262, %v1266
        %v1279 = vmul.f32 %v1260, %v1267
        %v1280 = vmul.f32 %v1258, %v1268
        %v1281 = vmul.f32 %v1256, %v1269
        %v1282 = vpack.c.bf16 %v1275, %v1274
        %v1283 = vpack.c.bf16 %v1277, %v1276
        %v1284 = vpack.c.bf16 %v1279, %v1278
        %v1285 = vpack.c.bf16 %v1281, %v1280
        %1286 = vst [vmem:[%s1181 + $0x40] sm:$0xff] %v1282
        %1287 = vst [vmem:[%s1181 + $0x48] sm:$0xff] %v1283
        %1288 = vst [vmem:[%s1181 + $0x50] sm:$0xff] %v1284
        %1289 = vst [vmem:[%s1181 + $0x58] sm:$0xff] %v1285
        %1290 = vrot.lane.b32.xlu0 %v618, 1
        %v1291 = vpop.permute.xlu0 %1290
        %1292 = vrot.lane.b32.xlu0 %v622, 1
        %v1293 = vpop.permute.xlu0 %1292
        %1294 = vrot.lane.b32.xlu0 %v619, 1
        %v1295 = vpop.permute.xlu0 %1294
        %1296 = vrot.lane.b32.xlu0 %v623, 1
        %v1297 = vpop.permute.xlu0 %1296
        %1298 = vrot.lane.b32.xlu0 %v620, 1
        %v1299 = vpop.permute.xlu0 %1298
        %1300 = vrot.lane.b32.xlu0 %v624, 1
        %v1301 = vpop.permute.xlu0 %1300
        %1302 = vrot.lane.b32.xlu0 %v621, 1
        %v1303 = vpop.permute.xlu0 %1302
        %1304 = vrot.lane.b32.xlu0 %v625, 1
        %v1305 = vpop.permute.xlu0 %1304
        %vm1306 = vcmp.lt.s32.totalorder %v643, 1
        %v1307 = vsel %vm1306, %v1299, %v1303
        %v1308 = vsel %vm1306, %v1301, %v1305
        %v1309 = vsel %vm1306, %v1295, %v1299
        %v1310 = vsel %vm1306, %v1297, %v1301
        %v1311 = vsel %vm1306, %v1291, %v1295
        %v1312 = vsel %vm1306, %v1293, %v1297
        %v1313 = vsel %vm1306, %v1303, %v1291
        %v1314 = vsel %vm1306, %v1305, %v1293
        %s1315 = scalar_lea.vmem [#allocation6], 36
        %v1316 = vld [vmem:[%s1315] ss:$8 sm:$0xf]
        %v1318 = vperm.slane %v1316, 0
        %v1319 = vperm.slane %v1316, 1
        %v1320 = vperm.slane %v1316, 2
        %v1321 = vperm.slane %v1316, 3
        %v1326 = vmul.f32 %v1313, %v1318
        %v1327 = vmul.f32 %v1311, %v1319
        %v1328 = vmul.f32 %v1309, %v1320
        %v1329 = vmul.f32 %v1307, %v1321
        %v1330 = vmul.f32 %v1314, %v1318
        %v1331 = vmul.f32 %v1312, %v1319
        %v1332 = vmul.f32 %v1310, %v1320
        %v1333 = vmul.f32 %v1308, %v1321
        %v1334 = vpack.c.bf16 %v1327, %v1326
        %v1335 = vpack.c.bf16 %v1329, %v1328
        %v1336 = vpack.c.bf16 %v1331, %v1330
        %v1337 = vpack.c.bf16 %v1333, %v1332
        %1338 = vst [vmem:[%s1181 + $0x60] sm:$0xff] %v1334
        %1339 = vst [vmem:[%s1181 + $0x68] sm:$0xff] %v1335
        %1340 = vst [vmem:[%s1181 + $0x70] sm:$0xff] %v1336
        %1341 = vst [vmem:[%s1181 + $0x78] sm:$0xff] %v1337
        %v1342 = vpack.c.bf16 %v619, %v618
        %v1343 = vpack.c.bf16 %v621, %v620
        %v1344 = vpack.c.bf16 %v623, %v622
        %v1345 = vpack.c.bf16 %v625, %v624
        %1346 = vst [vmem:[%s1181 + $0x80] sm:$0xff] %v1342
        %1347 = vst [vmem:[%s1181 + $0x88] sm:$0xff] %v1343
        %1348 = vst [vmem:[%s1181 + $0x90] sm:$0xff] %v1344
        %1349 = vst [vmem:[%s1181 + $0x98] sm:$0xff] %v1345
        %1350 = vrot.lane.b32.xlu0 %v618, 127
        %v1351 = vpop.permute.xlu0 %1350
        %1352 = vrot.lane.b32.xlu0 %v622, 127
        %v1353 = vpop.permute.xlu0 %1352
        %1354 = vrot.lane.b32.xlu0 %v619, 127
        %v1355 = vpop.permute.xlu0 %1354
        %1356 = vrot.lane.b32.xlu0 %v623, 127
        %v1357 = vpop.permute.xlu0 %1356
        %1358 = vrot.lane.b32.xlu0 %v620, 127
        %v1359 = vpop.permute.xlu0 %1358
        %1360 = vrot.lane.b32.xlu0 %v624, 127
        %v1361 = vpop.permute.xlu0 %1360
        %1362 = vrot.lane.b32.xlu0 %v621, 127
        %v1363 = vpop.permute.xlu0 %1362
        %1364 = vrot.lane.b32.xlu0 %v625, 127
        %v1365 = vpop.permute.xlu0 %1364
        %vm1366 = vcmp.lt.s32.totalorder %v643, 127
        %v1367 = vsel %vm1366, %v1359, %v1363
        %v1368 = vsel %vm1366, %v1361, %v1365
        %v1369 = vsel %vm1366, %v1355, %v1359
        %v1370 = vsel %vm1366, %v1357, %v1361
        %v1371 = vsel %vm1366, %v1351, %v1355
        %v1372 = vsel %vm1366, %v1353, %v1357
        %v1373 = vsel %vm1366, %v1363, %v1351
        %v1374 = vsel %vm1366, %v1365, %v1353
        %s1375 = scalar_lea.vmem [#allocation6], 38
        %v1376 = vld [vmem:[%s1375] ss:$8 sm:$0xf]
        %v1378 = vperm.slane %v1376, 0
        %v1379 = vperm.slane %v1376, 1
        %v1380 = vperm.slane %v1376, 2
        %v1381 = vperm.slane %v1376, 3
        %v1386 = vmul.f32 %v1371, %v1378
        %v1387 = vmul.f32 %v1369, %v1379
        %v1388 = vmul.f32 %v1367, %v1380
        %v1389 = vmul.f32 %v1373, %v1381
        %v1390 = vmul.f32 %v1372, %v1378
        %v1391 = vmul.f32 %v1370, %v1379
        %v1392 = vmul.f32 %v1368, %v1380
        %v1393 = vmul.f32 %v1374, %v1381
        %v1394 = vpack.c.bf16 %v1387, %v1386
        %v1395 = vpack.c.bf16 %v1389, %v1388
        %v1396 = vpack.c.bf16 %v1391, %v1390
        %v1397 = vpack.c.bf16 %v1393, %v1392
        %1398 = vst [vmem:[%s1181 + $0xa0] sm:$0xff] %v1394
        %1399 = vst [vmem:[%s1181 + $0xa8] sm:$0xff] %v1395
        %1400 = vst [vmem:[%s1181 + $0xb0] sm:$0xff] %v1396
        %1401 = vst [vmem:[%s1181 + $0xb8] sm:$0xff] %v1397
        %1402 = vrot.lane.b32.xlu0 %v618, 121
        %v1403 = vpop.permute.xlu0 %1402
        %1404 = vrot.lane.b32.xlu0 %v622, 121
        %v1405 = vpop.permute.xlu0 %1404
        %1406 = vrot.lane.b32.xlu0 %v619, 121
        %v1407 = vpop.permute.xlu0 %1406
        %1408 = vrot.lane.b32.xlu0 %v623, 121
        %v1409 = vpop.permute.xlu0 %1408
        %1410 = vrot.lane.b32.xlu0 %v620, 121
        %v1411 = vpop.permute.xlu0 %1410
        %1412 = vrot.lane.b32.xlu0 %v624, 121
        %v1413 = vpop.permute.xlu0 %1412
        %1414 = vrot.lane.b32.xlu0 %v621, 121
        %v1415 = vpop.permute.xlu0 %1414
        %1416 = vrot.lane.b32.xlu0 %v625, 121
        %v1417 = vpop.permute.xlu0 %1416
        %vm1418 = vcmp.lt.s32.totalorder %v643, 121
        %v1419 = vsel %vm1418, %v1411, %v1415
        %v1420 = vsel %vm1418, %v1413, %v1417
        %v1421 = vsel %vm1418, %v1407, %v1411
        %v1422 = vsel %vm1418, %v1409, %v1413
        %v1423 = vsel %vm1418, %v1403, %v1407
        %v1424 = vsel %vm1418, %v1405, %v1409
        %v1425 = vsel %vm1418, %v1415, %v1403
        %v1426 = vsel %vm1418, %v1417, %v1405
        %s1427 = scalar_lea.vmem [#allocation6], 39
        %v1428 = vld [vmem:[%s1427] ss:$8 sm:$0xf]
        %v1430 = vperm.slane %v1428, 0
        %v1431 = vperm.slane %v1428, 1
        %v1432 = vperm.slane %v1428, 2
        %v1433 = vperm.slane %v1428, 3
        %v1438 = vmul.f32 %v1423, %v1430
        %v1439 = vmul.f32 %v1421, %v1431
        %v1440 = vmul.f32 %v1419, %v1432
        %v1441 = vmul.f32 %v1425, %v1433
        %v1442 = vmul.f32 %v1424, %v1430
        %v1443 = vmul.f32 %v1422, %v1431
        %v1444 = vmul.f32 %v1420, %v1432
        %v1445 = vmul.f32 %v1426, %v1433
        %v1446 = vpack.c.bf16 %v1439, %v1438
        %v1447 = vpack.c.bf16 %v1441, %v1440
        %v1448 = vpack.c.bf16 %v1443, %v1442
        %v1449 = vpack.c.bf16 %v1445, %v1444
        %1450 = vst [vmem:[%s1181 + $0xc0] sm:$0xff] %v1446
        %1451 = vst [vmem:[%s1181 + $0xc8] sm:$0xff] %v1447
        %1452 = vst [vmem:[%s1181 + $0xd0] sm:$0xff] %v1448
        %1453 = vst [vmem:[%s1181 + $0xd8] sm:$0xff] %v1449
        %1454 = vrot.lane.b32.xlu0 %v618, 120
        %v1455 = vpop.permute.xlu0 %1454
        %1456 = vrot.lane.b32.xlu0 %v622, 120
        %v1457 = vpop.permute.xlu0 %1456
        %1458 = vrot.lane.b32.xlu0 %v619, 120
        %v1459 = vpop.permute.xlu0 %1458
        %1460 = vrot.lane.b32.xlu0 %v623, 120
        %v1461 = vpop.permute.xlu0 %1460
        %1462 = vrot.lane.b32.xlu0 %v620, 120
        %v1463 = vpop.permute.xlu0 %1462
        %1464 = vrot.lane.b32.xlu0 %v624, 120
        %v1465 = vpop.permute.xlu0 %1464
        %1466 = vrot.lane.b32.xlu0 %v621, 120
        %v1467 = vpop.permute.xlu0 %1466
        %1468 = vrot.lane.b32.xlu0 %v625, 120
        %v1469 = vpop.permute.xlu0 %1468
        %vm1470 = vcmp.lt.s32.totalorder %v643, 120
        %v1471 = vsel %vm1470, %v1463, %v1467
        %v1472 = vsel %vm1470, %v1465, %v1469
        %v1473 = vsel %vm1470, %v1459, %v1463
        %v1474 = vsel %vm1470, %v1461, %v1465
        %v1475 = vsel %vm1470, %v1455, %v1459
        %v1476 = vsel %vm1470, %v1457, %v1461
        %v1477 = vsel %vm1470, %v1467, %v1455
        %v1478 = vsel %vm1470, %v1469, %v1457
        %s1479 = scalar_lea.vmem [#allocation6], 64
        %v1480 = vld [vmem:[%s1479] ss:$8 sm:$0xf]
        %v1482 = vperm.slane %v1480, 0
        %v1483 = vperm.slane %v1480, 1
        %v1484 = vperm.slane %v1480, 2
        %v1485 = vperm.slane %v1480, 3
        %v1490 = vmul.f32 %v1475, %v1482
        %v1491 = vmul.f32 %v1473, %v1483
        %v1492 = vmul.f32 %v1471, %v1484
        %v1493 = vmul.f32 %v1477, %v1485
        %v1494 = vmul.f32 %v1476, %v1482
        %v1495 = vmul.f32 %v1474, %v1483
        %v1496 = vmul.f32 %v1472, %v1484
        %v1497 = vmul.f32 %v1478, %v1485
        %v1498 = vpack.c.bf16 %v1491, %v1490
        %v1499 = vpack.c.bf16 %v1493, %v1492
        %v1500 = vpack.c.bf16 %v1495, %v1494
        %v1501 = vpack.c.bf16 %v1497, %v1496
        %1502 = vst [vmem:[%s1181 + $0xe0] sm:$0xff] %v1498
        %1503 = vst [vmem:[%s1181 + $0xe8] sm:$0xff] %v1499
        %1504 = vst [vmem:[%s1181 + $0xf0] sm:$0xff] %v1500
        %1505 = vst [vmem:[%s1181 + $0xf8] sm:$0xff] %v1501
        %1506 = vrot.lane.b32.xlu0 %v618, 119
        %v1507 = vpop.permute.xlu0 %1506
        %1508 = vrot.lane.b32.xlu0 %v622, 119
        %v1509 = vpop.permute.xlu0 %1508
        %1510 = vrot.lane.b32.xlu0 %v619, 119
        %v1511 = vpop.permute.xlu0 %1510
        %1512 = vrot.lane.b32.xlu0 %v623, 119
        %v1513 = vpop.permute.xlu0 %1512
        %1514 = vrot.lane.b32.xlu0 %v620, 119
        %v1515 = vpop.permute.xlu0 %1514
        %1516 = vrot.lane.b32.xlu0 %v624, 119
        %v1517 = vpop.permute.xlu0 %1516
        %1518 = vrot.lane.b32.xlu0 %v621, 119
        %v1519 = vpop.permute.xlu0 %1518
        %1520 = vrot.lane.b32.xlu0 %v625, 119
        %v1521 = vpop.permute.xlu0 %1520
        %vm1522 = vcmp.lt.s32.totalorder %v643, 119
        %v1523 = vsel %vm1522, %v1515, %v1519
        %v1524 = vsel %vm1522, %v1517, %v1521
        %v1525 = vsel %vm1522, %v1511, %v1515
        %v1526 = vsel %vm1522, %v1513, %v1517
        %v1527 = vsel %vm1522, %v1507, %v1511
        %v1528 = vsel %vm1522, %v1509, %v1513
        %v1529 = vsel %vm1522, %v1519, %v1507
        %v1530 = vsel %vm1522, %v1521, %v1509
        %s1531 = scalar_lea.vmem [#allocation6], 65
        %v1532 = vld [vmem:[%s1531] ss:$8 sm:$0xf]
        %v1534 = vperm.slane %v1532, 0
        %v1535 = vperm.slane %v1532, 1
        %v1536 = vperm.slane %v1532, 2
        %v1537 = vperm.slane %v1532, 3
        %v1542 = vmul.f32 %v1527, %v1534
        %v1543 = vmul.f32 %v1525, %v1535
        %v1544 = vmul.f32 %v1523, %v1536
        %v1545 = vmul.f32 %v1529, %v1537
        %v1546 = vmul.f32 %v1528, %v1534
        %v1547 = vmul.f32 %v1526, %v1535
        %v1548 = vmul.f32 %v1524, %v1536
        %v1549 = vmul.f32 %v1530, %v1537
        %v1550 = vpack.c.bf16 %v1543, %v1542
        %v1551 = vpack.c.bf16 %v1545, %v1544
        %v1552 = vpack.c.bf16 %v1547, %v1546
        %v1553 = vpack.c.bf16 %v1549, %v1548
        %1554 = vst [vmem:[%s1181 + $0x100] sm:$0xff] %v1550
        %1555 = vst [vmem:[%s1181 + $0x108] sm:$0xff] %v1551
        %1556 = vst [vmem:[%s1181 + $0x110] sm:$0xff] %v1552
        %1557 = vst [vmem:[%s1181 + $0x118] sm:$0xff] %v1553
        %v1558 = vld [vmem:[%s3 + $0x4] sm:$0xff]
        %v1559 = vld [vmem:[%s3 + $0x14] sm:$0xff]
        %v1560 = vld [vmem:[%s1181] sm:$0xff]
        %v1561 = vld [vmem:[%s1181 + $0x8] sm:$0xff]
        %v1562 = vld [vmem:[%s1181 + $0x10] sm:$0xff]
        %v1563 = vld [vmem:[%s1181 + $0x18] sm:$0xff]
        %v1564 = vld [vmem:[%s1181 + $0x20] sm:$0xff]
        %v1565 = vld [vmem:[%s1181 + $0x28] sm:$0xff]
        %v1566 = vld [vmem:[%s1181 + $0x30] sm:$0xff]
        %v1567 = vld [vmem:[%s1181 + $0x38] sm:$0xff]
        %v1568 = vld [vmem:[%s1181 + $0x40] sm:$0xff]
        %v1569 = vld [vmem:[%s1181 + $0x48] sm:$0xff]
        %v1570 = vld [vmem:[%s1181 + $0x50] sm:$0xff]
        %v1571 = vld [vmem:[%s1181 + $0x58] sm:$0xff]
        %v1572 = vld [vmem:[%s1181 + $0x60] sm:$0xff]
        %v1573 = vld [vmem:[%s1181 + $0x68] sm:$0xff]
        %v1574 = vld [vmem:[%s1181 + $0x70] sm:$0xff]
        %v1575 = vld [vmem:[%s1181 + $0x78] sm:$0xff]
        %v1576 = vld [vmem:[%s1181 + $0x80] sm:$0xff]
        %v1577 = vld [vmem:[%s1181 + $0x88] sm:$0xff]
        %v1578 = vld [vmem:[%s1181 + $0x90] sm:$0xff]
        %v1579 = vld [vmem:[%s1181 + $0x98] sm:$0xff]
        %v1580 = vld [vmem:[%s1181 + $0xa0] sm:$0xff]
        %v1581 = vld [vmem:[%s1181 + $0xa8] sm:$0xff]
        %v1582 = vld [vmem:[%s1181 + $0xb0] sm:$0xff]
        %v1583 = vld [vmem:[%s1181 + $0xb8] sm:$0xff]
        %v1584 = vld [vmem:[%s1181 + $0xc0] sm:$0xff]
        %v1585 = vld [vmem:[%s1181 + $0xc8] sm:$0xff]
        %v1586 = vld [vmem:[%s1181 + $0xd0] sm:$0xff]
        %v1587 = vld [vmem:[%s1181 + $0xd8] sm:$0xff]
        %v1588 = vld [vmem:[%s1181 + $0xe0] sm:$0xff]
        %v1589 = vld [vmem:[%s1181 + $0xe8] sm:$0xff]
        %v1590 = vld [vmem:[%s1181 + $0xf0] sm:$0xff]
        %v1591 = vld [vmem:[%s1181 + $0xf8] sm:$0xff]
        %v1592 = vld [vmem:[%s1181 + $0x100] sm:$0xff]
        %v1593 = vld [vmem:[%s1181 + $0x108] sm:$0xff]
        %v1594 = vld [vmem:[%s1181 + $0x110] sm:$0xff]
        %v1595 = vld [vmem:[%s1181 + $0x118] sm:$0xff]
        %v1598 = vunpack.c.l.b16 %v1558
        %v1599 = vunpack.c.h.b16 %v1558
        %v1600 = vunpack.c.l.b16 %v1559
        %v1601 = vunpack.c.h.b16 %v1559
        %v1602 = vpack.c.b16 %v1600, %v1598
        %v1603 = vpack.c.b16 %v1601, %v1599
        %1604 = vrot.lane.b32.xlu0 %v1602, 112
        %v1605 = vpop.permute.xlu0 %1604
        %1606 = vrot.lane.b32.xlu0 %v1603, 112
        %v1607 = vpop.permute.xlu0 %1606
        %vm1608 = vcmask 916480
        %v1609 = vsel %vm1608, %v1605, %v1607
        %v1647 = vunpack.c.l.b16 %v1560
        %v1648 = vunpack.c.h.b16 %v1560
        %v1649 = vunpack.c.l.b16 %v1561
        %v1650 = vunpack.c.h.b16 %v1561
        %v1651 = vunpack.c.l.b16 %v1562
        %v1652 = vunpack.c.h.b16 %v1562
        %v1653 = vunpack.c.l.b16 %v1563
        %v1654 = vunpack.c.h.b16 %v1563
        %v1655 = vunpack.c.l.b16 %v1564
        %v1656 = vunpack.c.h.b16 %v1564
        %v1657 = vunpack.c.l.b16 %v1565
        %v1658 = vunpack.c.h.b16 %v1565
        %v1659 = vunpack.c.l.b16 %v1566
        %v1660 = vunpack.c.h.b16 %v1566
        %v1661 = vunpack.c.l.b16 %v1567
        %v1662 = vunpack.c.h.b16 %v1567
        %v1663 = vunpack.c.l.b16 %v1568
        %v1664 = vunpack.c.h.b16 %v1568
        %v1665 = vunpack.c.l.b16 %v1569
        %v1666 = vunpack.c.h.b16 %v1569
        %v1667 = vunpack.c.l.b16 %v1570
        %v1668 = vunpack.c.h.b16 %v1570
        %v1669 = vunpack.c.l.b16 %v1571
        %v1670 = vunpack.c.h.b16 %v1571
        %v1671 = vunpack.c.l.b16 %v1572
        %v1672 = vunpack.c.h.b16 %v1572
        %v1673 = vunpack.c.l.b16 %v1573
        %v1674 = vunpack.c.h.b16 %v1573
        %v1675 = vunpack.c.l.b16 %v1574
        %v1676 = vunpack.c.h.b16 %v1574
        %v1677 = vunpack.c.l.b16 %v1575
        %v1678 = vunpack.c.h.b16 %v1575
        %v1679 = vunpack.c.l.b16 %v1576
        %v1680 = vunpack.c.h.b16 %v1576
        %v1681 = vunpack.c.l.b16 %v1577
        %v1682 = vunpack.c.h.b16 %v1577
        %v1683 = vunpack.c.l.b16 %v1578
        %v1684 = vunpack.c.h.b16 %v1578
        %v1685 = vunpack.c.l.b16 %v1579
        %v1686 = vunpack.c.h.b16 %v1579
        %v1687 = vunpack.c.l.b16 %v1580
        %v1688 = vunpack.c.h.b16 %v1580
        %v1689 = vunpack.c.l.b16 %v1581
        %v1690 = vunpack.c.h.b16 %v1581
        %v1691 = vunpack.c.l.b16 %v1582
        %v1692 = vunpack.c.h.b16 %v1582
        %v1693 = vunpack.c.l.b16 %v1583
        %v1694 = vunpack.c.h.b16 %v1583
        %v1695 = vunpack.c.l.b16 %v1584
        %v1696 = vunpack.c.h.b16 %v1584
        %v1697 = vunpack.c.l.b16 %v1585
        %v1698 = vunpack.c.h.b16 %v1585
        %v1699 = vunpack.c.l.b16 %v1586
        %v1700 = vunpack.c.h.b16 %v1586
        %v1701 = vunpack.c.l.b16 %v1587
        %v1702 = vunpack.c.h.b16 %v1587
        %v1703 = vunpack.c.l.b16 %v1588
        %v1704 = vunpack.c.h.b16 %v1588
        %v1705 = vunpack.c.l.b16 %v1589
        %v1706 = vunpack.c.h.b16 %v1589
        %v1707 = vunpack.c.l.b16 %v1590
        %v1708 = vunpack.c.h.b16 %v1590
        %v1709 = vunpack.c.l.b16 %v1591
        %v1710 = vunpack.c.h.b16 %v1591
        %v1711 = vunpack.c.l.b16 %v1592
        %v1712 = vunpack.c.h.b16 %v1592
        %v1713 = vunpack.c.l.b16 %v1593
        %v1714 = vunpack.c.h.b16 %v1593
        %v1715 = vunpack.c.l.b16 %v1594
        %v1716 = vunpack.c.h.b16 %v1594
        %v1717 = vunpack.c.l.b16 %v1595
        %v1718 = vunpack.c.h.b16 %v1595
        %v1719 = vpack.c.b16 %v1651, %v1647
        %v1720 = vpack.c.b16 %v1652, %v1648
        %v1721 = vpack.c.b16 %v1653, %v1649
        %v1722 = vpack.c.b16 %v1654, %v1650
        %v1723 = vpack.c.b16 %v1659, %v1655
        %v1724 = vpack.c.b16 %v1660, %v1656
        %v1725 = vpack.c.b16 %v1661, %v1657
        %v1726 = vpack.c.b16 %v1662, %v1658
        %v1727 = vpack.c.b16 %v1667, %v1663
        %v1728 = vpack.c.b16 %v1668, %v1664
        %v1729 = vpack.c.b16 %v1669, %v1665
        %v1730 = vpack.c.b16 %v1670, %v1666
        %v1731 = vpack.c.b16 %v1675, %v1671
        %v1732 = vpack.c.b16 %v1676, %v1672
        %v1733 = vpack.c.b16 %v1677, %v1673
        %v1734 = vpack.c.b16 %v1678, %v1674
        %v1735 = vpack.c.b16 %v1683, %v1679
        %v1736 = vpack.c.b16 %v1684, %v1680
        %v1737 = vpack.c.b16 %v1685, %v1681
        %v1738 = vpack.c.b16 %v1686, %v1682
        %v1739 = vpack.c.b16 %v1691, %v1687
        %v1740 = vpack.c.b16 %v1692, %v1688
        %v1741 = vpack.c.b16 %v1693, %v1689
        %v1742 = vpack.c.b16 %v1694, %v1690
        %v1743 = vpack.c.b16 %v1699, %v1695
        %v1744 = vpack.c.b16 %v1700, %v1696
        %v1745 = vpack.c.b16 %v1701, %v1697
        %v1746 = vpack.c.b16 %v1702, %v1698
        %v1747 = vpack.c.b16 %v1707, %v1703
        %v1748 = vpack.c.b16 %v1708, %v1704
        %v1749 = vpack.c.b16 %v1709, %v1705
        %v1750 = vpack.c.b16 %v1710, %v1706
        %v1751 = vpack.c.b16 %v1715, %v1711
        %v1752 = vpack.c.b16 %v1716, %v1712
        %v1753 = vpack.c.b16 %v1717, %v1713
        %v1754 = vpack.c.b16 %v1718, %v1714
        %v1792 = vsel %vm445, %v1607, 0
        %1794 = vmatpush.bf16.msra.mxu0 %v1747
        %1795 = vmatpush.bf16.msra.mxu0 %v1743
        %1796 = vmatpush.bf16.msra.mxu0 %v1739
        %1797 = vmatpush.bf16.msra.mxu0 %v1735
        %1798 = vmatpush.bf16.msra.mxu0 %v1731
        %1799 = vmatpush.bf16.msra.mxu0 %v1727
        %1800 = vmatpush.bf16.msra.mxu0 %v1723
        %1801 = vmatpush.bf16.msra.mxu0 %v1719
        %1802 = vmatmul.bf16.gmra.mxu0 %v1609
        %v1803 = vpop.f32.mrf.mxu0
        %v1804 = vadd.f32 0.0, %v1803
        %v1805 = vpop.f32.mrf.mxu0
        %v1806 = vadd.f32 0.0, %v1805
        %1807 = vdwg.mxu0
        %1808 = vmatpush.bf16.msra.mxu0 0
        %1809 = vmatpush.bf16.msra.mxu0 0
        %1810 = vmatpush.bf16.msra.mxu0 0
        %1811 = vmatpush.bf16.msra.mxu0 0
        %1812 = vmatpush.bf16.msra.mxu0 0
        %1813 = vmatpush.bf16.msra.mxu0 0
        %1814 = vmatpush.bf16.msra.mxu0 0
        %1815 = vmatpush.bf16.msra.mxu0 %v1751
        %1816 = vmatmul.bf16.gmra.mxu0 %v1792
        %v1817 = vpop.f32.mrf.mxu0
        %v1818 = vadd.f32 %v1804, %v1817
        %v1819 = vpop.f32.mrf.mxu0
        %v1820 = vadd.f32 %v1806, %v1819
        %1821 = vdwg.mxu0
        %1822 = vmatpush.bf16.msra.mxu0 %v1748
        %1823 = vmatpush.bf16.msra.mxu0 %v1744
        %1824 = vmatpush.bf16.msra.mxu0 %v1740
        %1825 = vmatpush.bf16.msra.mxu0 %v1736
        %1826 = vmatpush.bf16.msra.mxu0 %v1732
        %1827 = vmatpush.bf16.msra.mxu0 %v1728
        %1828 = vmatpush.bf16.msra.mxu0 %v1724
        %1829 = vmatpush.bf16.msra.mxu0 %v1720
        %1830 = vmatmul.bf16.gmra.mxu0 %v1609
        %v1831 = vpop.f32.mrf.mxu0
        %v1832 = vadd.f32 0.0, %v1831
        %v1833 = vpop.f32.mrf.mxu0
        %v1834 = vadd.f32 0.0, %v1833
        %1835 = vdwg.mxu0
        %1836 = vmatpush.bf16.msra.mxu0 0
        %1837 = vmatpush.bf16.msra.mxu0 0
        %1838 = vmatpush.bf16.msra.mxu0 0
        %1839 = vmatpush.bf16.msra.mxu0 0
        %1840 = vmatpush.bf16.msra.mxu0 0
        %1841 = vmatpush.bf16.msra.mxu0 0
        %1842 = vmatpush.bf16.msra.mxu0 0
        %1843 = vmatpush.bf16.msra.mxu0 %v1752
        %1844 = vmatmul.bf16.gmra.mxu0 %v1792
        %v1845 = vpop.f32.mrf.mxu0
        %v1846 = vadd.f32 %v1832, %v1845
        %v1847 = vpop.f32.mrf.mxu0
        %v1848 = vadd.f32 %v1834, %v1847
        %1849 = vdwg.mxu0
        %1850 = vmatpush.bf16.msra.mxu0 %v1749
        %1851 = vmatpush.bf16.msra.mxu0 %v1745
        %1852 = vmatpush.bf16.msra.mxu0 %v1741
        %1853 = vmatpush.bf16.msra.mxu0 %v1737
        %1854 = vmatpush.bf16.msra.mxu0 %v1733
        %1855 = vmatpush.bf16.msra.mxu0 %v1729
        %1856 = vmatpush.bf16.msra.mxu0 %v1725
        %1857 = vmatpush.bf16.msra.mxu0 %v1721
        %1858 = vmatmul.bf16.gmra.mxu0 %v1609
        %v1859 = vpop.f32.mrf.mxu0
        %v1860 = vadd.f32 0.0, %v1859
        %v1861 = vpop.f32.mrf.mxu0
        %v1862 = vadd.f32 0.0, %v1861
        %1863 = vdwg.mxu0
        %1864 = vmatpush.bf16.msra.mxu0 0
        %1865 = vmatpush.bf16.msra.mxu0 0
        %1866 = vmatpush.bf16.msra.mxu0 0
        %1867 = vmatpush.bf16.msra.mxu0 0
        %1868 = vmatpush.bf16.msra.mxu0 0
        %1869 = vmatpush.bf16.msra.mxu0 0
        %1870 = vmatpush.bf16.msra.mxu0 0
        %1871 = vmatpush.bf16.msra.mxu0 %v1753
        %1872 = vmatmul.bf16.gmra.mxu0 %v1792
        %v1873 = vpop.f32.mrf.mxu0
        %v1874 = vadd.f32 %v1860, %v1873
        %v1875 = vpop.f32.mrf.mxu0
        %v1876 = vadd.f32 %v1862, %v1875
        %1877 = vdwg.mxu0
        %1878 = vmatpush.bf16.msra.mxu0 %v1750
        %1879 = vmatpush.bf16.msra.mxu0 %v1746
        %1880 = vmatpush.bf16.msra.mxu0 %v1742
        %1881 = vmatpush.bf16.msra.mxu0 %v1738
        %1882 = vmatpush.bf16.msra.mxu0 %v1734
        %1883 = vmatpush.bf16.msra.mxu0 %v1730
        %1884 = vmatpush.bf16.msra.mxu0 %v1726
        %1885 = vmatpush.bf16.msra.mxu0 %v1722
        %1886 = vmatmul.bf16.gmra.mxu0 %v1609
        %v1887 = vpop.f32.mrf.mxu0
        %v1888 = vadd.f32 0.0, %v1887
        %v1889 = vpop.f32.mrf.mxu0
        %v1890 = vadd.f32 0.0, %v1889
        %1891 = vdwg.mxu0
        %1892 = vmatpush.bf16.msra.mxu0 0
        %1893 = vmatpush.bf16.msra.mxu0 0
        %1894 = vmatpush.bf16.msra.mxu0 0
        %1895 = vmatpush.bf16.msra.mxu0 0
        %1896 = vmatpush.bf16.msra.mxu0 0
        %1897 = vmatpush.bf16.msra.mxu0 0
        %1898 = vmatpush.bf16.msra.mxu0 0
        %1899 = vmatpush.bf16.msra.mxu0 %v1754
        %1900 = vmatmul.bf16.gmra.mxu0 %v1792
        %v1901 = vpop.f32.mrf.mxu0
        %v1902 = vadd.f32 %v1888, %v1901
        %v1903 = vpop.f32.mrf.mxu0
        %v1904 = vadd.f32 %v1890, %v1903
        %1905 = vdwg.mxu0
        %v1908 = vunpack.c.l.b16 %v1095
        %v1909 = vunpack.c.h.b16 %v1095
        %v1910 = vunpack.c.l.b16 %v1096
        %v1911 = vunpack.c.h.b16 %v1096
        %v1912 = vpack.c.b16 %v1910, %v1908
        %v1913 = vpack.c.b16 %v1911, %v1909
        %v1951 = vunpack.c.l.b16 %v1097
        %v1952 = vunpack.c.h.b16 %v1097
        %v1953 = vunpack.c.l.b16 %v1098
        %v1954 = vunpack.c.h.b16 %v1098
        %v1955 = vunpack.c.l.b16 %v1099
        %v1956 = vunpack.c.h.b16 %v1099
        %v1957 = vunpack.c.l.b16 %v1100
        %v1958 = vunpack.c.h.b16 %v1100
        %v1959 = vunpack.c.l.b16 %v1101
        %v1960 = vunpack.c.h.b16 %v1101
        %v1961 = vunpack.c.l.b16 %v1102
        %v1962 = vunpack.c.h.b16 %v1102
        %v1963 = vunpack.c.l.b16 %v1103
        %v1964 = vunpack.c.h.b16 %v1103
        %v1965 = vunpack.c.l.b16 %v1104
        %v1966 = vunpack.c.h.b16 %v1104
        %v1967 = vunpack.c.l.b16 %v1105
        %v1968 = vunpack.c.h.b16 %v1105
        %v1969 = vunpack.c.l.b16 %v1106
        %v1970 = vunpack.c.h.b16 %v1106
        %v1971 = vunpack.c.l.b16 %v1107
        %v1972 = vunpack.c.h.b16 %v1107
        %v1973 = vunpack.c.l.b16 %v1108
        %v1974 = vunpack.c.h.b16 %v1108
        %v1975 = vunpack.c.l.b16 %v1109
        %v1976 = vunpack.c.h.b16 %v1109
        %v1977 = vunpack.c.l.b16 %v1110
        %v1978 = vunpack.c.h.b16 %v1110
        %v1979 = vunpack.c.l.b16 %v1111
        %v1980 = vunpack.c.h.b16 %v1111
        %v1981 = vunpack.c.l.b16 %v1112
        %v1982 = vunpack.c.h.b16 %v1112
        %v1983 = vunpack.c.l.b16 %v1113
        %v1984 = vunpack.c.h.b16 %v1113
        %v1985 = vunpack.c.l.b16 %v1114
        %v1986 = vunpack.c.h.b16 %v1114
        %v1987 = vunpack.c.l.b16 %v1115
        %v1988 = vunpack.c.h.b16 %v1115
        %v1989 = vunpack.c.l.b16 %v1116
        %v1990 = vunpack.c.h.b16 %v1116
        %v1991 = vunpack.c.l.b16 %v1117
        %v1992 = vunpack.c.h.b16 %v1117
        %v1993 = vunpack.c.l.b16 %v1118
        %v1994 = vunpack.c.h.b16 %v1118
        %v1995 = vunpack.c.l.b16 %v1119
        %v1996 = vunpack.c.h.b16 %v1119
        %v1997 = vunpack.c.l.b16 %v1120
        %v1998 = vunpack.c.h.b16 %v1120
        %v1999 = vunpack.c.l.b16 %v1121
        %v2000 = vunpack.c.h.b16 %v1121
        %v2001 = vunpack.c.l.b16 %v1122
        %v2002 = vunpack.c.h.b16 %v1122
        %v2003 = vunpack.c.l.b16 %v1123
        %v2004 = vunpack.c.h.b16 %v1123
        %v2005 = vunpack.c.l.b16 %v1124
        %v2006 = vunpack.c.h.b16 %v1124
        %v2007 = vunpack.c.l.b16 %v1125
        %v2008 = vunpack.c.h.b16 %v1125
        %v2009 = vunpack.c.l.b16 %v1126
        %v2010 = vunpack.c.h.b16 %v1126
        %v2011 = vunpack.c.l.b16 %v1127
        %v2012 = vunpack.c.h.b16 %v1127
        %v2013 = vunpack.c.l.b16 %v1128
        %v2014 = vunpack.c.h.b16 %v1128
        %v2015 = vunpack.c.l.b16 %v1129
        %v2016 = vunpack.c.h.b16 %v1129
        %v2017 = vunpack.c.l.b16 %v1130
        %v2018 = vunpack.c.h.b16 %v1130
        %v2019 = vunpack.c.l.b16 %v1131
        %v2020 = vunpack.c.h.b16 %v1131
        %v2021 = vunpack.c.l.b16 %v1132
        %v2022 = vunpack.c.h.b16 %v1132
        %v2023 = vpack.c.b16 %v1955, %v1951
        %v2024 = vpack.c.b16 %v1956, %v1952
        %v2025 = vpack.c.b16 %v1957, %v1953
        %v2026 = vpack.c.b16 %v1958, %v1954
        %v2027 = vpack.c.b16 %v1963, %v1959
        %v2028 = vpack.c.b16 %v1964, %v1960
        %v2029 = vpack.c.b16 %v1965, %v1961
        %v2030 = vpack.c.b16 %v1966, %v1962
        %v2031 = vpack.c.b16 %v1971, %v1967
        %v2032 = vpack.c.b16 %v1972, %v1968
        %v2033 = vpack.c.b16 %v1973, %v1969
        %v2034 = vpack.c.b16 %v1974, %v1970
        %v2035 = vpack.c.b16 %v1979, %v1975
        %v2036 = vpack.c.b16 %v1980, %v1976
        %v2037 = vpack.c.b16 %v1981, %v1977
        %v2038 = vpack.c.b16 %v1982, %v1978
        %v2039 = vpack.c.b16 %v1987, %v1983
        %v2040 = vpack.c.b16 %v1988, %v1984
        %v2041 = vpack.c.b16 %v1989, %v1985
        %v2042 = vpack.c.b16 %v1990, %v1986
        %v2043 = vpack.c.b16 %v1995, %v1991
        %v2044 = vpack.c.b16 %v1996, %v1992
        %v2045 = vpack.c.b16 %v1997, %v1993
        %v2046 = vpack.c.b16 %v1998, %v1994
        %v2047 = vpack.c.b16 %v2003, %v1999
        %v2048 = vpack.c.b16 %v2004, %v2000
        %v2049 = vpack.c.b16 %v2005, %v2001
        %v2050 = vpack.c.b16 %v2006, %v2002
        %v2051 = vpack.c.b16 %v2011, %v2007
        %v2052 = vpack.c.b16 %v2012, %v2008
        %v2053 = vpack.c.b16 %v2013, %v2009
        %v2054 = vpack.c.b16 %v2014, %v2010
        %v2055 = vpack.c.b16 %v2019, %v2015
        %v2056 = vpack.c.b16 %v2020, %v2016
        %v2057 = vpack.c.b16 %v2021, %v2017
        %v2058 = vpack.c.b16 %v2022, %v2018
        %v2096 = vsel %vm445, %v1913, 0
        %2098 = vmatpush.bf16.msra.mxu0 %v2051
        %2099 = vmatpush.bf16.msra.mxu0 %v2047
        %2100 = vmatpush.bf16.msra.mxu0 %v2043
        %2101 = vmatpush.bf16.msra.mxu0 %v2039
        %2102 = vmatpush.bf16.msra.mxu0 %v2035
        %2103 = vmatpush.bf16.msra.mxu0 %v2031
        %2104 = vmatpush.bf16.msra.mxu0 %v2027
        %2105 = vmatpush.bf16.msra.mxu0 %v2023
        %2106 = vmatmul.bf16.gmra.mxu0 %v1912
        %v2107 = vpop.f32.mrf.mxu0
        %v2108 = vadd.f32 %v1818, %v2107
        %v2109 = vpop.f32.mrf.mxu0
        %v2110 = vadd.f32 %v1820, %v2109
        %2111 = vdwg.mxu0
        %2112 = vmatpush.bf16.msra.mxu0 0
        %2113 = vmatpush.bf16.msra.mxu0 0
        %2114 = vmatpush.bf16.msra.mxu0 0
        %2115 = vmatpush.bf16.msra.mxu0 0
        %2116 = vmatpush.bf16.msra.mxu0 0
        %2117 = vmatpush.bf16.msra.mxu0 0
        %2118 = vmatpush.bf16.msra.mxu0 0
        %2119 = vmatpush.bf16.msra.mxu0 %v2055
        %2120 = vmatmul.bf16.gmra.mxu0 %v2096
        %v2121 = vpop.f32.mrf.mxu0
        %v2122 = vadd.f32 %v2108, %v2121
        %v2123 = vpop.f32.mrf.mxu0
        %v2124 = vadd.f32 %v2110, %v2123
        %2125 = vdwg.mxu0
        %2126 = vmatpush.bf16.msra.mxu0 %v2052
        %2127 = vmatpush.bf16.msra.mxu0 %v2048
        %2128 = vmatpush.bf16.msra.mxu0 %v2044
        %2129 = vmatpush.bf16.msra.mxu0 %v2040
        %2130 = vmatpush.bf16.msra.mxu0 %v2036
        %2131 = vmatpush.bf16.msra.mxu0 %v2032
        %2132 = vmatpush.bf16.msra.mxu0 %v2028
        %2133 = vmatpush.bf16.msra.mxu0 %v2024
        %2134 = vmatmul.bf16.gmra.mxu0 %v1912
        %v2135 = vpop.f32.mrf.mxu0
        %v2136 = vadd.f32 %v1846, %v2135
        %v2137 = vpop.f32.mrf.mxu0
        %v2138 = vadd.f32 %v1848, %v2137
        %2139 = vdwg.mxu0
        %2140 = vmatpush.bf16.msra.mxu0 0
        %2141 = vmatpush.bf16.msra.mxu0 0
        %2142 = vmatpush.bf16.msra.mxu0 0
        %2143 = vmatpush.bf16.msra.mxu0 0
        %2144 = vmatpush.bf16.msra.mxu0 0
        %2145 = vmatpush.bf16.msra.mxu0 0
        %2146 = vmatpush.bf16.msra.mxu0 0
        %2147 = vmatpush.bf16.msra.mxu0 %v2056
        %2148 = vmatmul.bf16.gmra.mxu0 %v2096
        %v2149 = vpop.f32.mrf.mxu0
        %v2150 = vadd.f32 %v2136, %v2149
        %v2151 = vpop.f32.mrf.mxu0
        %v2152 = vadd.f32 %v2138, %v2151
        %2153 = vdwg.mxu0
        %2154 = vmatpush.bf16.msra.mxu0 %v2053
        %2155 = vmatpush.bf16.msra.mxu0 %v2049
        %2156 = vmatpush.bf16.msra.mxu0 %v2045
        %2157 = vmatpush.bf16.msra.mxu0 %v2041
        %2158 = vmatpush.bf16.msra.mxu0 %v2037
        %2159 = vmatpush.bf16.msra.mxu0 %v2033
        %2160 = vmatpush.bf16.msra.mxu0 %v2029
        %2161 = vmatpush.bf16.msra.mxu0 %v2025
        %2162 = vmatmul.bf16.gmra.mxu0 %v1912
        %v2163 = vpop.f32.mrf.mxu0
        %v2164 = vadd.f32 %v1874, %v2163
        %v2165 = vpop.f32.mrf.mxu0
        %v2166 = vadd.f32 %v1876, %v2165
        %2167 = vdwg.mxu0
        %2168 = vmatpush.bf16.msra.mxu0 0
        %2169 = vmatpush.bf16.msra.mxu0 0
        %2170 = vmatpush.bf16.msra.mxu0 0
        %2171 = vmatpush.bf16.msra.mxu0 0
        %2172 = vmatpush.bf16.msra.mxu0 0
        %2173 = vmatpush.bf16.msra.mxu0 0
        %2174 = vmatpush.bf16.msra.mxu0 0
        %2175 = vmatpush.bf16.msra.mxu0 %v2057
        %2176 = vmatmul.bf16.gmra.mxu0 %v2096
        %v2177 = vpop.f32.mrf.mxu0
        %v2178 = vadd.f32 %v2164, %v2177
        %v2179 = vpop.f32.mrf.mxu0
        %v2180 = vadd.f32 %v2166, %v2179
        %2181 = vdwg.mxu0
        %2182 = vmatpush.bf16.msra.mxu0 %v2054
        %2183 = vmatpush.bf16.msra.mxu0 %v2050
        %2184 = vmatpush.bf16.msra.mxu0 %v2046
        %2185 = vmatpush.bf16.msra.mxu0 %v2042
        %2186 = vmatpush.bf16.msra.mxu0 %v2038
        %2187 = vmatpush.bf16.msra.mxu0 %v2034
        %2188 = vmatpush.bf16.msra.mxu0 %v2030
        %2189 = vmatpush.bf16.msra.mxu0 %v2026
        %2190 = vmatmul.bf16.gmra.mxu0 %v1912
        %v2191 = vpop.f32.mrf.mxu0
        %v2192 = vadd.f32 %v1902, %v2191
        %v2193 = vpop.f32.mrf.mxu0
        %v2194 = vadd.f32 %v1904, %v2193
        %2195 = vdwg.mxu0
        %2196 = vmatpush.bf16.msra.mxu0 0
        %2197 = vmatpush.bf16.msra.mxu0 0
        %2198 = vmatpush.bf16.msra.mxu0 0
        %2199 = vmatpush.bf16.msra.mxu0 0
        %2200 = vmatpush.bf16.msra.mxu0 0
        %2201 = vmatpush.bf16.msra.mxu0 0
        %2202 = vmatpush.bf16.msra.mxu0 0
        %2203 = vmatpush.bf16.msra.mxu0 %v2058
        %2204 = vmatmul.bf16.gmra.mxu0 %v2096
        %v2205 = vpop.f32.mrf.mxu0
        %v2206 = vadd.f32 %v2192, %v2205
        %v2207 = vpop.f32.mrf.mxu0
        %v2208 = vadd.f32 %v2194, %v2207
        %2209 = vdwg.mxu0
        %s2210 = scalar_lea.vmem [#allocation6], 66
        %v2211 = vld [vmem:[%s2210] ss:$8 sm:$0xf]
        %v2213 = vperm.slane %v2211, 0
        %v2214 = vperm.slane %v2211, 1
        %v2215 = vperm.slane %v2211, 2
        %v2216 = vperm.slane %v2211, 3
        %v2221 = vmul.f32 %v649, %v2213
        %v2222 = vmul.f32 %v647, %v2214
        %v2223 = vmul.f32 %v645, %v2215
        %v2224 = vmul.f32 %v651, %v2216
        %v2225 = vmul.f32 %v650, %v2213
        %v2226 = vmul.f32 %v648, %v2214
        %v2227 = vmul.f32 %v646, %v2215
        %v2228 = vmul.f32 %v652, %v2216
        %v2229 = vpack.c.bf16 %v2222, %v2221
        %v2230 = vpack.c.bf16 %v2224, %v2223
        %v2231 = vpack.c.bf16 %v2226, %v2225
        %v2232 = vpack.c.bf16 %v2228, %v2227
        %2233 = vst [vmem:[#allocation2] sm:$0xff] %v2229
        %2234 = vst [vmem:[#allocation2 + $0x8] sm:$0xff] %v2230
        %2235 = vst [vmem:[#allocation2 + $0x10] sm:$0xff] %v2231
        %2236 = vst [vmem:[#allocation2 + $0x18] sm:$0xff] %v2232
        %s2237 = scalar_lea.vmem [#allocation6], 67
        %v2238 = vld [vmem:[%s2237] ss:$8 sm:$0xf]
        %v2240 = vperm.slane %v2238, 0
        %v2241 = vperm.slane %v2238, 1
        %v2242 = vperm.slane %v2238, 2
        %v2243 = vperm.slane %v2238, 3
        %v2248 = vmul.f32 %v700, %v2240
        %v2249 = vmul.f32 %v698, %v2241
        %v2250 = vmul.f32 %v696, %v2242
        %v2251 = vmul.f32 %v702, %v2243
        %v2252 = vmul.f32 %v701, %v2240
        %v2253 = vmul.f32 %v699, %v2241
        %v2254 = vmul.f32 %v697, %v2242
        %v2255 = vmul.f32 %v703, %v2243
        %v2256 = vpack.c.bf16 %v2249, %v2248
        %v2257 = vpack.c.bf16 %v2251, %v2250
        %v2258 = vpack.c.bf16 %v2253, %v2252
        %v2259 = vpack.c.bf16 %v2255, %v2254
        %2260 = vst [vmem:[#allocation2 + $0x20] sm:$0xff] %v2256
        %2261 = vst [vmem:[#allocation2 + $0x28] sm:$0xff] %v2257
        %2262 = vst [vmem:[#allocation2 + $0x30] sm:$0xff] %v2258
        %2263 = vst [vmem:[#allocation2 + $0x38] sm:$0xff] %v2259
        %s2264 = scalar_lea.vmem [#allocation6], 68
        %v2265 = vld [vmem:[%s2264] ss:$8 sm:$0xf]
        %v2267 = vperm.slane %v2265, 0
        %v2268 = vperm.slane %v2265, 1
        %v2269 = vperm.slane %v2265, 2
        %v2270 = vperm.slane %v2265, 3
        %v2275 = vmul.f32 %v752, %v2267
        %v2276 = vmul.f32 %v750, %v2268
        %v2277 = vmul.f32 %v748, %v2269
        %v2278 = vmul.f32 %v754, %v2270
        %v2279 = vmul.f32 %v753, %v2267
        %v2280 = vmul.f32 %v751, %v2268
        %v2281 = vmul.f32 %v749, %v2269
        %v2282 = vmul.f32 %v755, %v2270
        %v2283 = vpack.c.bf16 %v2276, %v2275
        %v2284 = vpack.c.bf16 %v2278, %v2277
        %v2285 = vpack.c.bf16 %v2280, %v2279
        %v2286 = vpack.c.bf16 %v2282, %v2281
        %2287 = vst [vmem:[#allocation2 + $0x40] sm:$0xff] %v2283
        %2288 = vst [vmem:[#allocation2 + $0x48] sm:$0xff] %v2284
        %2289 = vst [vmem:[#allocation2 + $0x50] sm:$0xff] %v2285
        %2290 = vst [vmem:[#allocation2 + $0x58] sm:$0xff] %v2286
        %s2291 = scalar_lea.vmem [#allocation6], 69
        %v2292 = vld [vmem:[%s2291] ss:$8 sm:$0xf]
        %v2294 = vperm.slane %v2292, 0
        %v2295 = vperm.slane %v2292, 1
        %v2296 = vperm.slane %v2292, 2
        %v2297 = vperm.slane %v2292, 3
        %v2302 = vmul.f32 %v804, %v2294
        %v2303 = vmul.f32 %v802, %v2295
        %v2304 = vmul.f32 %v800, %v2296
        %v2305 = vmul.f32 %v806, %v2297
        %v2306 = vmul.f32 %v805, %v2294
        %v2307 = vmul.f32 %v803, %v2295
        %v2308 = vmul.f32 %v801, %v2296
        %v2309 = vmul.f32 %v807, %v2297
        %v2310 = vpack.c.bf16 %v2303, %v2302
        %v2311 = vpack.c.bf16 %v2305, %v2304
        %v2312 = vpack.c.bf16 %v2307, %v2306
        %v2313 = vpack.c.bf16 %v2309, %v2308
        %2314 = vst [vmem:[#allocation2 + $0x60] sm:$0xff] %v2310
        %2315 = vst [vmem:[#allocation2 + $0x68] sm:$0xff] %v2311
        %2316 = vst [vmem:[#allocation2 + $0x70] sm:$0xff] %v2312
        %2317 = vst [vmem:[#allocation2 + $0x78] sm:$0xff] %v2313
        %s2318 = scalar_lea.vmem [#allocation6], 70
        %v2319 = vld [vmem:[%s2318] ss:$8 sm:$0xf]
        %v2321 = vperm.slane %v2319, 0
        %v2322 = vperm.slane %v2319, 1
        %v2323 = vperm.slane %v2319, 2
        %v2324 = vperm.slane %v2319, 3
        %v2329 = vmul.f32 %v856, %v2321
        %v2330 = vmul.f32 %v854, %v2322
        %v2331 = vmul.f32 %v852, %v2323
        %v2332 = vmul.f32 %v858, %v2324
        %v2333 = vmul.f32 %v857, %v2321
        %v2334 = vmul.f32 %v855, %v2322
        %v2335 = vmul.f32 %v853, %v2323
        %v2336 = vmul.f32 %v859, %v2324
        %v2337 = vpack.c.bf16 %v2330, %v2329
        %v2338 = vpack.c.bf16 %v2332, %v2331
        %v2339 = vpack.c.bf16 %v2334, %v2333
        %v2340 = vpack.c.bf16 %v2336, %v2335
        %2341 = vst [vmem:[#allocation2 + $0x80] sm:$0xff] %v2337
        %2342 = vst [vmem:[#allocation2 + $0x88] sm:$0xff] %v2338
        %2343 = vst [vmem:[#allocation2 + $0x90] sm:$0xff] %v2339
        %2344 = vst [vmem:[#allocation2 + $0x98] sm:$0xff] %v2340
        %s2345 = scalar_lea.vmem [#allocation6], 71
        %v2346 = vld [vmem:[%s2345] ss:$8 sm:$0xf]
        %v2348 = vperm.slane %v2346, 0
        %v2349 = vperm.slane %v2346, 1
        %v2350 = vperm.slane %v2346, 2
        %v2351 = vperm.slane %v2346, 3
        %v2356 = vmul.f32 %v908, %v2348
        %v2357 = vmul.f32 %v906, %v2349
        %v2358 = vmul.f32 %v904, %v2350
        %v2359 = vmul.f32 %v910, %v2351
        %v2360 = vmul.f32 %v909, %v2348
        %v2361 = vmul.f32 %v907, %v2349
        %v2362 = vmul.f32 %v905, %v2350
        %v2363 = vmul.f32 %v911, %v2351
        %v2364 = vpack.c.bf16 %v2357, %v2356
        %v2365 = vpack.c.bf16 %v2359, %v2358
        %v2366 = vpack.c.bf16 %v2361, %v2360
        %v2367 = vpack.c.bf16 %v2363, %v2362
        %2368 = vst [vmem:[#allocation2 + $0xa0] sm:$0xff] %v2364
        %2369 = vst [vmem:[#allocation2 + $0xa8] sm:$0xff] %v2365
        %2370 = vst [vmem:[#allocation2 + $0xb0] sm:$0xff] %v2366
        %2371 = vst [vmem:[#allocation2 + $0xb8] sm:$0xff] %v2367
        %s2372 = scalar_lea.vmem [#allocation6], 96
        %v2373 = vld [vmem:[%s2372] ss:$8 sm:$0xf]
        %v2375 = vperm.slane %v2373, 0
        %v2376 = vperm.slane %v2373, 1
        %v2377 = vperm.slane %v2373, 2
        %v2378 = vperm.slane %v2373, 3
        %v2383 = vmul.f32 %v960, %v2375
        %v2384 = vmul.f32 %v958, %v2376
        %v2385 = vmul.f32 %v956, %v2377
        %v2386 = vmul.f32 %v962, %v2378
        %v2387 = vmul.f32 %v961, %v2375
        %v2388 = vmul.f32 %v959, %v2376
        %v2389 = vmul.f32 %v957, %v2377
        %v2390 = vmul.f32 %v963, %v2378
        %v2391 = vpack.c.bf16 %v2384, %v2383
        %v2392 = vpack.c.bf16 %v2386, %v2385
        %v2393 = vpack.c.bf16 %v2388, %v2387
        %v2394 = vpack.c.bf16 %v2390, %v2389
        %2395 = vst [vmem:[#allocation2 + $0xc0] sm:$0xff] %v2391
        %2396 = vst [vmem:[#allocation2 + $0xc8] sm:$0xff] %v2392
        %2397 = vst [vmem:[#allocation2 + $0xd0] sm:$0xff] %v2393
        %2398 = vst [vmem:[#allocation2 + $0xd8] sm:$0xff] %v2394
        %s2399 = scalar_lea.vmem [#allocation6], 97
        %v2400 = vld [vmem:[%s2399] ss:$8 sm:$0xf]
        %v2402 = vperm.slane %v2400, 0
        %v2403 = vperm.slane %v2400, 1
        %v2404 = vperm.slane %v2400, 2
        %v2405 = vperm.slane %v2400, 3
        %v2410 = vmul.f32 %v1012, %v2402
        %v2411 = vmul.f32 %v1010, %v2403
        %v2412 = vmul.f32 %v1008, %v2404
        %v2413 = vmul.f32 %v1014, %v2405
        %v2414 = vmul.f32 %v1013, %v2402
        %v2415 = vmul.f32 %v1011, %v2403
        %v2416 = vmul.f32 %v1009, %v2404
        %v2417 = vmul.f32 %v1015, %v2405
        %v2418 = vpack.c.bf16 %v2411, %v2410
        %v2419 = vpack.c.bf16 %v2413, %v2412
        %v2420 = vpack.c.bf16 %v2415, %v2414
        %v2421 = vpack.c.bf16 %v2417, %v2416
        %2422 = vst [vmem:[#allocation2 + $0xe0] sm:$0xff] %v2418
        %2423 = vst [vmem:[#allocation2 + $0xe8] sm:$0xff] %v2419
        %2424 = vst [vmem:[#allocation2 + $0xf0] sm:$0xff] %v2420
        %2425 = vst [vmem:[#allocation2 + $0xf8] sm:$0xff] %v2421
        %s2426 = scalar_lea.vmem [#allocation6], 98
        %v2427 = vld [vmem:[%s2426] ss:$8 sm:$0xf]
        %v2429 = vperm.slane %v2427, 0
        %v2430 = vperm.slane %v2427, 1
        %v2431 = vperm.slane %v2427, 2
        %v2432 = vperm.slane %v2427, 3
        %v2437 = vmul.f32 %v1064, %v2429
        %v2438 = vmul.f32 %v1062, %v2430
        %v2439 = vmul.f32 %v1060, %v2431
        %v2440 = vmul.f32 %v1066, %v2432
        %v2441 = vmul.f32 %v1065, %v2429
        %v2442 = vmul.f32 %v1063, %v2430
        %v2443 = vmul.f32 %v1061, %v2431
        %v2444 = vmul.f32 %v1067, %v2432
        %v2445 = vpack.c.bf16 %v2438, %v2437
        %v2446 = vpack.c.bf16 %v2440, %v2439
        %v2447 = vpack.c.bf16 %v2442, %v2441
        %v2448 = vpack.c.bf16 %v2444, %v2443
        %2449 = vst [vmem:[#allocation2 + $0x100] sm:$0xff] %v2445
        %2450 = vst [vmem:[#allocation2 + $0x108] sm:$0xff] %v2446
        %2451 = vst [vmem:[#allocation2 + $0x110] sm:$0xff] %v2447
        %2452 = vst [vmem:[#allocation2 + $0x118] sm:$0xff] %v2448
        %v2453 = vld [vmem:[%s3 + $0x8] sm:$0xff]
        %v2454 = vld [vmem:[%s3 + $0x18] sm:$0xff]
        %v2455 = vld [vmem:[#allocation2] sm:$0xff]
        %v2456 = vld [vmem:[#allocation2 + $0x8] sm:$0xff]
        %v2457 = vld [vmem:[#allocation2 + $0x10] sm:$0xff]
        %v2458 = vld [vmem:[#allocation2 + $0x18] sm:$0xff]
        %v2459 = vld [vmem:[#allocation2 + $0x20] sm:$0xff]
        %v2460 = vld [vmem:[#allocation2 + $0x28] sm:$0xff]
        %v2461 = vld [vmem:[#allocation2 + $0x30] sm:$0xff]
        %v2462 = vld [vmem:[#allocation2 + $0x38] sm:$0xff]
        %v2463 = vld [vmem:[#allocation2 + $0x40] sm:$0xff]
        %v2464 = vld [vmem:[#allocation2 + $0x48] sm:$0xff]
        %v2465 = vld [vmem:[#allocation2 + $0x50] sm:$0xff]
        %v2466 = vld [vmem:[#allocation2 + $0x58] sm:$0xff]
        %v2467 = vld [vmem:[#allocation2 + $0x60] sm:$0xff]
        %v2468 = vld [vmem:[#allocation2 + $0x68] sm:$0xff]
        %v2469 = vld [vmem:[#allocation2 + $0x70] sm:$0xff]
        %v2470 = vld [vmem:[#allocation2 + $0x78] sm:$0xff]
        %v2471 = vld [vmem:[#allocation2 + $0x80] sm:$0xff]
        %v2472 = vld [vmem:[#allocation2 + $0x88] sm:$0xff]
        %v2473 = vld [vmem:[#allocation2 + $0x90] sm:$0xff]
        %v2474 = vld [vmem:[#allocation2 + $0x98] sm:$0xff]
        %v2475 = vld [vmem:[#allocation2 + $0xa0] sm:$0xff]
        %v2476 = vld [vmem:[#allocation2 + $0xa8] sm:$0xff]
        %v2477 = vld [vmem:[#allocation2 + $0xb0] sm:$0xff]
        %v2478 = vld [vmem:[#allocation2 + $0xb8] sm:$0xff]
        %v2479 = vld [vmem:[#allocation2 + $0xc0] sm:$0xff]
        %v2480 = vld [vmem:[#allocation2 + $0xc8] sm:$0xff]
        %v2481 = vld [vmem:[#allocation2 + $0xd0] sm:$0xff]
        %v2482 = vld [vmem:[#allocation2 + $0xd8] sm:$0xff]
        %v2483 = vld [vmem:[#allocation2 + $0xe0] sm:$0xff]
        %v2484 = vld [vmem:[#allocation2 + $0xe8] sm:$0xff]
        %v2485 = vld [vmem:[#allocation2 + $0xf0] sm:$0xff]
        %v2486 = vld [vmem:[#allocation2 + $0xf8] sm:$0xff]
        %v2487 = vld [vmem:[#allocation2 + $0x100] sm:$0xff]
        %v2488 = vld [vmem:[#allocation2 + $0x108] sm:$0xff]
        %v2489 = vld [vmem:[#allocation2 + $0x110] sm:$0xff]
        %v2490 = vld [vmem:[#allocation2 + $0x118] sm:$0xff]
        %v2493 = vunpack.c.l.b16 %v2453
        %v2494 = vunpack.c.h.b16 %v2453
        %v2495 = vunpack.c.l.b16 %v2454
        %v2496 = vunpack.c.h.b16 %v2454
        %v2497 = vpack.c.b16 %v2495, %v2493
        %v2498 = vpack.c.b16 %v2496, %v2494
        %2499 = vrot.lane.b32.xlu0 %v2497, 96
        %v2500 = vpop.permute.xlu0 %2499
        %2501 = vrot.lane.b32.xlu0 %v2498, 96
        %v2502 = vpop.permute.xlu0 %2501
        %vm2503 = vcmask 785408
        %v2504 = vsel %vm2503, %v2500, %v2502
        %v2542 = vunpack.c.l.b16 %v2455
        %v2543 = vunpack.c.h.b16 %v2455
        %v2544 = vunpack.c.l.b16 %v2456
        %v2545 = vunpack.c.h.b16 %v2456
        %v2546 = vunpack.c.l.b16 %v2457
        %v2547 = vunpack.c.h.b16 %v2457
        %v2548 = vunpack.c.l.b16 %v2458
        %v2549 = vunpack.c.h.b16 %v2458
        %v2550 = vunpack.c.l.b16 %v2459
        %v2551 = vunpack.c.h.b16 %v2459
        %v2552 = vunpack.c.l.b16 %v2460
        %v2553 = vunpack.c.h.b16 %v2460
        %v2554 = vunpack.c.l.b16 %v2461
        %v2555 = vunpack.c.h.b16 %v2461
        %v2556 = vunpack.c.l.b16 %v2462
        %v2557 = vunpack.c.h.b16 %v2462
        %v2558 = vunpack.c.l.b16 %v2463
        %v2559 = vunpack.c.h.b16 %v2463
        %v2560 = vunpack.c.l.b16 %v2464
        %v2561 = vunpack.c.h.b16 %v2464
        %v2562 = vunpack.c.l.b16 %v2465
        %v2563 = vunpack.c.h.b16 %v2465
        %v2564 = vunpack.c.l.b16 %v2466
        %v2565 = vunpack.c.h.b16 %v2466
        %v2566 = vunpack.c.l.b16 %v2467
        %v2567 = vunpack.c.h.b16 %v2467
        %v2568 = vunpack.c.l.b16 %v2468
        %v2569 = vunpack.c.h.b16 %v2468
        %v2570 = vunpack.c.l.b16 %v2469
        %v2571 = vunpack.c.h.b16 %v2469
        %v2572 = vunpack.c.l.b16 %v2470
        %v2573 = vunpack.c.h.b16 %v2470
        %v2574 = vunpack.c.l.b16 %v2471
        %v2575 = vunpack.c.h.b16 %v2471
        %v2576 = vunpack.c.l.b16 %v2472
        %v2577 = vunpack.c.h.b16 %v2472
        %v2578 = vunpack.c.l.b16 %v2473
        %v2579 = vunpack.c.h.b16 %v2473
        %v2580 = vunpack.c.l.b16 %v2474
        %v2581 = vunpack.c.h.b16 %v2474
        %v2582 = vunpack.c.l.b16 %v2475
        %v2583 = vunpack.c.h.b16 %v2475
        %v2584 = vunpack.c.l.b16 %v2476
        %v2585 = vunpack.c.h.b16 %v2476
        %v2586 = vunpack.c.l.b16 %v2477
        %v2587 = vunpack.c.h.b16 %v2477
        %v2588 = vunpack.c.l.b16 %v2478
        %v2589 = vunpack.c.h.b16 %v2478
        %v2590 = vunpack.c.l.b16 %v2479
        %v2591 = vunpack.c.h.b16 %v2479
        %v2592 = vunpack.c.l.b16 %v2480
        %v2593 = vunpack.c.h.b16 %v2480
        %v2594 = vunpack.c.l.b16 %v2481
        %v2595 = vunpack.c.h.b16 %v2481
        %v2596 = vunpack.c.l.b16 %v2482
        %v2597 = vunpack.c.h.b16 %v2482
        %v2598 = vunpack.c.l.b16 %v2483
        %v2599 = vunpack.c.h.b16 %v2483
        %v2600 = vunpack.c.l.b16 %v2484
        %v2601 = vunpack.c.h.b16 %v2484
        %v2602 = vunpack.c.l.b16 %v2485
        %v2603 = vunpack.c.h.b16 %v2485
        %v2604 = vunpack.c.l.b16 %v2486
        %v2605 = vunpack.c.h.b16 %v2486
        %v2606 = vunpack.c.l.b16 %v2487
        %v2607 = vunpack.c.h.b16 %v2487
        %v2608 = vunpack.c.l.b16 %v2488
        %v2609 = vunpack.c.h.b16 %v2488
        %v2610 = vunpack.c.l.b16 %v2489
        %v2611 = vunpack.c.h.b16 %v2489
        %v2612 = vunpack.c.l.b16 %v2490
        %v2613 = vunpack.c.h.b16 %v2490
        %v2614 = vpack.c.b16 %v2546, %v2542
        %v2615 = vpack.c.b16 %v2547, %v2543
        %v2616 = vpack.c.b16 %v2548, %v2544
        %v2617 = vpack.c.b16 %v2549, %v2545
        %v2618 = vpack.c.b16 %v2554, %v2550
        %v2619 = vpack.c.b16 %v2555, %v2551
        %v2620 = vpack.c.b16 %v2556, %v2552
        %v2621 = vpack.c.b16 %v2557, %v2553
        %v2622 = vpack.c.b16 %v2562, %v2558
        %v2623 = vpack.c.b16 %v2563, %v2559
        %v2624 = vpack.c.b16 %v2564, %v2560
        %v2625 = vpack.c.b16 %v2565, %v2561
        %v2626 = vpack.c.b16 %v2570, %v2566
        %v2627 = vpack.c.b16 %v2571, %v2567
        %v2628 = vpack.c.b16 %v2572, %v2568
        %v2629 = vpack.c.b16 %v2573, %v2569
        %v2630 = vpack.c.b16 %v2578, %v2574
        %v2631 = vpack.c.b16 %v2579, %v2575
        %v2632 = vpack.c.b16 %v2580, %v2576
        %v2633 = vpack.c.b16 %v2581, %v2577
        %v2634 = vpack.c.b16 %v2586, %v2582
        %v2635 = vpack.c.b16 %v2587, %v2583
        %v2636 = vpack.c.b16 %v2588, %v2584
        %v2637 = vpack.c.b16 %v2589, %v2585
        %v2638 = vpack.c.b16 %v2594, %v2590
        %v2639 = vpack.c.b16 %v2595, %v2591
        %v2640 = vpack.c.b16 %v2596, %v2592
        %v2641 = vpack.c.b16 %v2597, %v2593
        %v2642 = vpack.c.b16 %v2602, %v2598
        %v2643 = vpack.c.b16 %v2603, %v2599
        %v2644 = vpack.c.b16 %v2604, %v2600
        %v2645 = vpack.c.b16 %v2605, %v2601
        %v2646 = vpack.c.b16 %v2610, %v2606
        %v2647 = vpack.c.b16 %v2611, %v2607
        %v2648 = vpack.c.b16 %v2612, %v2608
        %v2649 = vpack.c.b16 %v2613, %v2609
        %v2687 = vsel %vm445, %v2502, 0
        %2689 = vmatpush.bf16.msra.mxu0 %v2642
        %2690 = vmatpush.bf16.msra.mxu0 %v2638
        %2691 = vmatpush.bf16.msra.mxu0 %v2634
        %2692 = vmatpush.bf16.msra.mxu0 %v2630
        %2693 = vmatpush.bf16.msra.mxu0 %v2626
        %2694 = vmatpush.bf16.msra.mxu0 %v2622
        %2695 = vmatpush.bf16.msra.mxu0 %v2618
        %2696 = vmatpush.bf16.msra.mxu0 %v2614
        %2697 = vmatmul.bf16.gmra.mxu0 %v2504
        %v2698 = vpop.f32.mrf.mxu0
        %v2699 = vadd.f32 0.0, %v2698
        %v2700 = vpop.f32.mrf.mxu0
        %v2701 = vadd.f32 0.0, %v2700
        %2702 = vdwg.mxu0
        %2703 = vmatpush.bf16.msra.mxu0 0
        %2704 = vmatpush.bf16.msra.mxu0 0
        %2705 = vmatpush.bf16.msra.mxu0 0
        %2706 = vmatpush.bf16.msra.mxu0 0
        %2707 = vmatpush.bf16.msra.mxu0 0
        %2708 = vmatpush.bf16.msra.mxu0 0
        %2709 = vmatpush.bf16.msra.mxu0 0
        %2710 = vmatpush.bf16.msra.mxu0 %v2646
        %2711 = vmatmul.bf16.gmra.mxu0 %v2687
        %v2712 = vpop.f32.mrf.mxu0
        %v2713 = vadd.f32 %v2699, %v2712
        %v2714 = vpop.f32.mrf.mxu0
        %v2715 = vadd.f32 %v2701, %v2714
        %2716 = vdwg.mxu0
        %2717 = vmatpush.bf16.msra.mxu0 %v2643
        %2718 = vmatpush.bf16.msra.mxu0 %v2639
        %2719 = vmatpush.bf16.msra.mxu0 %v2635
        %2720 = vmatpush.bf16.msra.mxu0 %v2631
        %2721 = vmatpush.bf16.msra.mxu0 %v2627
        %2722 = vmatpush.bf16.msra.mxu0 %v2623
        %2723 = vmatpush.bf16.msra.mxu0 %v2619
        %2724 = vmatpush.bf16.msra.mxu0 %v2615
        %2725 = vmatmul.bf16.gmra.mxu0 %v2504
        %v2726 = vpop.f32.mrf.mxu0
        %v2727 = vadd.f32 0.0, %v2726
        %v2728 = vpop.f32.mrf.mxu0
        %v2729 = vadd.f32 0.0, %v2728
        %2730 = vdwg.mxu0
        %2731 = vmatpush.bf16.msra.mxu0 0
        %2732 = vmatpush.bf16.msra.mxu0 0
        %2733 = vmatpush.bf16.msra.mxu0 0
        %2734 = vmatpush.bf16.msra.mxu0 0
        %2735 = vmatpush.bf16.msra.mxu0 0
        %2736 = vmatpush.bf16.msra.mxu0 0
        %2737 = vmatpush.bf16.msra.mxu0 0
        %2738 = vmatpush.bf16.msra.mxu0 %v2647
        %2739 = vmatmul.bf16.gmra.mxu0 %v2687
        %v2740 = vpop.f32.mrf.mxu0
        %v2741 = vadd.f32 %v2727, %v2740
        %v2742 = vpop.f32.mrf.mxu0
        %v2743 = vadd.f32 %v2729, %v2742
        %2744 = vdwg.mxu0
        %2745 = vmatpush.bf16.msra.mxu0 %v2644
        %2746 = vmatpush.bf16.msra.mxu0 %v2640
        %2747 = vmatpush.bf16.msra.mxu0 %v2636
        %2748 = vmatpush.bf16.msra.mxu0 %v2632
        %2749 = vmatpush.bf16.msra.mxu0 %v2628
        %2750 = vmatpush.bf16.msra.mxu0 %v2624
        %2751 = vmatpush.bf16.msra.mxu0 %v2620
        %2752 = vmatpush.bf16.msra.mxu0 %v2616
        %2753 = vmatmul.bf16.gmra.mxu0 %v2504
        %v2754 = vpop.f32.mrf.mxu0
        %v2755 = vadd.f32 0.0, %v2754
        %v2756 = vpop.f32.mrf.mxu0
        %v2757 = vadd.f32 0.0, %v2756
        %2758 = vdwg.mxu0
        %2759 = vmatpush.bf16.msra.mxu0 0
        %2760 = vmatpush.bf16.msra.mxu0 0
        %2761 = vmatpush.bf16.msra.mxu0 0
        %2762 = vmatpush.bf16.msra.mxu0 0
        %2763 = vmatpush.bf16.msra.mxu0 0
        %2764 = vmatpush.bf16.msra.mxu0 0
        %2765 = vmatpush.bf16.msra.mxu0 0
        %2766 = vmatpush.bf16.msra.mxu0 %v2648
        %2767 = vmatmul.bf16.gmra.mxu0 %v2687
        %v2768 = vpop.f32.mrf.mxu0
        %v2769 = vadd.f32 %v2755, %v2768
        %v2770 = vpop.f32.mrf.mxu0
        %v2771 = vadd.f32 %v2757, %v2770
        %2772 = vdwg.mxu0
        %2773 = vmatpush.bf16.msra.mxu0 %v2645
        %2774 = vmatpush.bf16.msra.mxu0 %v2641
        %2775 = vmatpush.bf16.msra.mxu0 %v2637
        %2776 = vmatpush.bf16.msra.mxu0 %v2633
        %2777 = vmatpush.bf16.msra.mxu0 %v2629
        %2778 = vmatpush.bf16.msra.mxu0 %v2625
        %2779 = vmatpush.bf16.msra.mxu0 %v2621
        %2780 = vmatpush.bf16.msra.mxu0 %v2617
        %2781 = vmatmul.bf16.gmra.mxu0 %v2504
        %v2782 = vpop.f32.mrf.mxu0
        %v2783 = vadd.f32 0.0, %v2782
        %v2784 = vpop.f32.mrf.mxu0
        %v2785 = vadd.f32 0.0, %v2784
        %2786 = vdwg.mxu0
        %2787 = vmatpush.bf16.msra.mxu0 0
        %2788 = vmatpush.bf16.msra.mxu0 0
        %2789 = vmatpush.bf16.msra.mxu0 0
        %2790 = vmatpush.bf16.msra.mxu0 0
        %2791 = vmatpush.bf16.msra.mxu0 0
        %2792 = vmatpush.bf16.msra.mxu0 0
        %2793 = vmatpush.bf16.msra.mxu0 0
        %2794 = vmatpush.bf16.msra.mxu0 %v2649
        %2795 = vmatmul.bf16.gmra.mxu0 %v2687
        %v2796 = vpop.f32.mrf.mxu0
        %v2797 = vadd.f32 %v2783, %v2796
        %v2798 = vpop.f32.mrf.mxu0
        %v2799 = vadd.f32 %v2785, %v2798
        %2800 = vdwg.mxu0
        %v2801 = vadd.f32 %v2122, %v2713
        %v2802 = vadd.f32 %v2150, %v2741
        %v2803 = vadd.f32 %v2178, %v2769
        %v2804 = vadd.f32 %v2206, %v2797
        %v2805 = vadd.f32 %v2124, %v2715
        %v2806 = vadd.f32 %v2152, %v2743
        %v2807 = vadd.f32 %v2180, %v2771
        %v2808 = vadd.f32 %v2208, %v2799
        %v2809 = vld [vmem:[%s4] sm:$0xff]
        %v2810 = vld [vmem:[%s4 + $0x8] sm:$0xff]
        %2812 = vset.pattern.permute.xlu0 0
        %2813 = vperm.xlu0 %2812, %v2809
        %v2814 = vpop.permute.xlu0 %2813
        %2817 = vset.pattern.permute.xlu0 0
        %2818 = vperm.xlu0 %2817, %v2810
        %v2819 = vpop.permute.xlu0 %2818
        %v2821 = vadd.f32 %v2801, %v2814
        %v2822 = vadd.f32 %v2802, %v2814
        %v2823 = vadd.f32 %v2803, %v2814
        %v2824 = vadd.f32 %v2804, %v2814
        %v2825 = vadd.f32 %v2805, %v2819
        %v2826 = vadd.f32 %v2806, %v2819
        %v2827 = vadd.f32 %v2807, %v2819
        %v2828 = vadd.f32 %v2808, %v2819
        %v2829 = vadd.f32 %v2821, %v2822
        %v2830 = vadd.f32 %v2829, %v2823
        %v2831 = vadd.f32 %v2830, %v2824
        %2832 = vadd.xlane.f32.xlu0 %v2831
        %v2833 = vpop.xlane.xlu0 %2832
        %v2834 = vadd.f32 %v2825, %v2826
        %v2835 = vadd.f32 %v2834, %v2827
        %v2836 = vadd.f32 %v2835, %v2828
        %2837 = vadd.xlane.f32.xlu0 %v2836
        %v2838 = vpop.xlane.xlu0 %2837
        %v2839 = vld [vmem:[%s1] sm:$0xff]
        %v2840 = vld [vmem:[%s1 + $0x8] sm:$0xff]
        %v2842 = vsel %vm445, %v2839, 0
        %v2845 = vsel %vm445, %v2840, 0
        %2847 = vmatpush.msra.mxu0 0.0
        %2848 = vmatpush.msra.mxu0 0.0
        %2849 = vmatpush.msra.mxu0 0.0
        %2850 = vmatpush.msra.mxu0 0.0
        %2851 = vmatpush.msra.mxu0 0.0
        %2852 = vmatpush.msra.mxu0 0.0
        %2853 = vmatpush.msra.mxu0 0.0
        %2854 = vmatpush.msra.mxu0 0.0
        %2855 = vmatpush.msra.mxu0 0.0
        %2856 = vmatpush.msra.mxu0 0.0
        %2857 = vmatpush.msra.mxu0 0.0
        %2858 = vmatpush.msra.mxu0 0.0
        %2859 = vmatpush.msra.mxu0 0.0
        %2860 = vmatpush.msra.mxu0 0.0
        %2861 = vmatpush.msra.mxu0 %v2838
        %2862 = vmatpush.msra.mxu0 %v2833
        %2863 = vmatmul.f32.gmra.mxu0 %v2842
        %v2864 = vpop.f32.mrf.mxu0
        %v2865 = vadd.f32 0.0, %v2864
        %2866 = vmatmul.f32.gmra.mxu0 %v2845
        %v2867 = vpop.f32.mrf.mxu0
        %v2868 = vadd.f32 0.0, %v2867
        %2869 = vdwg.mxu0
        %v2870 = vmul.f32 %v2865, 0.0009765625
        %v2871 = vmul.f32 %v2868, 0.0009765625
        %2873 = vset.pattern.permute.xlu0 0
        %2874 = vperm.xlu0 %2873, %v2870
        %v2875 = vpop.permute.xlu0 %2874
        %2878 = vset.pattern.permute.xlu0 0
        %2879 = vperm.xlu0 %2878, %v2871
        %v2880 = vpop.permute.xlu0 %2879
        %v2882 = vsub.f32 %v2821, %v2875
        %v2883 = vsub.f32 %v2822, %v2875
        %v2884 = vsub.f32 %v2823, %v2875
        %v2885 = vsub.f32 %v2824, %v2875
        %v2886 = vsub.f32 %v2825, %v2880
        %v2887 = vsub.f32 %v2826, %v2880
        %v2888 = vsub.f32 %v2827, %v2880
        %v2889 = vsub.f32 %v2828, %v2880
        %v2890 = vmul.f32 %v2882, %v2882
        %v2891 = vmul.f32 %v2883, %v2883
        %v2892 = vmul.f32 %v2884, %v2884
        %v2893 = vmul.f32 %v2885, %v2885
        %v2894 = vmul.f32 %v2886, %v2886
        %v2895 = vmul.f32 %v2887, %v2887
        %v2896 = vmul.f32 %v2888, %v2888
        %v2897 = vmul.f32 %v2889, %v2889
        %v2898 = vadd.f32 %v2890, %v2891
        %v2899 = vadd.f32 %v2898, %v2892
        %v2900 = vadd.f32 %v2899, %v2893
        %2901 = vadd.xlane.f32.xlu0 %v2900
        %v2902 = vpop.xlane.xlu0 %2901
        %v2903 = vadd.f32 %v2894, %v2895
        %v2904 = vadd.f32 %v2903, %v2896
        %v2905 = vadd.f32 %v2904, %v2897
        %2906 = vadd.xlane.f32.xlu0 %v2905
        %v2907 = vpop.xlane.xlu0 %2906
        %2908 = vmatpush.msra.mxu0 0.0
        %2909 = vmatpush.msra.mxu0 0.0
        %2910 = vmatpush.msra.mxu0 0.0
        %2911 = vmatpush.msra.mxu0 0.0
        %2912 = vmatpush.msra.mxu0 0.0
        %2913 = vmatpush.msra.mxu0 0.0
        %2914 = vmatpush.msra.mxu0 0.0
        %2915 = vmatpush.msra.mxu0 0.0
        %2916 = vmatpush.msra.mxu0 0.0
        %2917 = vmatpush.msra.mxu0 0.0
        %2918 = vmatpush.msra.mxu0 0.0
        %2919 = vmatpush.msra.mxu0 0.0
        %2920 = vmatpush.msra.mxu0 0.0
        %2921 = vmatpush.msra.mxu0 0.0
        %2922 = vmatpush.msra.mxu0 %v2907
        %2923 = vmatpush.msra.mxu0 %v2902
        %2924 = vmatmul.f32.gmra.mxu0 %v2842
        %v2925 = vpop.f32.mrf.mxu0
        %v2926 = vadd.f32 0.0, %v2925
        %2927 = vmatmul.f32.gmra.mxu0 %v2845
        %v2928 = vpop.f32.mrf.mxu0
        %v2929 = vadd.f32 0.0, %v2928
        %2930 = vdwg.mxu0
        %v2931 = vmul.f32 %v2926, 0.0009765625
        %v2932 = vmul.f32 %v2929, 0.0009765625
        %v2933 = vadd.f32 %v2931, 1e-05
        %v2934 = vadd.f32 %v2932, 1e-05
        %v2935 = vrsqrt.pop %v2933
        %v2936 = vmul.f32 %v2935, %v2933
        %v2937 = vmul.f32 %v2936, %v2935
        %v2938 = vmul.f32 0.5, %v2937
        %v2939 = vsub.f32 1.5, %v2938
        %v2940 = vmul.f32 %v2935, %v2939
        %vm2941 = vweird.f32 %v2933
        %vm2942 = vweird.f32 %v2935
        %vm2943 = vmor %vm2941, %vm2942
        %v2944 = vsel %vm2943, %v2935, %v2940
        %v2945 = vrsqrt.pop %v2934
        %v2946 = vmul.f32 %v2945, %v2934
        %v2947 = vmul.f32 %v2946, %v2945
        %v2948 = vmul.f32 0.5, %v2947
        %v2949 = vsub.f32 1.5, %v2948
        %v2950 = vmul.f32 %v2945, %v2949
        %vm2951 = vweird.f32 %v2934
        %vm2952 = vweird.f32 %v2945
        %vm2953 = vmor %vm2951, %vm2952
        %v2954 = vsel %vm2953, %v2945, %v2950
        %2956 = vset.pattern.permute.xlu0 0
        %2957 = vperm.xlu0 %2956, %v2944
        %v2958 = vpop.permute.xlu0 %2957
        %2961 = vset.pattern.permute.xlu0 0
        %2962 = vperm.xlu0 %2961, %v2954
        %v2963 = vpop.permute.xlu0 %2962
        %v2965 = vmul.f32 %v2882, %v2958
        %v2966 = vmul.f32 %v2883, %v2958
        %v2967 = vmul.f32 %v2884, %v2958
        %v2968 = vmul.f32 %v2885, %v2958
        %v2969 = vmul.f32 %v2886, %v2963
        %v2970 = vmul.f32 %v2887, %v2963
        %v2971 = vmul.f32 %v2888, %v2963
        %v2972 = vmul.f32 %v2889, %v2963
        %v2973 = vld [vmem:[%s9] sm:$0xff]
        %v2974 = vld [vmem:[%s9 + $0x8] sm:$0xff]
        %2976 = vset.pattern.permute.xlu0 0
        %2977 = vperm.xlu0 %2976, %v2973
        %v2978 = vpop.permute.xlu0 %2977
        %2981 = vset.pattern.permute.xlu0 0
        %2982 = vperm.xlu0 %2981, %v2974
        %v2983 = vpop.permute.xlu0 %2982
        %v2985 = vmul.f32 %v2965, %v2978
        %v2986 = vmul.f32 %v2966, %v2978
        %v2987 = vmul.f32 %v2967, %v2978
        %v2988 = vmul.f32 %v2968, %v2978
        %v2989 = vmul.f32 %v2969, %v2983
        %v2990 = vmul.f32 %v2970, %v2983
        %v2991 = vmul.f32 %v2971, %v2983
        %v2992 = vmul.f32 %v2972, %v2983
        %v2993 = vld [vmem:[%s10] sm:$0xff]
        %v2994 = vld [vmem:[%s10 + $0x8] sm:$0xff]
        %2996 = vset.pattern.permute.xlu0 0
        %2997 = vperm.xlu0 %2996, %v2993
        %v2998 = vpop.permute.xlu0 %2997
        %3001 = vset.pattern.permute.xlu0 0
        %3002 = vperm.xlu0 %3001, %v2994
        %v3003 = vpop.permute.xlu0 %3002
        %v3005 = vadd.f32 %v2985, %v2998
        %v3006 = vadd.f32 %v2986, %v2998
        %v3007 = vadd.f32 %v2987, %v2998
        %v3008 = vadd.f32 %v2988, %v2998
        %v3009 = vadd.f32 %v2989, %v3003
        %v3010 = vadd.f32 %v2990, %v3003
        %v3011 = vadd.f32 %v2991, %v3003
        %v3012 = vadd.f32 %v2992, %v3003
        %v3013 = vmax.f32 %v3005, 0.0
        %v3014 = vmax.f32 %v3006, 0.0
        %v3015 = vmax.f32 %v3007, 0.0
        %v3016 = vmax.f32 %v3008, 0.0
        %v3017 = vmax.f32 %v3009, 0.0
        %v3018 = vmax.f32 %v3010, 0.0
        %v3019 = vmax.f32 %v3011, 0.0
        %v3020 = vmax.f32 %v3012, 0.0
        %3021 = vrot.lane.b32.xlu0 %v3013, 73
        %v3022 = vpop.permute.xlu0 %3021
        %3023 = vrot.lane.b32.xlu0 %v3017, 73
        %v3024 = vpop.permute.xlu0 %3023
        %3025 = vrot.lane.b32.xlu0 %v3014, 73
        %v3026 = vpop.permute.xlu0 %3025
        %3027 = vrot.lane.b32.xlu0 %v3018, 73
        %v3028 = vpop.permute.xlu0 %3027
        %3029 = vrot.lane.b32.xlu0 %v3015, 73
        %v3030 = vpop.permute.xlu0 %3029
        %3031 = vrot.lane.b32.xlu0 %v3019, 73
        %v3032 = vpop.permute.xlu0 %3031
        %3033 = vrot.lane.b32.xlu0 %v3016, 73
        %v3034 = vpop.permute.xlu0 %3033
        %3035 = vrot.lane.b32.xlu0 %v3020, 73
        %v3036 = vpop.permute.xlu0 %3035
        %v3037 = vsel %vm644, %v3030, %v3034
        %v3038 = vsel %vm644, %v3032, %v3036
        %v3039 = vsel %vm644, %v3026, %v3030
        %v3040 = vsel %vm644, %v3028, %v3032
        %v3041 = vsel %vm644, %v3022, %v3026
        %v3042 = vsel %vm644, %v3024, %v3028
        %v3043 = vsel %vm644, %v3034, %v3022
        %v3044 = vsel %vm644, %v3036, %v3024
        %v3045 = vld [vmem:[#allocation6] ss:$8 sm:$0xf]
        %v3047 = vperm.slane %v3045, 0
        %v3048 = vperm.slane %v3045, 1
        %v3049 = vperm.slane %v3045, 2
        %v3050 = vperm.slane %v3045, 3
        %v3055 = vmul.f32 %v3043, %v3047
        %v3056 = vmul.f32 %v3041, %v3048
        %v3057 = vmul.f32 %v3039, %v3049
        %v3058 = vmul.f32 %v3037, %v3050
        %v3059 = vmul.f32 %v3044, %v3047
        %v3060 = vmul.f32 %v3042, %v3048
        %v3061 = vmul.f32 %v3040, %v3049
        %v3062 = vmul.f32 %v3038, %v3050
        %v3063 = vpack.c.bf16 %v3056, %v3055
        %v3064 = vpack.c.bf16 %v3058, %v3057
        %v3065 = vpack.c.bf16 %v3060, %v3059
        %v3066 = vpack.c.bf16 %v3062, %v3061
        %3067 = vst [vmem:[#allocation2] sm:$0xff] %v3063
        %3068 = vst [vmem:[#allocation2 + $0x8] sm:$0xff] %v3064
        %3069 = vst [vmem:[#allocation2 + $0x10] sm:$0xff] %v3065
        %3070 = vst [vmem:[#allocation2 + $0x18] sm:$0xff] %v3066
        %3071 = vrot.lane.b32.xlu0 %v3013, 72
        %v3072 = vpop.permute.xlu0 %3071
        %3073 = vrot.lane.b32.xlu0 %v3017, 72
        %v3074 = vpop.permute.xlu0 %3073
        %3075 = vrot.lane.b32.xlu0 %v3014, 72
        %v3076 = vpop.permute.xlu0 %3075
        %3077 = vrot.lane.b32.xlu0 %v3018, 72
        %v3078 = vpop.permute.xlu0 %3077
        %3079 = vrot.lane.b32.xlu0 %v3015, 72
        %v3080 = vpop.permute.xlu0 %3079
        %3081 = vrot.lane.b32.xlu0 %v3019, 72
        %v3082 = vpop.permute.xlu0 %3081
        %3083 = vrot.lane.b32.xlu0 %v3016, 72
        %v3084 = vpop.permute.xlu0 %3083
        %3085 = vrot.lane.b32.xlu0 %v3020, 72
        %v3086 = vpop.permute.xlu0 %3085
        %v3087 = vsel %vm695, %v3080, %v3084
        %v3088 = vsel %vm695, %v3082, %v3086
        %v3089 = vsel %vm695, %v3076, %v3080
        %v3090 = vsel %vm695, %v3078, %v3082
        %v3091 = vsel %vm695, %v3072, %v3076
        %v3092 = vsel %vm695, %v3074, %v3078
        %v3093 = vsel %vm695, %v3084, %v3072
        %v3094 = vsel %vm695, %v3086, %v3074
        %v3095 = vld [vmem:[%s704] ss:$8 sm:$0xf]
        %v3097 = vperm.slane %v3095, 0
        %v3098 = vperm.slane %v3095, 1
        %v3099 = vperm.slane %v3095, 2
        %v3100 = vperm.slane %v3095, 3
        %v3105 = vmul.f32 %v3093, %v3097
        %v3106 = vmul.f32 %v3091, %v3098
        %v3107 = vmul.f32 %v3089, %v3099
        %v3108 = vmul.f32 %v3087, %v3100
        %v3109 = vmul.f32 %v3094, %v3097
        %v3110 = vmul.f32 %v3092, %v3098
        %v3111 = vmul.f32 %v3090, %v3099
        %v3112 = vmul.f32 %v3088, %v3100
        %v3113 = vpack.c.bf16 %v3106, %v3105
        %v3114 = vpack.c.bf16 %v3108, %v3107
        %v3115 = vpack.c.bf16 %v3110, %v3109
        %v3116 = vpack.c.bf16 %v3112, %v3111
        %3117 = vst [vmem:[#allocation2 + $0x20] sm:$0xff] %v3113
        %3118 = vst [vmem:[#allocation2 + $0x28] sm:$0xff] %v3114
        %3119 = vst [vmem:[#allocation2 + $0x30] sm:$0xff] %v3115
        %3120 = vst [vmem:[#allocation2 + $0x38] sm:$0xff] %v3116
        %3121 = vrot.lane.b32.xlu0 %v3013, 71
        %v3122 = vpop.permute.xlu0 %3121
        %3123 = vrot.lane.b32.xlu0 %v3017, 71
        %v3124 = vpop.permute.xlu0 %3123
        %3125 = vrot.lane.b32.xlu0 %v3014, 71
        %v3126 = vpop.permute.xlu0 %3125
        %3127 = vrot.lane.b32.xlu0 %v3018, 71
        %v3128 = vpop.permute.xlu0 %3127
        %3129 = vrot.lane.b32.xlu0 %v3015, 71
        %v3130 = vpop.permute.xlu0 %3129
        %3131 = vrot.lane.b32.xlu0 %v3019, 71
        %v3132 = vpop.permute.xlu0 %3131
        %3133 = vrot.lane.b32.xlu0 %v3016, 71
        %v3134 = vpop.permute.xlu0 %3133
        %3135 = vrot.lane.b32.xlu0 %v3020, 71
        %v3136 = vpop.permute.xlu0 %3135
        %v3137 = vsel %vm747, %v3130, %v3134
        %v3138 = vsel %vm747, %v3132, %v3136
        %v3139 = vsel %vm747, %v3126, %v3130
        %v3140 = vsel %vm747, %v3128, %v3132
        %v3141 = vsel %vm747, %v3122, %v3126
        %v3142 = vsel %vm747, %v3124, %v3128
        %v3143 = vsel %vm747, %v3134, %v3122
        %v3144 = vsel %vm747, %v3136, %v3124
        %v3145 = vld [vmem:[%s756] ss:$8 sm:$0xf]
        %v3147 = vperm.slane %v3145, 0
        %v3148 = vperm.slane %v3145, 1
        %v3149 = vperm.slane %v3145, 2
        %v3150 = vperm.slane %v3145, 3
        %v3155 = vmul.f32 %v3143, %v3147
        %v3156 = vmul.f32 %v3141, %v3148
        %v3157 = vmul.f32 %v3139, %v3149
        %v3158 = vmul.f32 %v3137, %v3150
        %v3159 = vmul.f32 %v3144, %v3147
        %v3160 = vmul.f32 %v3142, %v3148
        %v3161 = vmul.f32 %v3140, %v3149
        %v3162 = vmul.f32 %v3138, %v3150
        %v3163 = vpack.c.bf16 %v3156, %v3155
        %v3164 = vpack.c.bf16 %v3158, %v3157
        %v3165 = vpack.c.bf16 %v3160, %v3159
        %v3166 = vpack.c.bf16 %v3162, %v3161
        %3167 = vst [vmem:[#allocation2 + $0x40] sm:$0xff] %v3163
        %3168 = vst [vmem:[#allocation2 + $0x48] sm:$0xff] %v3164
        %3169 = vst [vmem:[#allocation2 + $0x50] sm:$0xff] %v3165
        %3170 = vst [vmem:[#allocation2 + $0x58] sm:$0xff] %v3166
        %3171 = vrot.lane.b32.xlu0 %v3013, 65
        %v3172 = vpop.permute.xlu0 %3171
        %3173 = vrot.lane.b32.xlu0 %v3017, 65
        %v3174 = vpop.permute.xlu0 %3173
        %3175 = vrot.lane.b32.xlu0 %v3014, 65
        %v3176 = vpop.permute.xlu0 %3175
        %3177 = vrot.lane.b32.xlu0 %v3018, 65
        %v3178 = vpop.permute.xlu0 %3177
        %3179 = vrot.lane.b32.xlu0 %v3015, 65
        %v3180 = vpop.permute.xlu0 %3179
        %3181 = vrot.lane.b32.xlu0 %v3019, 65
        %v3182 = vpop.permute.xlu0 %3181
        %3183 = vrot.lane.b32.xlu0 %v3016, 65
        %v3184 = vpop.permute.xlu0 %3183
        %3185 = vrot.lane.b32.xlu0 %v3020, 65
        %v3186 = vpop.permute.xlu0 %3185
        %v3187 = vsel %vm799, %v3180, %v3184
        %v3188 = vsel %vm799, %v3182, %v3186
        %v3189 = vsel %vm799, %v3176, %v3180
        %v3190 = vsel %vm799, %v3178, %v3182
        %v3191 = vsel %vm799, %v3172, %v3176
        %v3192 = vsel %vm799, %v3174, %v3178
        %v3193 = vsel %vm799, %v3184, %v3172
        %v3194 = vsel %vm799, %v3186, %v3174
        %v3195 = vld [vmem:[%s808] ss:$8 sm:$0xf]
        %v3197 = vperm.slane %v3195, 0
        %v3198 = vperm.slane %v3195, 1
        %v3199 = vperm.slane %v3195, 2
        %v3200 = vperm.slane %v3195, 3
        %v3205 = vmul.f32 %v3193, %v3197
        %v3206 = vmul.f32 %v3191, %v3198
        %v3207 = vmul.f32 %v3189, %v3199
        %v3208 = vmul.f32 %v3187, %v3200
        %v3209 = vmul.f32 %v3194, %v3197
        %v3210 = vmul.f32 %v3192, %v3198
        %v3211 = vmul.f32 %v3190, %v3199
        %v3212 = vmul.f32 %v3188, %v3200
        %v3213 = vpack.c.bf16 %v3206, %v3205
        %v3214 = vpack.c.bf16 %v3208, %v3207
        %v3215 = vpack.c.bf16 %v3210, %v3209
        %v3216 = vpack.c.bf16 %v3212, %v3211
        %3217 = vst [vmem:[#allocation2 + $0x60] sm:$0xff] %v3213
        %3218 = vst [vmem:[#allocation2 + $0x68] sm:$0xff] %v3214
        %3219 = vst [vmem:[#allocation2 + $0x70] sm:$0xff] %v3215
        %3220 = vst [vmem:[#allocation2 + $0x78] sm:$0xff] %v3216
        %3221 = vrot.lane.b32.xlu0 %v3013, 64
        %v3222 = vpop.permute.xlu0 %3221
        %3223 = vrot.lane.b32.xlu0 %v3017, 64
        %v3224 = vpop.permute.xlu0 %3223
        %3225 = vrot.lane.b32.xlu0 %v3014, 64
        %v3226 = vpop.permute.xlu0 %3225
        %3227 = vrot.lane.b32.xlu0 %v3018, 64
        %v3228 = vpop.permute.xlu0 %3227
        %3229 = vrot.lane.b32.xlu0 %v3015, 64
        %v3230 = vpop.permute.xlu0 %3229
        %3231 = vrot.lane.b32.xlu0 %v3019, 64
        %v3232 = vpop.permute.xlu0 %3231
        %3233 = vrot.lane.b32.xlu0 %v3016, 64
        %v3234 = vpop.permute.xlu0 %3233
        %3235 = vrot.lane.b32.xlu0 %v3020, 64
        %v3236 = vpop.permute.xlu0 %3235
        %v3237 = vsel %vm851, %v3230, %v3234
        %v3238 = vsel %vm851, %v3232, %v3236
        %v3239 = vsel %vm851, %v3226, %v3230
        %v3240 = vsel %vm851, %v3228, %v3232
        %v3241 = vsel %vm851, %v3222, %v3226
        %v3242 = vsel %vm851, %v3224, %v3228
        %v3243 = vsel %vm851, %v3234, %v3222
        %v3244 = vsel %vm851, %v3236, %v3224
        %v3245 = vld [vmem:[%s860] ss:$8 sm:$0xf]
        %v3247 = vperm.slane %v3245, 0
        %v3248 = vperm.slane %v3245, 1
        %v3249 = vperm.slane %v3245, 2
        %v3250 = vperm.slane %v3245, 3
        %v3255 = vmul.f32 %v3243, %v3247
        %v3256 = vmul.f32 %v3241, %v3248
        %v3257 = vmul.f32 %v3239, %v3249
        %v3258 = vmul.f32 %v3237, %v3250
        %v3259 = vmul.f32 %v3244, %v3247
        %v3260 = vmul.f32 %v3242, %v3248
        %v3261 = vmul.f32 %v3240, %v3249
        %v3262 = vmul.f32 %v3238, %v3250
        %v3263 = vpack.c.bf16 %v3256, %v3255
        %v3264 = vpack.c.bf16 %v3258, %v3257
        %v3265 = vpack.c.bf16 %v3260, %v3259
        %v3266 = vpack.c.bf16 %v3262, %v3261
        %3267 = vst [vmem:[#allocation2 + $0x80] sm:$0xff] %v3263
        %3268 = vst [vmem:[#allocation2 + $0x88] sm:$0xff] %v3264
        %3269 = vst [vmem:[#allocation2 + $0x90] sm:$0xff] %v3265
        %3270 = vst [vmem:[#allocation2 + $0x98] sm:$0xff] %v3266
        %3271 = vrot.lane.b32.xlu0 %v3013, 63
        %v3272 = vpop.permute.xlu0 %3271
        %3273 = vrot.lane.b32.xlu0 %v3017, 63
        %v3274 = vpop.permute.xlu0 %3273
        %3275 = vrot.lane.b32.xlu0 %v3014, 63
        %v3276 = vpop.permute.xlu0 %3275
        %3277 = vrot.lane.b32.xlu0 %v3018, 63
        %v3278 = vpop.permute.xlu0 %3277
        %3279 = vrot.lane.b32.xlu0 %v3015, 63
        %v3280 = vpop.permute.xlu0 %3279
        %3281 = vrot.lane.b32.xlu0 %v3019, 63
        %v3282 = vpop.permute.xlu0 %3281
        %3283 = vrot.lane.b32.xlu0 %v3016, 63
        %v3284 = vpop.permute.xlu0 %3283
        %3285 = vrot.lane.b32.xlu0 %v3020, 63
        %v3286 = vpop.permute.xlu0 %3285
        %v3287 = vsel %vm903, %v3280, %v3284
        %v3288 = vsel %vm903, %v3282, %v3286
        %v3289 = vsel %vm903, %v3276, %v3280
        %v3290 = vsel %vm903, %v3278, %v3282
        %v3291 = vsel %vm903, %v3272, %v3276
        %v3292 = vsel %vm903, %v3274, %v3278
        %v3293 = vsel %vm903, %v3284, %v3272
        %v3294 = vsel %vm903, %v3286, %v3274
        %v3295 = vld [vmem:[%s912] ss:$8 sm:$0xf]
        %v3297 = vperm.slane %v3295, 0
        %v3298 = vperm.slane %v3295, 1
        %v3299 = vperm.slane %v3295, 2
        %v3300 = vperm.slane %v3295, 3
        %v3305 = vmul.f32 %v3293, %v3297
        %v3306 = vmul.f32 %v3291, %v3298
        %v3307 = vmul.f32 %v3289, %v3299
        %v3308 = vmul.f32 %v3287, %v3300
        %v3309 = vmul.f32 %v3294, %v3297
        %v3310 = vmul.f32 %v3292, %v3298
        %v3311 = vmul.f32 %v3290, %v3299
        %v3312 = vmul.f32 %v3288, %v3300
        %v3313 = vpack.c.bf16 %v3306, %v3305
        %v3314 = vpack.c.bf16 %v3308, %v3307
        %v3315 = vpack.c.bf16 %v3310, %v3309
        %v3316 = vpack.c.bf16 %v3312, %v3311
        %3317 = vst [vmem:[#allocation2 + $0xa0] sm:$0xff] %v3313
        %3318 = vst [vmem:[#allocation2 + $0xa8] sm:$0xff] %v3314
        %3319 = vst [vmem:[#allocation2 + $0xb0] sm:$0xff] %v3315
        %3320 = vst [vmem:[#allocation2 + $0xb8] sm:$0xff] %v3316
        %3321 = vrot.lane.b32.xlu0 %v3013, 57
        %v3322 = vpop.permute.xlu0 %3321
        %3323 = vrot.lane.b32.xlu0 %v3017, 57
        %v3324 = vpop.permute.xlu0 %3323
        %3325 = vrot.lane.b32.xlu0 %v3014, 57
        %v3326 = vpop.permute.xlu0 %3325
        %3327 = vrot.lane.b32.xlu0 %v3018, 57
        %v3328 = vpop.permute.xlu0 %3327
        %3329 = vrot.lane.b32.xlu0 %v3015, 57
        %v3330 = vpop.permute.xlu0 %3329
        %3331 = vrot.lane.b32.xlu0 %v3019, 57
        %v3332 = vpop.permute.xlu0 %3331
        %3333 = vrot.lane.b32.xlu0 %v3016, 57
        %v3334 = vpop.permute.xlu0 %3333
        %3335 = vrot.lane.b32.xlu0 %v3020, 57
        %v3336 = vpop.permute.xlu0 %3335
        %v3337 = vsel %vm955, %v3330, %v3334
        %v3338 = vsel %vm955, %v3332, %v3336
        %v3339 = vsel %vm955, %v3326, %v3330
        %v3340 = vsel %vm955, %v3328, %v3332
        %v3341 = vsel %vm955, %v3322, %v3326
        %v3342 = vsel %vm955, %v3324, %v3328
        %v3343 = vsel %vm955, %v3334, %v3322
        %v3344 = vsel %vm955, %v3336, %v3324
        %v3345 = vld [vmem:[%s964] ss:$8 sm:$0xf]
        %v3347 = vperm.slane %v3345, 0
        %v3348 = vperm.slane %v3345, 1
        %v3349 = vperm.slane %v3345, 2
        %v3350 = vperm.slane %v3345, 3
        %v3355 = vmul.f32 %v3343, %v3347
        %v3356 = vmul.f32 %v3341, %v3348
        %v3357 = vmul.f32 %v3339, %v3349
        %v3358 = vmul.f32 %v3337, %v3350
        %v3359 = vmul.f32 %v3344, %v3347
        %v3360 = vmul.f32 %v3342, %v3348
        %v3361 = vmul.f32 %v3340, %v3349
        %v3362 = vmul.f32 %v3338, %v3350
        %v3363 = vpack.c.bf16 %v3356, %v3355
        %v3364 = vpack.c.bf16 %v3358, %v3357
        %v3365 = vpack.c.bf16 %v3360, %v3359
        %v3366 = vpack.c.bf16 %v3362, %v3361
        %3367 = vst [vmem:[#allocation2 + $0xc0] sm:$0xff] %v3363
        %3368 = vst [vmem:[#allocation2 + $0xc8] sm:$0xff] %v3364
        %3369 = vst [vmem:[#allocation2 + $0xd0] sm:$0xff] %v3365
        %3370 = vst [vmem:[#allocation2 + $0xd8] sm:$0xff] %v3366
        %3371 = vrot.lane.b32.xlu0 %v3013, 56
        %v3372 = vpop.permute.xlu0 %3371
        %3373 = vrot.lane.b32.xlu0 %v3017, 56
        %v3374 = vpop.permute.xlu0 %3373
        %3375 = vrot.lane.b32.xlu0 %v3014, 56
        %v3376 = vpop.permute.xlu0 %3375
        %3377 = vrot.lane.b32.xlu0 %v3018, 56
        %v3378 = vpop.permute.xlu0 %3377
        %3379 = vrot.lane.b32.xlu0 %v3015, 56
        %v3380 = vpop.permute.xlu0 %3379
        %3381 = vrot.lane.b32.xlu0 %v3019, 56
        %v3382 = vpop.permute.xlu0 %3381
        %3383 = vrot.lane.b32.xlu0 %v3016, 56
        %v3384 = vpop.permute.xlu0 %3383
        %3385 = vrot.lane.b32.xlu0 %v3020, 56
        %v3386 = vpop.permute.xlu0 %3385
        %v3387 = vsel %vm1007, %v3380, %v3384
        %v3388 = vsel %vm1007, %v3382, %v3386
        %v3389 = vsel %vm1007, %v3376, %v3380
        %v3390 = vsel %vm1007, %v3378, %v3382
        %v3391 = vsel %vm1007, %v3372, %v3376
        %v3392 = vsel %vm1007, %v3374, %v3378
        %v3393 = vsel %vm1007, %v3384, %v3372
        %v3394 = vsel %vm1007, %v3386, %v3374
        %v3395 = vld [vmem:[%s1016] ss:$8 sm:$0xf]
        %v3397 = vperm.slane %v3395, 0
        %v3398 = vperm.slane %v3395, 1
        %v3399 = vperm.slane %v3395, 2
        %v3400 = vperm.slane %v3395, 3
        %v3405 = vmul.f32 %v3393, %v3397
        %v3406 = vmul.f32 %v3391, %v3398
        %v3407 = vmul.f32 %v3389, %v3399
        %v3408 = vmul.f32 %v3387, %v3400
        %v3409 = vmul.f32 %v3394, %v3397
        %v3410 = vmul.f32 %v3392, %v3398
        %v3411 = vmul.f32 %v3390, %v3399
        %v3412 = vmul.f32 %v3388, %v3400
        %v3413 = vpack.c.bf16 %v3406, %v3405
        %v3414 = vpack.c.bf16 %v3408, %v3407
        %v3415 = vpack.c.bf16 %v3410, %v3409
        %v3416 = vpack.c.bf16 %v3412, %v3411
        %3417 = vst [vmem:[#allocation2 + $0xe0] sm:$0xff] %v3413
        %3418 = vst [vmem:[#allocation2 + $0xe8] sm:$0xff] %v3414
        %3419 = vst [vmem:[#allocation2 + $0xf0] sm:$0xff] %v3415
        %3420 = vst [vmem:[#allocation2 + $0xf8] sm:$0xff] %v3416
        %3421 = vrot.lane.b32.xlu0 %v3013, 55
        %v3422 = vpop.permute.xlu0 %3421
        %3423 = vrot.lane.b32.xlu0 %v3017, 55
        %v3424 = vpop.permute.xlu0 %3423
        %3425 = vrot.lane.b32.xlu0 %v3014, 55
        %v3426 = vpop.permute.xlu0 %3425
        %3427 = vrot.lane.b32.xlu0 %v3018, 55
        %v3428 = vpop.permute.xlu0 %3427
        %3429 = vrot.lane.b32.xlu0 %v3015, 55
        %v3430 = vpop.permute.xlu0 %3429
        %3431 = vrot.lane.b32.xlu0 %v3019, 55
        %v3432 = vpop.permute.xlu0 %3431
        %3433 = vrot.lane.b32.xlu0 %v3016, 55
        %v3434 = vpop.permute.xlu0 %3433
        %3435 = vrot.lane.b32.xlu0 %v3020, 55
        %v3436 = vpop.permute.xlu0 %3435
        %v3437 = vsel %vm1059, %v3430, %v3434
        %v3438 = vsel %vm1059, %v3432, %v3436
        %v3439 = vsel %vm1059, %v3426, %v3430
        %v3440 = vsel %vm1059, %v3428, %v3432
        %v3441 = vsel %vm1059, %v3422, %v3426
        %v3442 = vsel %vm1059, %v3424, %v3428
        %v3443 = vsel %vm1059, %v3434, %v3422
        %v3444 = vsel %vm1059, %v3436, %v3424
        %v3445 = vld [vmem:[%s1068] ss:$8 sm:$0xf]
        %v3447 = vperm.slane %v3445, 0
        %v3448 = vperm.slane %v3445, 1
        %v3449 = vperm.slane %v3445, 2
        %v3450 = vperm.slane %v3445, 3
        %v3455 = vmul.f32 %v3443, %v3447
        %v3456 = vmul.f32 %v3441, %v3448
        %v3457 = vmul.f32 %v3439, %v3449
        %v3458 = vmul.f32 %v3437, %v3450
        %v3459 = vmul.f32 %v3444, %v3447
        %v3460 = vmul.f32 %v3442, %v3448
        %v3461 = vmul.f32 %v3440, %v3449
        %v3462 = vmul.f32 %v3438, %v3450
        %v3463 = vpack.c.bf16 %v3456, %v3455
        %v3464 = vpack.c.bf16 %v3458, %v3457
        %v3465 = vpack.c.bf16 %v3460, %v3459
        %v3466 = vpack.c.bf16 %v3462, %v3461
        %3467 = vst [vmem:[#allocation2 + $0x100] sm:$0xff] %v3463
        %3468 = vst [vmem:[#allocation2 + $0x108] sm:$0xff] %v3464
        %3469 = vst [vmem:[#allocation2 + $0x110] sm:$0xff] %v3465
        %3470 = vst [vmem:[#allocation2 + $0x118] sm:$0xff] %v3466
        %v3471 = vld [vmem:[%s7] sm:$0xff]
        %v3472 = vld [vmem:[%s7 + $0x10] sm:$0xff]
        %v3473 = vld [vmem:[#allocation2] sm:$0xff]
        %v3474 = vld [vmem:[#allocation2 + $0x8] sm:$0xff]
        %v3475 = vld [vmem:[#allocation2 + $0x10] sm:$0xff]
        %v3476 = vld [vmem:[#allocation2 + $0x18] sm:$0xff]
        %v3477 = vld [vmem:[#allocation2 + $0x20] sm:$0xff]
        %v3478 = vld [vmem:[#allocation2 + $0x28] sm:$0xff]
        %v3479 = vld [vmem:[#allocation2 + $0x30] sm:$0xff]
        %v3480 = vld [vmem:[#allocation2 + $0x38] sm:$0xff]
        %v3481 = vld [vmem:[#allocation2 + $0x40] sm:$0xff]
        %v3482 = vld [vmem:[#allocation2 + $0x48] sm:$0xff]
        %v3483 = vld [vmem:[#allocation2 + $0x50] sm:$0xff]
        %v3484 = vld [vmem:[#allocation2 + $0x58] sm:$0xff]
        %v3485 = vld [vmem:[#allocation2 + $0x60] sm:$0xff]
        %v3486 = vld [vmem:[#allocation2 + $0x68] sm:$0xff]
        %v3487 = vld [vmem:[#allocation2 + $0x70] sm:$0xff]
        %v3488 = vld [vmem:[#allocation2 + $0x78] sm:$0xff]
        %v3489 = vld [vmem:[#allocation2 + $0x80] sm:$0xff]
        %v3490 = vld [vmem:[#allocation2 + $0x88] sm:$0xff]
        %v3491 = vld [vmem:[#allocation2 + $0x90] sm:$0xff]
        %v3492 = vld [vmem:[#allocation2 + $0x98] sm:$0xff]
        %v3493 = vld [vmem:[#allocation2 + $0xa0] sm:$0xff]
        %v3494 = vld [vmem:[#allocation2 + $0xa8] sm:$0xff]
        %v3495 = vld [vmem:[#allocation2 + $0xb0] sm:$0xff]
        %v3496 = vld [vmem:[#allocation2 + $0xb8] sm:$0xff]
        %v3497 = vld [vmem:[#allocation2 + $0xc0] sm:$0xff]
        %v3498 = vld [vmem:[#allocation2 + $0xc8] sm:$0xff]
        %v3499 = vld [vmem:[#allocation2 + $0xd0] sm:$0xff]
        %v3500 = vld [vmem:[#allocation2 + $0xd8] sm:$0xff]
        %v3501 = vld [vmem:[#allocation2 + $0xe0] sm:$0xff]
        %v3502 = vld [vmem:[#allocation2 + $0xe8] sm:$0xff]
        %v3503 = vld [vmem:[#allocation2 + $0xf0] sm:$0xff]
        %v3504 = vld [vmem:[#allocation2 + $0xf8] sm:$0xff]
        %v3505 = vld [vmem:[#allocation2 + $0x100] sm:$0xff]
        %v3506 = vld [vmem:[#allocation2 + $0x108] sm:$0xff]
        %v3507 = vld [vmem:[#allocation2 + $0x110] sm:$0xff]
        %v3508 = vld [vmem:[#allocation2 + $0x118] sm:$0xff]
        %3509 = vrot.lane.b32.xlu0 %v3013, 9
        %v3510 = vpop.permute.xlu0 %3509
        %3511 = vrot.lane.b32.xlu0 %v3017, 9
        %v3512 = vpop.permute.xlu0 %3511
        %3513 = vrot.lane.b32.xlu0 %v3014, 9
        %v3514 = vpop.permute.xlu0 %3513
        %3515 = vrot.lane.b32.xlu0 %v3018, 9
        %v3516 = vpop.permute.xlu0 %3515
        %3517 = vrot.lane.b32.xlu0 %v3015, 9
        %v3518 = vpop.permute.xlu0 %3517
        %3519 = vrot.lane.b32.xlu0 %v3019, 9
        %v3520 = vpop.permute.xlu0 %3519
        %3521 = vrot.lane.b32.xlu0 %v3016, 9
        %v3522 = vpop.permute.xlu0 %3521
        %3523 = vrot.lane.b32.xlu0 %v3020, 9
        %v3524 = vpop.permute.xlu0 %3523
        %v3525 = vsel %vm1149, %v3518, %v3522
        %v3526 = vsel %vm1149, %v3520, %v3524
        %v3527 = vsel %vm1149, %v3514, %v3518
        %v3528 = vsel %vm1149, %v3516, %v3520
        %v3529 = vsel %vm1149, %v3510, %v3514
        %v3530 = vsel %vm1149, %v3512, %v3516
        %v3531 = vsel %vm1149, %v3522, %v3510
        %v3532 = vsel %vm1149, %v3524, %v3512
        %v3533 = vld [vmem:[%s1158] ss:$8 sm:$0xf]
        %v3535 = vperm.slane %v3533, 0
        %v3536 = vperm.slane %v3533, 1
        %v3537 = vperm.slane %v3533, 2
        %v3538 = vperm.slane %v3533, 3
        %v3543 = vmul.f32 %v3531, %v3535
        %v3544 = vmul.f32 %v3529, %v3536
        %v3545 = vmul.f32 %v3527, %v3537
        %v3546 = vmul.f32 %v3525, %v3538
        %v3547 = vmul.f32 %v3532, %v3535
        %v3548 = vmul.f32 %v3530, %v3536
        %v3549 = vmul.f32 %v3528, %v3537
        %v3550 = vmul.f32 %v3526, %v3538
        %v3551 = vpack.c.bf16 %v3544, %v3543
        %v3552 = vpack.c.bf16 %v3546, %v3545
        %v3553 = vpack.c.bf16 %v3548, %v3547
        %v3554 = vpack.c.bf16 %v3550, %v3549
        %3555 = vst [vmem:[%s1181] sm:$0xff] %v3551
        %3556 = vst [vmem:[%s1181 + $0x8] sm:$0xff] %v3552
        %3557 = vst [vmem:[%s1181 + $0x10] sm:$0xff] %v3553
        %3558 = vst [vmem:[%s1181 + $0x18] sm:$0xff] %v3554
        %3559 = vrot.lane.b32.xlu0 %v3013, 8
        %v3560 = vpop.permute.xlu0 %3559
        %3561 = vrot.lane.b32.xlu0 %v3017, 8
        %v3562 = vpop.permute.xlu0 %3561
        %3563 = vrot.lane.b32.xlu0 %v3014, 8
        %v3564 = vpop.permute.xlu0 %3563
        %3565 = vrot.lane.b32.xlu0 %v3018, 8
        %v3566 = vpop.permute.xlu0 %3565
        %3567 = vrot.lane.b32.xlu0 %v3015, 8
        %v3568 = vpop.permute.xlu0 %3567
        %3569 = vrot.lane.b32.xlu0 %v3019, 8
        %v3570 = vpop.permute.xlu0 %3569
        %3571 = vrot.lane.b32.xlu0 %v3016, 8
        %v3572 = vpop.permute.xlu0 %3571
        %3573 = vrot.lane.b32.xlu0 %v3020, 8
        %v3574 = vpop.permute.xlu0 %3573
        %v3575 = vsel %vm1202, %v3568, %v3572
        %v3576 = vsel %vm1202, %v3570, %v3574
        %v3577 = vsel %vm1202, %v3564, %v3568
        %v3578 = vsel %vm1202, %v3566, %v3570
        %v3579 = vsel %vm1202, %v3560, %v3564
        %v3580 = vsel %vm1202, %v3562, %v3566
        %v3581 = vsel %vm1202, %v3572, %v3560
        %v3582 = vsel %vm1202, %v3574, %v3562
        %v3583 = vld [vmem:[%s1211] ss:$8 sm:$0xf]
        %v3585 = vperm.slane %v3583, 0
        %v3586 = vperm.slane %v3583, 1
        %v3587 = vperm.slane %v3583, 2
        %v3588 = vperm.slane %v3583, 3
        %v3593 = vmul.f32 %v3581, %v3585
        %v3594 = vmul.f32 %v3579, %v3586
        %v3595 = vmul.f32 %v3577, %v3587
        %v3596 = vmul.f32 %v3575, %v3588
        %v3597 = vmul.f32 %v3582, %v3585
        %v3598 = vmul.f32 %v3580, %v3586
        %v3599 = vmul.f32 %v3578, %v3587
        %v3600 = vmul.f32 %v3576, %v3588
        %v3601 = vpack.c.bf16 %v3594, %v3593
        %v3602 = vpack.c.bf16 %v3596, %v3595
        %v3603 = vpack.c.bf16 %v3598, %v3597
        %v3604 = vpack.c.bf16 %v3600, %v3599
        %3605 = vst [vmem:[%s1181 + $0x20] sm:$0xff] %v3601
        %3606 = vst [vmem:[%s1181 + $0x28] sm:$0xff] %v3602
        %3607 = vst [vmem:[%s1181 + $0x30] sm:$0xff] %v3603
        %3608 = vst [vmem:[%s1181 + $0x38] sm:$0xff] %v3604
        %3609 = vrot.lane.b32.xlu0 %v3013, 7
        %v3610 = vpop.permute.xlu0 %3609
        %3611 = vrot.lane.b32.xlu0 %v3017, 7
        %v3612 = vpop.permute.xlu0 %3611
        %3613 = vrot.lane.b32.xlu0 %v3014, 7
        %v3614 = vpop.permute.xlu0 %3613
        %3615 = vrot.lane.b32.xlu0 %v3018, 7
        %v3616 = vpop.permute.xlu0 %3615
        %3617 = vrot.lane.b32.xlu0 %v3015, 7
        %v3618 = vpop.permute.xlu0 %3617
        %3619 = vrot.lane.b32.xlu0 %v3019, 7
        %v3620 = vpop.permute.xlu0 %3619
        %3621 = vrot.lane.b32.xlu0 %v3016, 7
        %v3622 = vpop.permute.xlu0 %3621
        %3623 = vrot.lane.b32.xlu0 %v3020, 7
        %v3624 = vpop.permute.xlu0 %3623
        %v3625 = vsel %vm1254, %v3618, %v3622
        %v3626 = vsel %vm1254, %v3620, %v3624
        %v3627 = vsel %vm1254, %v3614, %v3618
        %v3628 = vsel %vm1254, %v3616, %v3620
        %v3629 = vsel %vm1254, %v3610, %v3614
        %v3630 = vsel %vm1254, %v3612, %v3616
        %v3631 = vsel %vm1254, %v3622, %v3610
        %v3632 = vsel %vm1254, %v3624, %v3612
        %v3633 = vld [vmem:[%s1263] ss:$8 sm:$0xf]
        %v3635 = vperm.slane %v3633, 0
        %v3636 = vperm.slane %v3633, 1
        %v3637 = vperm.slane %v3633, 2
        %v3638 = vperm.slane %v3633, 3
        %v3643 = vmul.f32 %v3631, %v3635
        %v3644 = vmul.f32 %v3629, %v3636
        %v3645 = vmul.f32 %v3627, %v3637
        %v3646 = vmul.f32 %v3625, %v3638
        %v3647 = vmul.f32 %v3632, %v3635
        %v3648 = vmul.f32 %v3630, %v3636
        %v3649 = vmul.f32 %v3628, %v3637
        %v3650 = vmul.f32 %v3626, %v3638
        %v3651 = vpack.c.bf16 %v3644, %v3643
        %v3652 = vpack.c.bf16 %v3646, %v3645
        %v3653 = vpack.c.bf16 %v3648, %v3647
        %v3654 = vpack.c.bf16 %v3650, %v3649
        %3655 = vst [vmem:[%s1181 + $0x40] sm:$0xff] %v3651
        %3656 = vst [vmem:[%s1181 + $0x48] sm:$0xff] %v3652
        %3657 = vst [vmem:[%s1181 + $0x50] sm:$0xff] %v3653
        %3658 = vst [vmem:[%s1181 + $0x58] sm:$0xff] %v3654
        %3659 = vrot.lane.b32.xlu0 %v3013, 1
        %v3660 = vpop.permute.xlu0 %3659
        %3661 = vrot.lane.b32.xlu0 %v3017, 1
        %v3662 = vpop.permute.xlu0 %3661
        %3663 = vrot.lane.b32.xlu0 %v3014, 1
        %v3664 = vpop.permute.xlu0 %3663
        %3665 = vrot.lane.b32.xlu0 %v3018, 1
        %v3666 = vpop.permute.xlu0 %3665
        %3667 = vrot.lane.b32.xlu0 %v3015, 1
        %v3668 = vpop.permute.xlu0 %3667
        %3669 = vrot.lane.b32.xlu0 %v3019, 1
        %v3670 = vpop.permute.xlu0 %3669
        %3671 = vrot.lane.b32.xlu0 %v3016, 1
        %v3672 = vpop.permute.xlu0 %3671
        %3673 = vrot.lane.b32.xlu0 %v3020, 1
        %v3674 = vpop.permute.xlu0 %3673
        %v3675 = vsel %vm1306, %v3668, %v3672
        %v3676 = vsel %vm1306, %v3670, %v3674
        %v3677 = vsel %vm1306, %v3664, %v3668
        %v3678 = vsel %vm1306, %v3666, %v3670
        %v3679 = vsel %vm1306, %v3660, %v3664
        %v3680 = vsel %vm1306, %v3662, %v3666
        %v3681 = vsel %vm1306, %v3672, %v3660
        %v3682 = vsel %vm1306, %v3674, %v3662
        %v3683 = vld [vmem:[%s1315] ss:$8 sm:$0xf]
        %v3685 = vperm.slane %v3683, 0
        %v3686 = vperm.slane %v3683, 1
        %v3687 = vperm.slane %v3683, 2
        %v3688 = vperm.slane %v3683, 3
        %v3693 = vmul.f32 %v3681, %v3685
        %v3694 = vmul.f32 %v3679, %v3686
        %v3695 = vmul.f32 %v3677, %v3687
        %v3696 = vmul.f32 %v3675, %v3688
        %v3697 = vmul.f32 %v3682, %v3685
        %v3698 = vmul.f32 %v3680, %v3686
        %v3699 = vmul.f32 %v3678, %v3687
        %v3700 = vmul.f32 %v3676, %v3688
        %v3701 = vpack.c.bf16 %v3694, %v3693
        %v3702 = vpack.c.bf16 %v3696, %v3695
        %v3703 = vpack.c.bf16 %v3698, %v3697
        %v3704 = vpack.c.bf16 %v3700, %v3699
        %3705 = vst [vmem:[%s1181 + $0x60] sm:$0xff] %v3701
        %3706 = vst [vmem:[%s1181 + $0x68] sm:$0xff] %v3702
        %3707 = vst [vmem:[%s1181 + $0x70] sm:$0xff] %v3703
        %3708 = vst [vmem:[%s1181 + $0x78] sm:$0xff] %v3704
        %v3709 = vpack.c.bf16 %v3014, %v3013
        %v3710 = vpack.c.bf16 %v3016, %v3015
        %v3711 = vpack.c.bf16 %v3018, %v3017
        %v3712 = vpack.c.bf16 %v3020, %v3019
        %3713 = vst [vmem:[%s1181 + $0x80] sm:$0xff] %v3709
        %3714 = vst [vmem:[%s1181 + $0x88] sm:$0xff] %v3710
        %3715 = vst [vmem:[%s1181 + $0x90] sm:$0xff] %v3711
        %3716 = vst [vmem:[%s1181 + $0x98] sm:$0xff] %v3712
        %3717 = vrot.lane.b32.xlu0 %v3013, 127
        %v3718 = vpop.permute.xlu0 %3717
        %3719 = vrot.lane.b32.xlu0 %v3017, 127
        %v3720 = vpop.permute.xlu0 %3719
        %3721 = vrot.lane.b32.xlu0 %v3014, 127
        %v3722 = vpop.permute.xlu0 %3721
        %3723 = vrot.lane.b32.xlu0 %v3018, 127
        %v3724 = vpop.permute.xlu0 %3723
        %3725 = vrot.lane.b32.xlu0 %v3015, 127
        %v3726 = vpop.permute.xlu0 %3725
        %3727 = vrot.lane.b32.xlu0 %v3019, 127
        %v3728 = vpop.permute.xlu0 %3727
        %3729 = vrot.lane.b32.xlu0 %v3016, 127
        %v3730 = vpop.permute.xlu0 %3729
        %3731 = vrot.lane.b32.xlu0 %v3020, 127
        %v3732 = vpop.permute.xlu0 %3731
        %v3733 = vsel %vm1366, %v3726, %v3730
        %v3734 = vsel %vm1366, %v3728, %v3732
        %v3735 = vsel %vm1366, %v3722, %v3726
        %v3736 = vsel %vm1366, %v3724, %v3728
        %v3737 = vsel %vm1366, %v3718, %v3722
        %v3738 = vsel %vm1366, %v3720, %v3724
        %v3739 = vsel %vm1366, %v3730, %v3718
        %v3740 = vsel %vm1366, %v3732, %v3720
        %v3741 = vld [vmem:[%s1375] ss:$8 sm:$0xf]
        %v3743 = vperm.slane %v3741, 0
        %v3744 = vperm.slane %v3741, 1
        %v3745 = vperm.slane %v3741, 2
        %v3746 = vperm.slane %v3741, 3
        %v3751 = vmul.f32 %v3737, %v3743
        %v3752 = vmul.f32 %v3735, %v3744
        %v3753 = vmul.f32 %v3733, %v3745
        %v3754 = vmul.f32 %v3739, %v3746
        %v3755 = vmul.f32 %v3738, %v3743
        %v3756 = vmul.f32 %v3736, %v3744
        %v3757 = vmul.f32 %v3734, %v3745
        %v3758 = vmul.f32 %v3740, %v3746
        %v3759 = vpack.c.bf16 %v3752, %v3751
        %v3760 = vpack.c.bf16 %v3754, %v3753
        %v3761 = vpack.c.bf16 %v3756, %v3755
        %v3762 = vpack.c.bf16 %v3758, %v3757
        %3763 = vst [vmem:[%s1181 + $0xa0] sm:$0xff] %v3759
        %3764 = vst [vmem:[%s1181 + $0xa8] sm:$0xff] %v3760
        %3765 = vst [vmem:[%s1181 + $0xb0] sm:$0xff] %v3761
        %3766 = vst [vmem:[%s1181 + $0xb8] sm:$0xff] %v3762
        %3767 = vrot.lane.b32.xlu0 %v3013, 121
        %v3768 = vpop.permute.xlu0 %3767
        %3769 = vrot.lane.b32.xlu0 %v3017, 121
        %v3770 = vpop.permute.xlu0 %3769
        %3771 = vrot.lane.b32.xlu0 %v3014, 121
        %v3772 = vpop.permute.xlu0 %3771
        %3773 = vrot.lane.b32.xlu0 %v3018, 121
        %v3774 = vpop.permute.xlu0 %3773
        %3775 = vrot.lane.b32.xlu0 %v3015, 121
        %v3776 = vpop.permute.xlu0 %3775
        %3777 = vrot.lane.b32.xlu0 %v3019, 121
        %v3778 = vpop.permute.xlu0 %3777
        %3779 = vrot.lane.b32.xlu0 %v3016, 121
        %v3780 = vpop.permute.xlu0 %3779
        %3781 = vrot.lane.b32.xlu0 %v3020, 121
        %v3782 = vpop.permute.xlu0 %3781
        %v3783 = vsel %vm1418, %v3776, %v3780
        %v3784 = vsel %vm1418, %v3778, %v3782
        %v3785 = vsel %vm1418, %v3772, %v3776
        %v3786 = vsel %vm1418, %v3774, %v3778
        %v3787 = vsel %vm1418, %v3768, %v3772
        %v3788 = vsel %vm1418, %v3770, %v3774
        %v3789 = vsel %vm1418, %v3780, %v3768
        %v3790 = vsel %vm1418, %v3782, %v3770
        %v3791 = vld [vmem:[%s1427] ss:$8 sm:$0xf]
        %v3793 = vperm.slane %v3791, 0
        %v3794 = vperm.slane %v3791, 1
        %v3795 = vperm.slane %v3791, 2
        %v3796 = vperm.slane %v3791, 3
        %v3801 = vmul.f32 %v3787, %v3793
        %v3802 = vmul.f32 %v3785, %v3794
        %v3803 = vmul.f32 %v3783, %v3795
        %v3804 = vmul.f32 %v3789, %v3796
        %v3805 = vmul.f32 %v3788, %v3793
        %v3806 = vmul.f32 %v3786, %v3794
        %v3807 = vmul.f32 %v3784, %v3795
        %v3808 = vmul.f32 %v3790, %v3796
        %v3809 = vpack.c.bf16 %v3802, %v3801
        %v3810 = vpack.c.bf16 %v3804, %v3803
        %v3811 = vpack.c.bf16 %v3806, %v3805
        %v3812 = vpack.c.bf16 %v3808, %v3807
        %3813 = vst [vmem:[%s1181 + $0xc0] sm:$0xff] %v3809
        %3814 = vst [vmem:[%s1181 + $0xc8] sm:$0xff] %v3810
        %3815 = vst [vmem:[%s1181 + $0xd0] sm:$0xff] %v3811
        %3816 = vst [vmem:[%s1181 + $0xd8] sm:$0xff] %v3812
        %3817 = vrot.lane.b32.xlu0 %v3013, 120
        %v3818 = vpop.permute.xlu0 %3817
        %3819 = vrot.lane.b32.xlu0 %v3017, 120
        %v3820 = vpop.permute.xlu0 %3819
        %3821 = vrot.lane.b32.xlu0 %v3014, 120
        %v3822 = vpop.permute.xlu0 %3821
        %3823 = vrot.lane.b32.xlu0 %v3018, 120
        %v3824 = vpop.permute.xlu0 %3823
        %3825 = vrot.lane.b32.xlu0 %v3015, 120
        %v3826 = vpop.permute.xlu0 %3825
        %3827 = vrot.lane.b32.xlu0 %v3019, 120
        %v3828 = vpop.permute.xlu0 %3827
        %3829 = vrot.lane.b32.xlu0 %v3016, 120
        %v3830 = vpop.permute.xlu0 %3829
        %3831 = vrot.lane.b32.xlu0 %v3020, 120
        %v3832 = vpop.permute.xlu0 %3831
        %v3833 = vsel %vm1470, %v3826, %v3830
        %v3834 = vsel %vm1470, %v3828, %v3832
        %v3835 = vsel %vm1470, %v3822, %v3826
        %v3836 = vsel %vm1470, %v3824, %v3828
        %v3837 = vsel %vm1470, %v3818, %v3822
        %v3838 = vsel %vm1470, %v3820, %v3824
        %v3839 = vsel %vm1470, %v3830, %v3818
        %v3840 = vsel %vm1470, %v3832, %v3820
        %v3841 = vld [vmem:[%s1479] ss:$8 sm:$0xf]
        %v3843 = vperm.slane %v3841, 0
        %v3844 = vperm.slane %v3841, 1
        %v3845 = vperm.slane %v3841, 2
        %v3846 = vperm.slane %v3841, 3
        %v3851 = vmul.f32 %v3837, %v3843
        %v3852 = vmul.f32 %v3835, %v3844
        %v3853 = vmul.f32 %v3833, %v3845
        %v3854 = vmul.f32 %v3839, %v3846
        %v3855 = vmul.f32 %v3838, %v3843
        %v3856 = vmul.f32 %v3836, %v3844
        %v3857 = vmul.f32 %v3834, %v3845
        %v3858 = vmul.f32 %v3840, %v3846
        %v3859 = vpack.c.bf16 %v3852, %v3851
        %v3860 = vpack.c.bf16 %v3854, %v3853
        %v3861 = vpack.c.bf16 %v3856, %v3855
        %v3862 = vpack.c.bf16 %v3858, %v3857
        %3863 = vst [vmem:[%s1181 + $0xe0] sm:$0xff] %v3859
        %3864 = vst [vmem:[%s1181 + $0xe8] sm:$0xff] %v3860
        %3865 = vst [vmem:[%s1181 + $0xf0] sm:$0xff] %v3861
        %3866 = vst [vmem:[%s1181 + $0xf8] sm:$0xff] %v3862
        %3867 = vrot.lane.b32.xlu0 %v3013, 119
        %v3868 = vpop.permute.xlu0 %3867
        %3869 = vrot.lane.b32.xlu0 %v3017, 119
        %v3870 = vpop.permute.xlu0 %3869
        %3871 = vrot.lane.b32.xlu0 %v3014, 119
        %v3872 = vpop.permute.xlu0 %3871
        %3873 = vrot.lane.b32.xlu0 %v3018, 119
        %v3874 = vpop.permute.xlu0 %3873
        %3875 = vrot.lane.b32.xlu0 %v3015, 119
        %v3876 = vpop.permute.xlu0 %3875
        %3877 = vrot.lane.b32.xlu0 %v3019, 119
        %v3878 = vpop.permute.xlu0 %3877
        %3879 = vrot.lane.b32.xlu0 %v3016, 119
        %v3880 = vpop.permute.xlu0 %3879
        %3881 = vrot.lane.b32.xlu0 %v3020, 119
        %v3882 = vpop.permute.xlu0 %3881
        %v3883 = vsel %vm1522, %v3876, %v3880
        %v3884 = vsel %vm1522, %v3878, %v3882
        %v3885 = vsel %vm1522, %v3872, %v3876
        %v3886 = vsel %vm1522, %v3874, %v3878
        %v3887 = vsel %vm1522, %v3868, %v3872
        %v3888 = vsel %vm1522, %v3870, %v3874
        %v3889 = vsel %vm1522, %v3880, %v3868
        %v3890 = vsel %vm1522, %v3882, %v3870
        %v3891 = vld [vmem:[%s1531] ss:$8 sm:$0xf]
        %v3893 = vperm.slane %v3891, 0
        %v3894 = vperm.slane %v3891, 1
        %v3895 = vperm.slane %v3891, 2
        %v3896 = vperm.slane %v3891, 3
        %v3901 = vmul.f32 %v3887, %v3893
        %v3902 = vmul.f32 %v3885, %v3894
        %v3903 = vmul.f32 %v3883, %v3895
        %v3904 = vmul.f32 %v3889, %v3896
        %v3905 = vmul.f32 %v3888, %v3893
        %v3906 = vmul.f32 %v3886, %v3894
        %v3907 = vmul.f32 %v3884, %v3895
        %v3908 = vmul.f32 %v3890, %v3896
        %v3909 = vpack.c.bf16 %v3902, %v3901
        %v3910 = vpack.c.bf16 %v3904, %v3903
        %v3911 = vpack.c.bf16 %v3906, %v3905
        %v3912 = vpack.c.bf16 %v3908, %v3907
        %3913 = vst [vmem:[%s1181 + $0x100] sm:$0xff] %v3909
        %3914 = vst [vmem:[%s1181 + $0x108] sm:$0xff] %v3910
        %3915 = vst [vmem:[%s1181 + $0x110] sm:$0xff] %v3911
        %3916 = vst [vmem:[%s1181 + $0x118] sm:$0xff] %v3912
        %v3917 = vld [vmem:[%s7 + $0x4] sm:$0xff]
        %v3918 = vld [vmem:[%s7 + $0x14] sm:$0xff]
        %v3919 = vld [vmem:[%s1181] sm:$0xff]
        %v3920 = vld [vmem:[%s1181 + $0x8] sm:$0xff]
        %v3921 = vld [vmem:[%s1181 + $0x10] sm:$0xff]
        %v3922 = vld [vmem:[%s1181 + $0x18] sm:$0xff]
        %v3923 = vld [vmem:[%s1181 + $0x20] sm:$0xff]
        %v3924 = vld [vmem:[%s1181 + $0x28] sm:$0xff]
        %v3925 = vld [vmem:[%s1181 + $0x30] sm:$0xff]
        %v3926 = vld [vmem:[%s1181 + $0x38] sm:$0xff]
        %v3927 = vld [vmem:[%s1181 + $0x40] sm:$0xff]
        %v3928 = vld [vmem:[%s1181 + $0x48] sm:$0xff]
        %v3929 = vld [vmem:[%s1181 + $0x50] sm:$0xff]
        %v3930 = vld [vmem:[%s1181 + $0x58] sm:$0xff]
        %v3931 = vld [vmem:[%s1181 + $0x60] sm:$0xff]
        %v3932 = vld [vmem:[%s1181 + $0x68] sm:$0xff]
        %v3933 = vld [vmem:[%s1181 + $0x70] sm:$0xff]
        %v3934 = vld [vmem:[%s1181 + $0x78] sm:$0xff]
        %v3935 = vld [vmem:[%s1181 + $0x80] sm:$0xff]
        %v3936 = vld [vmem:[%s1181 + $0x88] sm:$0xff]
        %v3937 = vld [vmem:[%s1181 + $0x90] sm:$0xff]
        %v3938 = vld [vmem:[%s1181 + $0x98] sm:$0xff]
        %v3939 = vld [vmem:[%s1181 + $0xa0] sm:$0xff]
        %v3940 = vld [vmem:[%s1181 + $0xa8] sm:$0xff]
        %v3941 = vld [vmem:[%s1181 + $0xb0] sm:$0xff]
        %v3942 = vld [vmem:[%s1181 + $0xb8] sm:$0xff]
        %v3943 = vld [vmem:[%s1181 + $0xc0] sm:$0xff]
        %v3944 = vld [vmem:[%s1181 + $0xc8] sm:$0xff]
        %v3945 = vld [vmem:[%s1181 + $0xd0] sm:$0xff]
        %v3946 = vld [vmem:[%s1181 + $0xd8] sm:$0xff]
        %v3947 = vld [vmem:[%s1181 + $0xe0] sm:$0xff]
        %v3948 = vld [vmem:[%s1181 + $0xe8] sm:$0xff]
        %v3949 = vld [vmem:[%s1181 + $0xf0] sm:$0xff]
        %v3950 = vld [vmem:[%s1181 + $0xf8] sm:$0xff]
        %v3951 = vld [vmem:[%s1181 + $0x100] sm:$0xff]
        %v3952 = vld [vmem:[%s1181 + $0x108] sm:$0xff]
        %v3953 = vld [vmem:[%s1181 + $0x110] sm:$0xff]
        %v3954 = vld [vmem:[%s1181 + $0x118] sm:$0xff]
        %v3957 = vunpack.c.l.b16 %v3917
        %v3958 = vunpack.c.h.b16 %v3917
        %v3959 = vunpack.c.l.b16 %v3918
        %v3960 = vunpack.c.h.b16 %v3918
        %v3961 = vpack.c.b16 %v3959, %v3957
        %v3962 = vpack.c.b16 %v3960, %v3958
        %3963 = vrot.lane.b32.xlu0 %v3961, 112
        %v3964 = vpop.permute.xlu0 %3963
        %3965 = vrot.lane.b32.xlu0 %v3962, 112
        %v3966 = vpop.permute.xlu0 %3965
        %v3967 = vsel %vm1608, %v3964, %v3966
        %v4005 = vunpack.c.l.b16 %v3919
        %v4006 = vunpack.c.h.b16 %v3919
        %v4007 = vunpack.c.l.b16 %v3920
        %v4008 = vunpack.c.h.b16 %v3920
        %v4009 = vunpack.c.l.b16 %v3921
        %v4010 = vunpack.c.h.b16 %v3921
        %v4011 = vunpack.c.l.b16 %v3922
        %v4012 = vunpack.c.h.b16 %v3922
        %v4013 = vunpack.c.l.b16 %v3923
        %v4014 = vunpack.c.h.b16 %v3923
        %v4015 = vunpack.c.l.b16 %v3924
        %v4016 = vunpack.c.h.b16 %v3924
        %v4017 = vunpack.c.l.b16 %v3925
        %v4018 = vunpack.c.h.b16 %v3925
        %v4019 = vunpack.c.l.b16 %v3926
        %v4020 = vunpack.c.h.b16 %v3926
        %v4021 = vunpack.c.l.b16 %v3927
        %v4022 = vunpack.c.h.b16 %v3927
        %v4023 = vunpack.c.l.b16 %v3928
        %v4024 = vunpack.c.h.b16 %v3928
        %v4025 = vunpack.c.l.b16 %v3929
        %v4026 = vunpack.c.h.b16 %v3929
        %v4027 = vunpack.c.l.b16 %v3930
        %v4028 = vunpack.c.h.b16 %v3930
        %v4029 = vunpack.c.l.b16 %v3931
        %v4030 = vunpack.c.h.b16 %v3931
        %v4031 = vunpack.c.l.b16 %v3932
        %v4032 = vunpack.c.h.b16 %v3932
        %v4033 = vunpack.c.l.b16 %v3933
        %v4034 = vunpack.c.h.b16 %v3933
        %v4035 = vunpack.c.l.b16 %v3934
        %v4036 = vunpack.c.h.b16 %v3934
        %v4037 = vunpack.c.l.b16 %v3935
        %v4038 = vunpack.c.h.b16 %v3935
        %v4039 = vunpack.c.l.b16 %v3936
        %v4040 = vunpack.c.h.b16 %v3936
        %v4041 = vunpack.c.l.b16 %v3937
        %v4042 = vunpack.c.h.b16 %v3937
        %v4043 = vunpack.c.l.b16 %v3938
        %v4044 = vunpack.c.h.b16 %v3938
        %v4045 = vunpack.c.l.b16 %v3939
        %v4046 = vunpack.c.h.b16 %v3939
        %v4047 = vunpack.c.l.b16 %v3940
        %v4048 = vunpack.c.h.b16 %v3940
        %v4049 = vunpack.c.l.b16 %v3941
        %v4050 = vunpack.c.h.b16 %v3941
        %v4051 = vunpack.c.l.b16 %v3942
        %v4052 = vunpack.c.h.b16 %v3942
        %v4053 = vunpack.c.l.b16 %v3943
        %v4054 = vunpack.c.h.b16 %v3943
        %v4055 = vunpack.c.l.b16 %v3944
        %v4056 = vunpack.c.h.b16 %v3944
        %v4057 = vunpack.c.l.b16 %v3945
        %v4058 = vunpack.c.h.b16 %v3945
        %v4059 = vunpack.c.l.b16 %v3946
        %v4060 = vunpack.c.h.b16 %v3946
        %v4061 = vunpack.c.l.b16 %v3947
        %v4062 = vunpack.c.h.b16 %v3947
        %v4063 = vunpack.c.l.b16 %v3948
        %v4064 = vunpack.c.h.b16 %v3948
        %v4065 = vunpack.c.l.b16 %v3949
        %v4066 = vunpack.c.h.b16 %v3949
        %v4067 = vunpack.c.l.b16 %v3950
        %v4068 = vunpack.c.h.b16 %v3950
        %v4069 = vunpack.c.l.b16 %v3951
        %v4070 = vunpack.c.h.b16 %v3951
        %v4071 = vunpack.c.l.b16 %v3952
        %v4072 = vunpack.c.h.b16 %v3952
        %v4073 = vunpack.c.l.b16 %v3953
        %v4074 = vunpack.c.h.b16 %v3953
        %v4075 = vunpack.c.l.b16 %v3954
        %v4076 = vunpack.c.h.b16 %v3954
        %v4077 = vpack.c.b16 %v4009, %v4005
        %v4078 = vpack.c.b16 %v4010, %v4006
        %v4079 = vpack.c.b16 %v4011, %v4007
        %v4080 = vpack.c.b16 %v4012, %v4008
        %v4081 = vpack.c.b16 %v4017, %v4013
        %v4082 = vpack.c.b16 %v4018, %v4014
        %v4083 = vpack.c.b16 %v4019, %v4015
        %v4084 = vpack.c.b16 %v4020, %v4016
        %v4085 = vpack.c.b16 %v4025, %v4021
        %v4086 = vpack.c.b16 %v4026, %v4022
        %v4087 = vpack.c.b16 %v4027, %v4023
        %v4088 = vpack.c.b16 %v4028, %v4024
        %v4089 = vpack.c.b16 %v4033, %v4029
        %v4090 = vpack.c.b16 %v4034, %v4030
        %v4091 = vpack.c.b16 %v4035, %v4031
        %v4092 = vpack.c.b16 %v4036, %v4032
        %v4093 = vpack.c.b16 %v4041, %v4037
        %v4094 = vpack.c.b16 %v4042, %v4038
        %v4095 = vpack.c.b16 %v4043, %v4039
        %v4096 = vpack.c.b16 %v4044, %v4040
        %v4097 = vpack.c.b16 %v4049, %v4045
        %v4098 = vpack.c.b16 %v4050, %v4046
        %v4099 = vpack.c.b16 %v4051, %v4047
        %v4100 = vpack.c.b16 %v4052, %v4048
        %v4101 = vpack.c.b16 %v4057, %v4053
        %v4102 = vpack.c.b16 %v4058, %v4054
        %v4103 = vpack.c.b16 %v4059, %v4055
        %v4104 = vpack.c.b16 %v4060, %v4056
        %v4105 = vpack.c.b16 %v4065, %v4061
        %v4106 = vpack.c.b16 %v4066, %v4062
        %v4107 = vpack.c.b16 %v4067, %v4063
        %v4108 = vpack.c.b16 %v4068, %v4064
        %v4109 = vpack.c.b16 %v4073, %v4069
        %v4110 = vpack.c.b16 %v4074, %v4070
        %v4111 = vpack.c.b16 %v4075, %v4071
        %v4112 = vpack.c.b16 %v4076, %v4072
        %v4150 = vsel %vm445, %v3966, 0
        %4152 = vmatpush.bf16.msra.mxu0 %v4105
        %4153 = vmatpush.bf16.msra.mxu0 %v4101
        %4154 = vmatpush.bf16.msra.mxu0 %v4097
        %4155 = vmatpush.bf16.msra.mxu0 %v4093
        %4156 = vmatpush.bf16.msra.mxu0 %v4089
        %4157 = vmatpush.bf16.msra.mxu0 %v4085
        %4158 = vmatpush.bf16.msra.mxu0 %v4081
        %4159 = vmatpush.bf16.msra.mxu0 %v4077
        %4160 = vmatmul.bf16.gmra.mxu0 %v3967
        %v4161 = vpop.f32.mrf.mxu0
        %v4162 = vadd.f32 0.0, %v4161
        %v4163 = vpop.f32.mrf.mxu0
        %v4164 = vadd.f32 0.0, %v4163
        %4165 = vdwg.mxu0
        %4166 = vmatpush.bf16.msra.mxu0 0
        %4167 = vmatpush.bf16.msra.mxu0 0
        %4168 = vmatpush.bf16.msra.mxu0 0
        %4169 = vmatpush.bf16.msra.mxu0 0
        %4170 = vmatpush.bf16.msra.mxu0 0
        %4171 = vmatpush.bf16.msra.mxu0 0
        %4172 = vmatpush.bf16.msra.mxu0 0
        %4173 = vmatpush.bf16.msra.mxu0 %v4109
        %4174 = vmatmul.bf16.gmra.mxu0 %v4150
        %v4175 = vpop.f32.mrf.mxu0
        %v4176 = vadd.f32 %v4162, %v4175
        %v4177 = vpop.f32.mrf.mxu0
        %v4178 = vadd.f32 %v4164, %v4177
        %4179 = vdwg.mxu0
        %4180 = vmatpush.bf16.msra.mxu0 %v4106
        %4181 = vmatpush.bf16.msra.mxu0 %v4102
        %4182 = vmatpush.bf16.msra.mxu0 %v4098
        %4183 = vmatpush.bf16.msra.mxu0 %v4094
        %4184 = vmatpush.bf16.msra.mxu0 %v4090
        %4185 = vmatpush.bf16.msra.mxu0 %v4086
        %4186 = vmatpush.bf16.msra.mxu0 %v4082
        %4187 = vmatpush.bf16.msra.mxu0 %v4078
        %4188 = vmatmul.bf16.gmra.mxu0 %v3967
        %v4189 = vpop.f32.mrf.mxu0
        %v4190 = vadd.f32 0.0, %v4189
        %v4191 = vpop.f32.mrf.mxu0
        %v4192 = vadd.f32 0.0, %v4191
        %4193 = vdwg.mxu0
        %4194 = vmatpush.bf16.msra.mxu0 0
        %4195 = vmatpush.bf16.msra.mxu0 0
        %4196 = vmatpush.bf16.msra.mxu0 0
        %4197 = vmatpush.bf16.msra.mxu0 0
        %4198 = vmatpush.bf16.msra.mxu0 0
        %4199 = vmatpush.bf16.msra.mxu0 0
        %4200 = vmatpush.bf16.msra.mxu0 0
        %4201 = vmatpush.bf16.msra.mxu0 %v4110
        %4202 = vmatmul.bf16.gmra.mxu0 %v4150
        %v4203 = vpop.f32.mrf.mxu0
        %v4204 = vadd.f32 %v4190, %v4203
        %v4205 = vpop.f32.mrf.mxu0
        %v4206 = vadd.f32 %v4192, %v4205
        %4207 = vdwg.mxu0
        %4208 = vmatpush.bf16.msra.mxu0 %v4107
        %4209 = vmatpush.bf16.msra.mxu0 %v4103
        %4210 = vmatpush.bf16.msra.mxu0 %v4099
        %4211 = vmatpush.bf16.msra.mxu0 %v4095
        %4212 = vmatpush.bf16.msra.mxu0 %v4091
        %4213 = vmatpush.bf16.msra.mxu0 %v4087
        %4214 = vmatpush.bf16.msra.mxu0 %v4083
        %4215 = vmatpush.bf16.msra.mxu0 %v4079
        %4216 = vmatmul.bf16.gmra.mxu0 %v3967
        %v4217 = vpop.f32.mrf.mxu0
        %v4218 = vadd.f32 0.0, %v4217
        %v4219 = vpop.f32.mrf.mxu0
        %v4220 = vadd.f32 0.0, %v4219
        %4221 = vdwg.mxu0
        %4222 = vmatpush.bf16.msra.mxu0 0
        %4223 = vmatpush.bf16.msra.mxu0 0
        %4224 = vmatpush.bf16.msra.mxu0 0
        %4225 = vmatpush.bf16.msra.mxu0 0
        %4226 = vmatpush.bf16.msra.mxu0 0
        %4227 = vmatpush.bf16.msra.mxu0 0
        %4228 = vmatpush.bf16.msra.mxu0 0
        %4229 = vmatpush.bf16.msra.mxu0 %v4111
        %4230 = vmatmul.bf16.gmra.mxu0 %v4150
        %v4231 = vpop.f32.mrf.mxu0
        %v4232 = vadd.f32 %v4218, %v4231
        %v4233 = vpop.f32.mrf.mxu0
        %v4234 = vadd.f32 %v4220, %v4233
        %4235 = vdwg.mxu0
        %4236 = vmatpush.bf16.msra.mxu0 %v4108
        %4237 = vmatpush.bf16.msra.mxu0 %v4104
        %4238 = vmatpush.bf16.msra.mxu0 %v4100
        %4239 = vmatpush.bf16.msra.mxu0 %v4096
        %4240 = vmatpush.bf16.msra.mxu0 %v4092
        %4241 = vmatpush.bf16.msra.mxu0 %v4088
        %4242 = vmatpush.bf16.msra.mxu0 %v4084
        %4243 = vmatpush.bf16.msra.mxu0 %v4080
        %4244 = vmatmul.bf16.gmra.mxu0 %v3967
        %v4245 = vpop.f32.mrf.mxu0
        %v4246 = vadd.f32 0.0, %v4245
        %v4247 = vpop.f32.mrf.mxu0
        %v4248 = vadd.f32 0.0, %v4247
        %4249 = vdwg.mxu0
        %4250 = vmatpush.bf16.msra.mxu0 0
        %4251 = vmatpush.bf16.msra.mxu0 0
        %4252 = vmatpush.bf16.msra.mxu0 0
        %4253 = vmatpush.bf16.msra.mxu0 0
        %4254 = vmatpush.bf16.msra.mxu0 0
        %4255 = vmatpush.bf16.msra.mxu0 0
        %4256 = vmatpush.bf16.msra.mxu0 0
        %4257 = vmatpush.bf16.msra.mxu0 %v4112
        %4258 = vmatmul.bf16.gmra.mxu0 %v4150
        %v4259 = vpop.f32.mrf.mxu0
        %v4260 = vadd.f32 %v4246, %v4259
        %v4261 = vpop.f32.mrf.mxu0
        %v4262 = vadd.f32 %v4248, %v4261
        %4263 = vdwg.mxu0
        %v4266 = vunpack.c.l.b16 %v3471
        %v4267 = vunpack.c.h.b16 %v3471
        %v4268 = vunpack.c.l.b16 %v3472
        %v4269 = vunpack.c.h.b16 %v3472
        %v4270 = vpack.c.b16 %v4268, %v4266
        %v4271 = vpack.c.b16 %v4269, %v4267
        %v4309 = vunpack.c.l.b16 %v3473
        %v4310 = vunpack.c.h.b16 %v3473
        %v4311 = vunpack.c.l.b16 %v3474
        %v4312 = vunpack.c.h.b16 %v3474
        %v4313 = vunpack.c.l.b16 %v3475
        %v4314 = vunpack.c.h.b16 %v3475
        %v4315 = vunpack.c.l.b16 %v3476
        %v4316 = vunpack.c.h.b16 %v3476
        %v4317 = vunpack.c.l.b16 %v3477
        %v4318 = vunpack.c.h.b16 %v3477
        %v4319 = vunpack.c.l.b16 %v3478
        %v4320 = vunpack.c.h.b16 %v3478
        %v4321 = vunpack.c.l.b16 %v3479
        %v4322 = vunpack.c.h.b16 %v3479
        %v4323 = vunpack.c.l.b16 %v3480
        %v4324 = vunpack.c.h.b16 %v3480
        %v4325 = vunpack.c.l.b16 %v3481
        %v4326 = vunpack.c.h.b16 %v3481
        %v4327 = vunpack.c.l.b16 %v3482
        %v4328 = vunpack.c.h.b16 %v3482
        %v4329 = vunpack.c.l.b16 %v3483
        %v4330 = vunpack.c.h.b16 %v3483
        %v4331 = vunpack.c.l.b16 %v3484
        %v4332 = vunpack.c.h.b16 %v3484
        %v4333 = vunpack.c.l.b16 %v3485
        %v4334 = vunpack.c.h.b16 %v3485
        %v4335 = vunpack.c.l.b16 %v3486
        %v4336 = vunpack.c.h.b16 %v3486
        %v4337 = vunpack.c.l.b16 %v3487
        %v4338 = vunpack.c.h.b16 %v3487
        %v4339 = vunpack.c.l.b16 %v3488
        %v4340 = vunpack.c.h.b16 %v3488
        %v4341 = vunpack.c.l.b16 %v3489
        %v4342 = vunpack.c.h.b16 %v3489
        %v4343 = vunpack.c.l.b16 %v3490
        %v4344 = vunpack.c.h.b16 %v3490
        %v4345 = vunpack.c.l.b16 %v3491
        %v4346 = vunpack.c.h.b16 %v3491
        %v4347 = vunpack.c.l.b16 %v3492
        %v4348 = vunpack.c.h.b16 %v3492
        %v4349 = vunpack.c.l.b16 %v3493
        %v4350 = vunpack.c.h.b16 %v3493
        %v4351 = vunpack.c.l.b16 %v3494
        %v4352 = vunpack.c.h.b16 %v3494
        %v4353 = vunpack.c.l.b16 %v3495
        %v4354 = vunpack.c.h.b16 %v3495
        %v4355 = vunpack.c.l.b16 %v3496
        %v4356 = vunpack.c.h.b16 %v3496
        %v4357 = vunpack.c.l.b16 %v3497
        %v4358 = vunpack.c.h.b16 %v3497
        %v4359 = vunpack.c.l.b16 %v3498
        %v4360 = vunpack.c.h.b16 %v3498
        %v4361 = vunpack.c.l.b16 %v3499
        %v4362 = vunpack.c.h.b16 %v3499
        %v4363 = vunpack.c.l.b16 %v3500
        %v4364 = vunpack.c.h.b16 %v3500
        %v4365 = vunpack.c.l.b16 %v3501
        %v4366 = vunpack.c.h.b16 %v3501
        %v4367 = vunpack.c.l.b16 %v3502
        %v4368 = vunpack.c.h.b16 %v3502
        %v4369 = vunpack.c.l.b16 %v3503
        %v4370 = vunpack.c.h.b16 %v3503
        %v4371 = vunpack.c.l.b16 %v3504
        %v4372 = vunpack.c.h.b16 %v3504
        %v4373 = vunpack.c.l.b16 %v3505
        %v4374 = vunpack.c.h.b16 %v3505
        %v4375 = vunpack.c.l.b16 %v3506
        %v4376 = vunpack.c.h.b16 %v3506
        %v4377 = vunpack.c.l.b16 %v3507
        %v4378 = vunpack.c.h.b16 %v3507
        %v4379 = vunpack.c.l.b16 %v3508
        %v4380 = vunpack.c.h.b16 %v3508
        %v4381 = vpack.c.b16 %v4313, %v4309
        %v4382 = vpack.c.b16 %v4314, %v4310
        %v4383 = vpack.c.b16 %v4315, %v4311
        %v4384 = vpack.c.b16 %v4316, %v4312
        %v4385 = vpack.c.b16 %v4321, %v4317
        %v4386 = vpack.c.b16 %v4322, %v4318
        %v4387 = vpack.c.b16 %v4323, %v4319
        %v4388 = vpack.c.b16 %v4324, %v4320
        %v4389 = vpack.c.b16 %v4329, %v4325
        %v4390 = vpack.c.b16 %v4330, %v4326
        %v4391 = vpack.c.b16 %v4331, %v4327
        %v4392 = vpack.c.b16 %v4332, %v4328
        %v4393 = vpack.c.b16 %v4337, %v4333
        %v4394 = vpack.c.b16 %v4338, %v4334
        %v4395 = vpack.c.b16 %v4339, %v4335
        %v4396 = vpack.c.b16 %v4340, %v4336
        %v4397 = vpack.c.b16 %v4345, %v4341
        %v4398 = vpack.c.b16 %v4346, %v4342
        %v4399 = vpack.c.b16 %v4347, %v4343
        %v4400 = vpack.c.b16 %v4348, %v4344
        %v4401 = vpack.c.b16 %v4353, %v4349
        %v4402 = vpack.c.b16 %v4354, %v4350
        %v4403 = vpack.c.b16 %v4355, %v4351
        %v4404 = vpack.c.b16 %v4356, %v4352
        %v4405 = vpack.c.b16 %v4361, %v4357
        %v4406 = vpack.c.b16 %v4362, %v4358
        %v4407 = vpack.c.b16 %v4363, %v4359
        %v4408 = vpack.c.b16 %v4364, %v4360
        %v4409 = vpack.c.b16 %v4369, %v4365
        %v4410 = vpack.c.b16 %v4370, %v4366
        %v4411 = vpack.c.b16 %v4371, %v4367
        %v4412 = vpack.c.b16 %v4372, %v4368
        %v4413 = vpack.c.b16 %v4377, %v4373
        %v4414 = vpack.c.b16 %v4378, %v4374
        %v4415 = vpack.c.b16 %v4379, %v4375
        %v4416 = vpack.c.b16 %v4380, %v4376
        %v4454 = vsel %vm445, %v4271, 0
        %4456 = vmatpush.bf16.msra.mxu0 %v4409
        %4457 = vmatpush.bf16.msra.mxu0 %v4405
        %4458 = vmatpush.bf16.msra.mxu0 %v4401
        %4459 = vmatpush.bf16.msra.mxu0 %v4397
        %4460 = vmatpush.bf16.msra.mxu0 %v4393
        %4461 = vmatpush.bf16.msra.mxu0 %v4389
        %4462 = vmatpush.bf16.msra.mxu0 %v4385
        %4463 = vmatpush.bf16.msra.mxu0 %v4381
        %4464 = vmatmul.bf16.gmra.mxu0 %v4270
        %v4465 = vpop.f32.mrf.mxu0
        %v4466 = vadd.f32 %v4176, %v4465
        %v4467 = vpop.f32.mrf.mxu0
        %v4468 = vadd.f32 %v4178, %v4467
        %4469 = vdwg.mxu0
        %4470 = vmatpush.bf16.msra.mxu0 0
        %4471 = vmatpush.bf16.msra.mxu0 0
        %4472 = vmatpush.bf16.msra.mxu0 0
        %4473 = vmatpush.bf16.msra.mxu0 0
        %4474 = vmatpush.bf16.msra.mxu0 0
        %4475 = vmatpush.bf16.msra.mxu0 0
        %4476 = vmatpush.bf16.msra.mxu0 0
        %4477 = vmatpush.bf16.msra.mxu0 %v4413
        %4478 = vmatmul.bf16.gmra.mxu0 %v4454
        %v4479 = vpop.f32.mrf.mxu0
        %v4480 = vadd.f32 %v4466, %v4479
        %v4481 = vpop.f32.mrf.mxu0
        %v4482 = vadd.f32 %v4468, %v4481
        %4483 = vdwg.mxu0
        %4484 = vmatpush.bf16.msra.mxu0 %v4410
        %4485 = vmatpush.bf16.msra.mxu0 %v4406
        %4486 = vmatpush.bf16.msra.mxu0 %v4402
        %4487 = vmatpush.bf16.msra.mxu0 %v4398
        %4488 = vmatpush.bf16.msra.mxu0 %v4394
        %4489 = vmatpush.bf16.msra.mxu0 %v4390
        %4490 = vmatpush.bf16.msra.mxu0 %v4386
        %4491 = vmatpush.bf16.msra.mxu0 %v4382
        %4492 = vmatmul.bf16.gmra.mxu0 %v4270
        %v4493 = vpop.f32.mrf.mxu0
        %v4494 = vadd.f32 %v4204, %v4493
        %v4495 = vpop.f32.mrf.mxu0
        %v4496 = vadd.f32 %v4206, %v4495
        %4497 = vdwg.mxu0
        %4498 = vmatpush.bf16.msra.mxu0 0
        %4499 = vmatpush.bf16.msra.mxu0 0
        %4500 = vmatpush.bf16.msra.mxu0 0
        %4501 = vmatpush.bf16.msra.mxu0 0
        %4502 = vmatpush.bf16.msra.mxu0 0
        %4503 = vmatpush.bf16.msra.mxu0 0
        %4504 = vmatpush.bf16.msra.mxu0 0
        %4505 = vmatpush.bf16.msra.mxu0 %v4414
        %4506 = vmatmul.bf16.gmra.mxu0 %v4454
        %v4507 = vpop.f32.mrf.mxu0
        %v4508 = vadd.f32 %v4494, %v4507
        %v4509 = vpop.f32.mrf.mxu0
        %v4510 = vadd.f32 %v4496, %v4509
        %4511 = vdwg.mxu0
        %4512 = vmatpush.bf16.msra.mxu0 %v4411
        %4513 = vmatpush.bf16.msra.mxu0 %v4407
        %4514 = vmatpush.bf16.msra.mxu0 %v4403
        %4515 = vmatpush.bf16.msra.mxu0 %v4399
        %4516 = vmatpush.bf16.msra.mxu0 %v4395
        %4517 = vmatpush.bf16.msra.mxu0 %v4391
        %4518 = vmatpush.bf16.msra.mxu0 %v4387
        %4519 = vmatpush.bf16.msra.mxu0 %v4383
        %4520 = vmatmul.bf16.gmra.mxu0 %v4270
        %v4521 = vpop.f32.mrf.mxu0
        %v4522 = vadd.f32 %v4232, %v4521
        %v4523 = vpop.f32.mrf.mxu0
        %v4524 = vadd.f32 %v4234, %v4523
        %4525 = vdwg.mxu0
        %4526 = vmatpush.bf16.msra.mxu0 0
        %4527 = vmatpush.bf16.msra.mxu0 0
        %4528 = vmatpush.bf16.msra.mxu0 0
        %4529 = vmatpush.bf16.msra.mxu0 0
        %4530 = vmatpush.bf16.msra.mxu0 0
        %4531 = vmatpush.bf16.msra.mxu0 0
        %4532 = vmatpush.bf16.msra.mxu0 0
        %4533 = vmatpush.bf16.msra.mxu0 %v4415
        %4534 = vmatmul.bf16.gmra.mxu0 %v4454
        %v4535 = vpop.f32.mrf.mxu0
        %v4536 = vadd.f32 %v4522, %v4535
        %v4537 = vpop.f32.mrf.mxu0
        %v4538 = vadd.f32 %v4524, %v4537
        %4539 = vdwg.mxu0
        %4540 = vmatpush.bf16.msra.mxu0 %v4412
        %4541 = vmatpush.bf16.msra.mxu0 %v4408
        %4542 = vmatpush.bf16.msra.mxu0 %v4404
        %4543 = vmatpush.bf16.msra.mxu0 %v4400
        %4544 = vmatpush.bf16.msra.mxu0 %v4396
        %4545 = vmatpush.bf16.msra.mxu0 %v4392
        %4546 = vmatpush.bf16.msra.mxu0 %v4388
        %4547 = vmatpush.bf16.msra.mxu0 %v4384
        %4548 = vmatmul.bf16.gmra.mxu0 %v4270
        %v4549 = vpop.f32.mrf.mxu0
        %v4550 = vadd.f32 %v4260, %v4549
        %v4551 = vpop.f32.mrf.mxu0
        %v4552 = vadd.f32 %v4262, %v4551
        %4553 = vdwg.mxu0
        %4554 = vmatpush.bf16.msra.mxu0 0
        %4555 = vmatpush.bf16.msra.mxu0 0
        %4556 = vmatpush.bf16.msra.mxu0 0
        %4557 = vmatpush.bf16.msra.mxu0 0
        %4558 = vmatpush.bf16.msra.mxu0 0
        %4559 = vmatpush.bf16.msra.mxu0 0
        %4560 = vmatpush.bf16.msra.mxu0 0
        %4561 = vmatpush.bf16.msra.mxu0 %v4416
        %4562 = vmatmul.bf16.gmra.mxu0 %v4454
        %v4563 = vpop.f32.mrf.mxu0
        %v4564 = vadd.f32 %v4550, %v4563
        %v4565 = vpop.f32.mrf.mxu0
        %v4566 = vadd.f32 %v4552, %v4565
        %4567 = vdwg.mxu0
        %v4568 = vld [vmem:[%s2210] ss:$8 sm:$0xf]
        %v4570 = vperm.slane %v4568, 0
        %v4571 = vperm.slane %v4568, 1
        %v4572 = vperm.slane %v4568, 2
        %v4573 = vperm.slane %v4568, 3
        %v4578 = vmul.f32 %v3041, %v4570
        %v4579 = vmul.f32 %v3039, %v4571
        %v4580 = vmul.f32 %v3037, %v4572
        %v4581 = vmul.f32 %v3043, %v4573
        %v4582 = vmul.f32 %v3042, %v4570
        %v4583 = vmul.f32 %v3040, %v4571
        %v4584 = vmul.f32 %v3038, %v4572
        %v4585 = vmul.f32 %v3044, %v4573
        %v4586 = vpack.c.bf16 %v4579, %v4578
        %v4587 = vpack.c.bf16 %v4581, %v4580
        %v4588 = vpack.c.bf16 %v4583, %v4582
        %v4589 = vpack.c.bf16 %v4585, %v4584
        %4590 = vst [vmem:[#allocation2] sm:$0xff] %v4586
        %4591 = vst [vmem:[#allocation2 + $0x8] sm:$0xff] %v4587
        %4592 = vst [vmem:[#allocation2 + $0x10] sm:$0xff] %v4588
        %4593 = vst [vmem:[#allocation2 + $0x18] sm:$0xff] %v4589
        %v4594 = vld [vmem:[%s2237] ss:$8 sm:$0xf]
        %v4596 = vperm.slane %v4594, 0
        %v4597 = vperm.slane %v4594, 1
        %v4598 = vperm.slane %v4594, 2
        %v4599 = vperm.slane %v4594, 3
        %v4604 = vmul.f32 %v3091, %v4596
        %v4605 = vmul.f32 %v3089, %v4597
        %v4606 = vmul.f32 %v3087, %v4598
        %v4607 = vmul.f32 %v3093, %v4599
        %v4608 = vmul.f32 %v3092, %v4596
        %v4609 = vmul.f32 %v3090, %v4597
        %v4610 = vmul.f32 %v3088, %v4598
        %v4611 = vmul.f32 %v3094, %v4599
        %v4612 = vpack.c.bf16 %v4605, %v4604
        %v4613 = vpack.c.bf16 %v4607, %v4606
        %v4614 = vpack.c.bf16 %v4609, %v4608
        %v4615 = vpack.c.bf16 %v4611, %v4610
        %4616 = vst [vmem:[#allocation2 + $0x20] sm:$0xff] %v4612
        %4617 = vst [vmem:[#allocation2 + $0x28] sm:$0xff] %v4613
        %4618 = vst [vmem:[#allocation2 + $0x30] sm:$0xff] %v4614
        %4619 = vst [vmem:[#allocation2 + $0x38] sm:$0xff] %v4615
        %v4620 = vld [vmem:[%s2264] ss:$8 sm:$0xf]
        %v4622 = vperm.slane %v4620, 0
        %v4623 = vperm.slane %v4620, 1
        %v4624 = vperm.slane %v4620, 2
        %v4625 = vperm.slane %v4620, 3
        %v4630 = vmul.f32 %v3141, %v4622
        %v4631 = vmul.f32 %v3139, %v4623
        %v4632 = vmul.f32 %v3137, %v4624
        %v4633 = vmul.f32 %v3143, %v4625
        %v4634 = vmul.f32 %v3142, %v4622
        %v4635 = vmul.f32 %v3140, %v4623
        %v4636 = vmul.f32 %v3138, %v4624
        %v4637 = vmul.f32 %v3144, %v4625
        %v4638 = vpack.c.bf16 %v4631, %v4630
        %v4639 = vpack.c.bf16 %v4633, %v4632
        %v4640 = vpack.c.bf16 %v4635, %v4634
        %v4641 = vpack.c.bf16 %v4637, %v4636
        %4642 = vst [vmem:[#allocation2 + $0x40] sm:$0xff] %v4638
        %4643 = vst [vmem:[#allocation2 + $0x48] sm:$0xff] %v4639
        %4644 = vst [vmem:[#allocation2 + $0x50] sm:$0xff] %v4640
        %4645 = vst [vmem:[#allocation2 + $0x58] sm:$0xff] %v4641
        %v4646 = vld [vmem:[%s2291] ss:$8 sm:$0xf]
        %v4648 = vperm.slane %v4646, 0
        %v4649 = vperm.slane %v4646, 1
        %v4650 = vperm.slane %v4646, 2
        %v4651 = vperm.slane %v4646, 3
        %v4656 = vmul.f32 %v3191, %v4648
        %v4657 = vmul.f32 %v3189, %v4649
        %v4658 = vmul.f32 %v3187, %v4650
        %v4659 = vmul.f32 %v3193, %v4651
        %v4660 = vmul.f32 %v3192, %v4648
        %v4661 = vmul.f32 %v3190, %v4649
        %v4662 = vmul.f32 %v3188, %v4650
        %v4663 = vmul.f32 %v3194, %v4651
        %v4664 = vpack.c.bf16 %v4657, %v4656
        %v4665 = vpack.c.bf16 %v4659, %v4658
        %v4666 = vpack.c.bf16 %v4661, %v4660
        %v4667 = vpack.c.bf16 %v4663, %v4662
        %4668 = vst [vmem:[#allocation2 + $0x60] sm:$0xff] %v4664
        %4669 = vst [vmem:[#allocation2 + $0x68] sm:$0xff] %v4665
        %4670 = vst [vmem:[#allocation2 + $0x70] sm:$0xff] %v4666
        %4671 = vst [vmem:[#allocation2 + $0x78] sm:$0xff] %v4667
        %v4672 = vld [vmem:[%s2318] ss:$8 sm:$0xf]
        %v4674 = vperm.slane %v4672, 0
        %v4675 = vperm.slane %v4672, 1
        %v4676 = vperm.slane %v4672, 2
        %v4677 = vperm.slane %v4672, 3
        %v4682 = vmul.f32 %v3241, %v4674
        %v4683 = vmul.f32 %v3239, %v4675
        %v4684 = vmul.f32 %v3237, %v4676
        %v4685 = vmul.f32 %v3243, %v4677
        %v4686 = vmul.f32 %v3242, %v4674
        %v4687 = vmul.f32 %v3240, %v4675
        %v4688 = vmul.f32 %v3238, %v4676
        %v4689 = vmul.f32 %v3244, %v4677
        %v4690 = vpack.c.bf16 %v4683, %v4682
        %v4691 = vpack.c.bf16 %v4685, %v4684
        %v4692 = vpack.c.bf16 %v4687, %v4686
        %v4693 = vpack.c.bf16 %v4689, %v4688
        %4694 = vst [vmem:[#allocation2 + $0x80] sm:$0xff] %v4690
        %4695 = vst [vmem:[#allocation2 + $0x88] sm:$0xff] %v4691
        %4696 = vst [vmem:[#allocation2 + $0x90] sm:$0xff] %v4692
        %4697 = vst [vmem:[#allocation2 + $0x98] sm:$0xff] %v4693
        %v4698 = vld [vmem:[%s2345] ss:$8 sm:$0xf]
        %v4700 = vperm.slane %v4698, 0
        %v4701 = vperm.slane %v4698, 1
        %v4702 = vperm.slane %v4698, 2
        %v4703 = vperm.slane %v4698, 3
        %v4708 = vmul.f32 %v3291, %v4700
        %v4709 = vmul.f32 %v3289, %v4701
        %v4710 = vmul.f32 %v3287, %v4702
        %v4711 = vmul.f32 %v3293, %v4703
        %v4712 = vmul.f32 %v3292, %v4700
        %v4713 = vmul.f32 %v3290, %v4701
        %v4714 = vmul.f32 %v3288, %v4702
        %v4715 = vmul.f32 %v3294, %v4703
        %v4716 = vpack.c.bf16 %v4709, %v4708
        %v4717 = vpack.c.bf16 %v4711, %v4710
        %v4718 = vpack.c.bf16 %v4713, %v4712
        %v4719 = vpack.c.bf16 %v4715, %v4714
        %4720 = vst [vmem:[#allocation2 + $0xa0] sm:$0xff] %v4716
        %4721 = vst [vmem:[#allocation2 + $0xa8] sm:$0xff] %v4717
        %4722 = vst [vmem:[#allocation2 + $0xb0] sm:$0xff] %v4718
        %4723 = vst [vmem:[#allocation2 + $0xb8] sm:$0xff] %v4719
        %v4724 = vld [vmem:[%s2372] ss:$8 sm:$0xf]
        %v4726 = vperm.slane %v4724, 0
        %v4727 = vperm.slane %v4724, 1
        %v4728 = vperm.slane %v4724, 2
        %v4729 = vperm.slane %v4724, 3
        %v4734 = vmul.f32 %v3341, %v4726
        %v4735 = vmul.f32 %v3339, %v4727
        %v4736 = vmul.f32 %v3337, %v4728
        %v4737 = vmul.f32 %v3343, %v4729
        %v4738 = vmul.f32 %v3342, %v4726
        %v4739 = vmul.f32 %v3340, %v4727
        %v4740 = vmul.f32 %v3338, %v4728
        %v4741 = vmul.f32 %v3344, %v4729
        %v4742 = vpack.c.bf16 %v4735, %v4734
        %v4743 = vpack.c.bf16 %v4737, %v4736
        %v4744 = vpack.c.bf16 %v4739, %v4738
        %v4745 = vpack.c.bf16 %v4741, %v4740
        %4746 = vst [vmem:[#allocation2 + $0xc0] sm:$0xff] %v4742
        %4747 = vst [vmem:[#allocation2 + $0xc8] sm:$0xff] %v4743
        %4748 = vst [vmem:[#allocation2 + $0xd0] sm:$0xff] %v4744
        %4749 = vst [vmem:[#allocation2 + $0xd8] sm:$0xff] %v4745
        %v4750 = vld [vmem:[%s2399] ss:$8 sm:$0xf]
        %v4752 = vperm.slane %v4750, 0
        %v4753 = vperm.slane %v4750, 1
        %v4754 = vperm.slane %v4750, 2
        %v4755 = vperm.slane %v4750, 3
        %v4760 = vmul.f32 %v3391, %v4752
        %v4761 = vmul.f32 %v3389, %v4753
        %v4762 = vmul.f32 %v3387, %v4754
        %v4763 = vmul.f32 %v3393, %v4755
        %v4764 = vmul.f32 %v3392, %v4752
        %v4765 = vmul.f32 %v3390, %v4753
        %v4766 = vmul.f32 %v3388, %v4754
        %v4767 = vmul.f32 %v3394, %v4755
        %v4768 = vpack.c.bf16 %v4761, %v4760
        %v4769 = vpack.c.bf16 %v4763, %v4762
        %v4770 = vpack.c.bf16 %v4765, %v4764
        %v4771 = vpack.c.bf16 %v4767, %v4766
        %4772 = vst [vmem:[#allocation2 + $0xe0] sm:$0xff] %v4768
        %4773 = vst [vmem:[#allocation2 + $0xe8] sm:$0xff] %v4769
        %4774 = vst [vmem:[#allocation2 + $0xf0] sm:$0xff] %v4770
        %4775 = vst [vmem:[#allocation2 + $0xf8] sm:$0xff] %v4771
        %v4776 = vld [vmem:[%s2426] ss:$8 sm:$0xf]
        %v4778 = vperm.slane %v4776, 0
        %v4779 = vperm.slane %v4776, 1
        %v4780 = vperm.slane %v4776, 2
        %v4781 = vperm.slane %v4776, 3
        %v4786 = vmul.f32 %v3441, %v4778
        %v4787 = vmul.f32 %v3439, %v4779
        %v4788 = vmul.f32 %v3437, %v4780
        %v4789 = vmul.f32 %v3443, %v4781
        %v4790 = vmul.f32 %v3442, %v4778
        %v4791 = vmul.f32 %v3440, %v4779
        %v4792 = vmul.f32 %v3438, %v4780
        %v4793 = vmul.f32 %v3444, %v4781
        %v4794 = vpack.c.bf16 %v4787, %v4786
        %v4795 = vpack.c.bf16 %v4789, %v4788
        %v4796 = vpack.c.bf16 %v4791, %v4790
        %v4797 = vpack.c.bf16 %v4793, %v4792
        %4798 = vst [vmem:[#allocation2 + $0x100] sm:$0xff] %v4794
        %4799 = vst [vmem:[#allocation2 + $0x108] sm:$0xff] %v4795
        %4800 = vst [vmem:[#allocation2 + $0x110] sm:$0xff] %v4796
        %4801 = vst [vmem:[#allocation2 + $0x118] sm:$0xff] %v4797
        %v4802 = vld [vmem:[%s7 + $0x8] sm:$0xff]
        %v4803 = vld [vmem:[%s7 + $0x18] sm:$0xff]
        %v4804 = vld [vmem:[#allocation2] sm:$0xff]
        %v4805 = vld [vmem:[#allocation2 + $0x8] sm:$0xff]
        %v4806 = vld [vmem:[#allocation2 + $0x10] sm:$0xff]
        %v4807 = vld [vmem:[#allocation2 + $0x18] sm:$0xff]
        %v4808 = vld [vmem:[#allocation2 + $0x20] sm:$0xff]
        %v4809 = vld [vmem:[#allocation2 + $0x28] sm:$0xff]
        %v4810 = vld [vmem:[#allocation2 + $0x30] sm:$0xff]
        %v4811 = vld [vmem:[#allocation2 + $0x38] sm:$0xff]
        %v4812 = vld [vmem:[#allocation2 + $0x40] sm:$0xff]
        %v4813 = vld [vmem:[#allocation2 + $0x48] sm:$0xff]
        %v4814 = vld [vmem:[#allocation2 + $0x50] sm:$0xff]
        %v4815 = vld [vmem:[#allocation2 + $0x58] sm:$0xff]
        %v4816 = vld [vmem:[#allocation2 + $0x60] sm:$0xff]
        %v4817 = vld [vmem:[#allocation2 + $0x68] sm:$0xff]
        %v4818 = vld [vmem:[#allocation2 + $0x70] sm:$0xff]
        %v4819 = vld [vmem:[#allocation2 + $0x78] sm:$0xff]
        %v4820 = vld [vmem:[#allocation2 + $0x80] sm:$0xff]
        %v4821 = vld [vmem:[#allocation2 + $0x88] sm:$0xff]
        %v4822 = vld [vmem:[#allocation2 + $0x90] sm:$0xff]
        %v4823 = vld [vmem:[#allocation2 + $0x98] sm:$0xff]
        %v4824 = vld [vmem:[#allocation2 + $0xa0] sm:$0xff]
        %v4825 = vld [vmem:[#allocation2 + $0xa8] sm:$0xff]
        %v4826 = vld [vmem:[#allocation2 + $0xb0] sm:$0xff]
        %v4827 = vld [vmem:[#allocation2 + $0xb8] sm:$0xff]
        %v4828 = vld [vmem:[#allocation2 + $0xc0] sm:$0xff]
        %v4829 = vld [vmem:[#allocation2 + $0xc8] sm:$0xff]
        %v4830 = vld [vmem:[#allocation2 + $0xd0] sm:$0xff]
        %v4831 = vld [vmem:[#allocation2 + $0xd8] sm:$0xff]
        %v4832 = vld [vmem:[#allocation2 + $0xe0] sm:$0xff]
        %v4833 = vld [vmem:[#allocation2 + $0xe8] sm:$0xff]
        %v4834 = vld [vmem:[#allocation2 + $0xf0] sm:$0xff]
        %v4835 = vld [vmem:[#allocation2 + $0xf8] sm:$0xff]
        %v4836 = vld [vmem:[#allocation2 + $0x100] sm:$0xff]
        %v4837 = vld [vmem:[#allocation2 + $0x108] sm:$0xff]
        %v4838 = vld [vmem:[#allocation2 + $0x110] sm:$0xff]
        %v4839 = vld [vmem:[#allocation2 + $0x118] sm:$0xff]
        %v4842 = vunpack.c.l.b16 %v4802
        %v4843 = vunpack.c.h.b16 %v4802
        %v4844 = vunpack.c.l.b16 %v4803
        %v4845 = vunpack.c.h.b16 %v4803
        %v4846 = vpack.c.b16 %v4844, %v4842
        %v4847 = vpack.c.b16 %v4845, %v4843
        %4848 = vrot.lane.b32.xlu0 %v4846, 96
        %v4849 = vpop.permute.xlu0 %4848
        %4850 = vrot.lane.b32.xlu0 %v4847, 96
        %v4851 = vpop.permute.xlu0 %4850
        %v4852 = vsel %vm2503, %v4849, %v4851
        %v4890 = vunpack.c.l.b16 %v4804
        %v4891 = vunpack.c.h.b16 %v4804
        %v4892 = vunpack.c.l.b16 %v4805
        %v4893 = vunpack.c.h.b16 %v4805
        %v4894 = vunpack.c.l.b16 %v4806
        %v4895 = vunpack.c.h.b16 %v4806
        %v4896 = vunpack.c.l.b16 %v4807
        %v4897 = vunpack.c.h.b16 %v4807
        %v4898 = vunpack.c.l.b16 %v4808
        %v4899 = vunpack.c.h.b16 %v4808
        %v4900 = vunpack.c.l.b16 %v4809
        %v4901 = vunpack.c.h.b16 %v4809
        %v4902 = vunpack.c.l.b16 %v4810
        %v4903 = vunpack.c.h.b16 %v4810
        %v4904 = vunpack.c.l.b16 %v4811
        %v4905 = vunpack.c.h.b16 %v4811
        %v4906 = vunpack.c.l.b16 %v4812
        %v4907 = vunpack.c.h.b16 %v4812
        %v4908 = vunpack.c.l.b16 %v4813
        %v4909 = vunpack.c.h.b16 %v4813
        %v4910 = vunpack.c.l.b16 %v4814
        %v4911 = vunpack.c.h.b16 %v4814
        %v4912 = vunpack.c.l.b16 %v4815
        %v4913 = vunpack.c.h.b16 %v4815
        %v4914 = vunpack.c.l.b16 %v4816
        %v4915 = vunpack.c.h.b16 %v4816
        %v4916 = vunpack.c.l.b16 %v4817
        %v4917 = vunpack.c.h.b16 %v4817
        %v4918 = vunpack.c.l.b16 %v4818
        %v4919 = vunpack.c.h.b16 %v4818
        %v4920 = vunpack.c.l.b16 %v4819
        %v4921 = vunpack.c.h.b16 %v4819
        %v4922 = vunpack.c.l.b16 %v4820
        %v4923 = vunpack.c.h.b16 %v4820
        %v4924 = vunpack.c.l.b16 %v4821
        %v4925 = vunpack.c.h.b16 %v4821
        %v4926 = vunpack.c.l.b16 %v4822
        %v4927 = vunpack.c.h.b16 %v4822
        %v4928 = vunpack.c.l.b16 %v4823
        %v4929 = vunpack.c.h.b16 %v4823
        %v4930 = vunpack.c.l.b16 %v4824
        %v4931 = vunpack.c.h.b16 %v4824
        %v4932 = vunpack.c.l.b16 %v4825
        %v4933 = vunpack.c.h.b16 %v4825
        %v4934 = vunpack.c.l.b16 %v4826
        %v4935 = vunpack.c.h.b16 %v4826
        %v4936 = vunpack.c.l.b16 %v4827
        %v4937 = vunpack.c.h.b16 %v4827
        %v4938 = vunpack.c.l.b16 %v4828
        %v4939 = vunpack.c.h.b16 %v4828
        %v4940 = vunpack.c.l.b16 %v4829
        %v4941 = vunpack.c.h.b16 %v4829
        %v4942 = vunpack.c.l.b16 %v4830
        %v4943 = vunpack.c.h.b16 %v4830
        %v4944 = vunpack.c.l.b16 %v4831
        %v4945 = vunpack.c.h.b16 %v4831
        %v4946 = vunpack.c.l.b16 %v4832
        %v4947 = vunpack.c.h.b16 %v4832
        %v4948 = vunpack.c.l.b16 %v4833
        %v4949 = vunpack.c.h.b16 %v4833
        %v4950 = vunpack.c.l.b16 %v4834
        %v4951 = vunpack.c.h.b16 %v4834
        %v4952 = vunpack.c.l.b16 %v4835
        %v4953 = vunpack.c.h.b16 %v4835
        %v4954 = vunpack.c.l.b16 %v4836
        %v4955 = vunpack.c.h.b16 %v4836
        %v4956 = vunpack.c.l.b16 %v4837
        %v4957 = vunpack.c.h.b16 %v4837
        %v4958 = vunpack.c.l.b16 %v4838
        %v4959 = vunpack.c.h.b16 %v4838
        %v4960 = vunpack.c.l.b16 %v4839
        %v4961 = vunpack.c.h.b16 %v4839
        %v4962 = vpack.c.b16 %v4894, %v4890
        %v4963 = vpack.c.b16 %v4895, %v4891
        %v4964 = vpack.c.b16 %v4896, %v4892
        %v4965 = vpack.c.b16 %v4897, %v4893
        %v4966 = vpack.c.b16 %v4902, %v4898
        %v4967 = vpack.c.b16 %v4903, %v4899
        %v4968 = vpack.c.b16 %v4904, %v4900
        %v4969 = vpack.c.b16 %v4905, %v4901
        %v4970 = vpack.c.b16 %v4910, %v4906
        %v4971 = vpack.c.b16 %v4911, %v4907
        %v4972 = vpack.c.b16 %v4912, %v4908
        %v4973 = vpack.c.b16 %v4913, %v4909
        %v4974 = vpack.c.b16 %v4918, %v4914
        %v4975 = vpack.c.b16 %v4919, %v4915
        %v4976 = vpack.c.b16 %v4920, %v4916
        %v4977 = vpack.c.b16 %v4921, %v4917
        %v4978 = vpack.c.b16 %v4926, %v4922
        %v4979 = vpack.c.b16 %v4927, %v4923
        %v4980 = vpack.c.b16 %v4928, %v4924
        %v4981 = vpack.c.b16 %v4929, %v4925
        %v4982 = vpack.c.b16 %v4934, %v4930
        %v4983 = vpack.c.b16 %v4935, %v4931
        %v4984 = vpack.c.b16 %v4936, %v4932
        %v4985 = vpack.c.b16 %v4937, %v4933
        %v4986 = vpack.c.b16 %v4942, %v4938
        %v4987 = vpack.c.b16 %v4943, %v4939
        %v4988 = vpack.c.b16 %v4944, %v4940
        %v4989 = vpack.c.b16 %v4945, %v4941
        %v4990 = vpack.c.b16 %v4950, %v4946
        %v4991 = vpack.c.b16 %v4951, %v4947
        %v4992 = vpack.c.b16 %v4952, %v4948
        %v4993 = vpack.c.b16 %v4953, %v4949
        %v4994 = vpack.c.b16 %v4958, %v4954
        %v4995 = vpack.c.b16 %v4959, %v4955
        %v4996 = vpack.c.b16 %v4960, %v4956
        %v4997 = vpack.c.b16 %v4961, %v4957
        %v5035 = vsel %vm445, %v4851, 0
        %5037 = vmatpush.bf16.msra.mxu0 %v4990
        %5038 = vmatpush.bf16.msra.mxu0 %v4986
        %5039 = vmatpush.bf16.msra.mxu0 %v4982
        %5040 = vmatpush.bf16.msra.mxu0 %v4978
        %5041 = vmatpush.bf16.msra.mxu0 %v4974
        %5042 = vmatpush.bf16.msra.mxu0 %v4970
        %5043 = vmatpush.bf16.msra.mxu0 %v4966
        %5044 = vmatpush.bf16.msra.mxu0 %v4962
        %5045 = vmatmul.bf16.gmra.mxu0 %v4852
        %v5046 = vpop.f32.mrf.mxu0
        %v5047 = vadd.f32 0.0, %v5046
        %v5048 = vpop.f32.mrf.mxu0
        %v5049 = vadd.f32 0.0, %v5048
        %5050 = vdwg.mxu0
        %5051 = vmatpush.bf16.msra.mxu0 0
        %5052 = vmatpush.bf16.msra.mxu0 0
        %5053 = vmatpush.bf16.msra.mxu0 0
        %5054 = vmatpush.bf16.msra.mxu0 0
        %5055 = vmatpush.bf16.msra.mxu0 0
        %5056 = vmatpush.bf16.msra.mxu0 0
        %5057 = vmatpush.bf16.msra.mxu0 0
        %5058 = vmatpush.bf16.msra.mxu0 %v4994
        %5059 = vmatmul.bf16.gmra.mxu0 %v5035
        %v5060 = vpop.f32.mrf.mxu0
        %v5061 = vadd.f32 %v5047, %v5060
        %v5062 = vpop.f32.mrf.mxu0
        %v5063 = vadd.f32 %v5049, %v5062
        %5064 = vdwg.mxu0
        %5065 = vmatpush.bf16.msra.mxu0 %v4991
        %5066 = vmatpush.bf16.msra.mxu0 %v4987
        %5067 = vmatpush.bf16.msra.mxu0 %v4983
        %5068 = vmatpush.bf16.msra.mxu0 %v4979
        %5069 = vmatpush.bf16.msra.mxu0 %v4975
        %5070 = vmatpush.bf16.msra.mxu0 %v4971
        %5071 = vmatpush.bf16.msra.mxu0 %v4967
        %5072 = vmatpush.bf16.msra.mxu0 %v4963
        %5073 = vmatmul.bf16.gmra.mxu0 %v4852
        %v5074 = vpop.f32.mrf.mxu0
        %v5075 = vadd.f32 0.0, %v5074
        %v5076 = vpop.f32.mrf.mxu0
        %v5077 = vadd.f32 0.0, %v5076
        %5078 = vdwg.mxu0
        %5079 = vmatpush.bf16.msra.mxu0 0
        %5080 = vmatpush.bf16.msra.mxu0 0
        %5081 = vmatpush.bf16.msra.mxu0 0
        %5082 = vmatpush.bf16.msra.mxu0 0
        %5083 = vmatpush.bf16.msra.mxu0 0
        %5084 = vmatpush.bf16.msra.mxu0 0
        %5085 = vmatpush.bf16.msra.mxu0 0
        %5086 = vmatpush.bf16.msra.mxu0 %v4995
        %5087 = vmatmul.bf16.gmra.mxu0 %v5035
        %v5088 = vpop.f32.mrf.mxu0
        %v5089 = vadd.f32 %v5075, %v5088
        %v5090 = vpop.f32.mrf.mxu0
        %v5091 = vadd.f32 %v5077, %v5090
        %5092 = vdwg.mxu0
        %5093 = vmatpush.bf16.msra.mxu0 %v4992
        %5094 = vmatpush.bf16.msra.mxu0 %v4988
        %5095 = vmatpush.bf16.msra.mxu0 %v4984
        %5096 = vmatpush.bf16.msra.mxu0 %v4980
        %5097 = vmatpush.bf16.msra.mxu0 %v4976
        %5098 = vmatpush.bf16.msra.mxu0 %v4972
        %5099 = vmatpush.bf16.msra.mxu0 %v4968
        %5100 = vmatpush.bf16.msra.mxu0 %v4964
        %5101 = vmatmul.bf16.gmra.mxu0 %v4852
        %v5102 = vpop.f32.mrf.mxu0
        %v5103 = vadd.f32 0.0, %v5102
        %v5104 = vpop.f32.mrf.mxu0
        %v5105 = vadd.f32 0.0, %v5104
        %5106 = vdwg.mxu0
        %5107 = vmatpush.bf16.msra.mxu0 0
        %5108 = vmatpush.bf16.msra.mxu0 0
        %5109 = vmatpush.bf16.msra.mxu0 0
        %5110 = vmatpush.bf16.msra.mxu0 0
        %5111 = vmatpush.bf16.msra.mxu0 0
        %5112 = vmatpush.bf16.msra.mxu0 0
        %5113 = vmatpush.bf16.msra.mxu0 0
        %5114 = vmatpush.bf16.msra.mxu0 %v4996
        %5115 = vmatmul.bf16.gmra.mxu0 %v5035
        %v5116 = vpop.f32.mrf.mxu0
        %v5117 = vadd.f32 %v5103, %v5116
        %v5118 = vpop.f32.mrf.mxu0
        %v5119 = vadd.f32 %v5105, %v5118
        %5120 = vdwg.mxu0
        %5121 = vmatpush.bf16.msra.mxu0 %v4993
        %5122 = vmatpush.bf16.msra.mxu0 %v4989
        %5123 = vmatpush.bf16.msra.mxu0 %v4985
        %5124 = vmatpush.bf16.msra.mxu0 %v4981
        %5125 = vmatpush.bf16.msra.mxu0 %v4977
        %5126 = vmatpush.bf16.msra.mxu0 %v4973
        %5127 = vmatpush.bf16.msra.mxu0 %v4969
        %5128 = vmatpush.bf16.msra.mxu0 %v4965
        %5129 = vmatmul.bf16.gmra.mxu0 %v4852
        %v5130 = vpop.f32.mrf.mxu0
        %v5131 = vadd.f32 0.0, %v5130
        %v5132 = vpop.f32.mrf.mxu0
        %v5133 = vadd.f32 0.0, %v5132
        %5134 = vdwg.mxu0
        %5135 = vmatpush.bf16.msra.mxu0 0
        %5136 = vmatpush.bf16.msra.mxu0 0
        %5137 = vmatpush.bf16.msra.mxu0 0
        %5138 = vmatpush.bf16.msra.mxu0 0
        %5139 = vmatpush.bf16.msra.mxu0 0
        %5140 = vmatpush.bf16.msra.mxu0 0
        %5141 = vmatpush.bf16.msra.mxu0 0
        %5142 = vmatpush.bf16.msra.mxu0 %v4997
        %5143 = vmatmul.bf16.gmra.mxu0 %v5035
        %v5144 = vpop.f32.mrf.mxu0
        %v5145 = vadd.f32 %v5131, %v5144
        %v5146 = vpop.f32.mrf.mxu0
        %v5147 = vadd.f32 %v5133, %v5146
        %5148 = vdwg.mxu0
        %v5149 = vadd.f32 %v4480, %v5061
        %v5150 = vadd.f32 %v4508, %v5089
        %v5151 = vadd.f32 %v4536, %v5117
        %v5152 = vadd.f32 %v4564, %v5145
        %v5153 = vadd.f32 %v4482, %v5063
        %v5154 = vadd.f32 %v4510, %v5091
        %v5155 = vadd.f32 %v4538, %v5119
        %v5156 = vadd.f32 %v4566, %v5147
        %v5157 = vld [vmem:[%s8] sm:$0xff]
        %v5158 = vld [vmem:[%s8 + $0x8] sm:$0xff]
        %5160 = vset.pattern.permute.xlu0 0
        %5161 = vperm.xlu0 %5160, %v5157
        %v5162 = vpop.permute.xlu0 %5161
        %5165 = vset.pattern.permute.xlu0 0
        %5166 = vperm.xlu0 %5165, %v5158
        %v5167 = vpop.permute.xlu0 %5166
        %v5169 = vadd.f32 %v5149, %v5162
        %v5170 = vadd.f32 %v5150, %v5162
        %v5171 = vadd.f32 %v5151, %v5162
        %v5172 = vadd.f32 %v5152, %v5162
        %v5173 = vadd.f32 %v5153, %v5167
        %v5174 = vadd.f32 %v5154, %v5167
        %v5175 = vadd.f32 %v5155, %v5167
        %v5176 = vadd.f32 %v5156, %v5167
        %v5177 = vadd.f32 %v5169, %v425
        %v5178 = vadd.f32 %v5170, %v426
        %v5179 = vadd.f32 %v5171, %v427
        %v5180 = vadd.f32 %v5172, %v428
        %v5181 = vadd.f32 %v5173, %v429
        %v5182 = vadd.f32 %v5174, %v430
        %v5183 = vadd.f32 %v5175, %v431
        %v5184 = vadd.f32 %v5176, %v432
        %5185 = vst [vmem:[%s423] sm:$0xff] %v5177
        %5186 = vst [vmem:[%s423 + $0x8] sm:$0xff] %v5178
        %5187 = vst [vmem:[%s423 + $0x10] sm:$0xff] %v5179
        %5188 = vst [vmem:[%s423 + $0x18] sm:$0xff] %v5180
        %5189 = vst [vmem:[%s423 + $0x20] sm:$0xff] %v5181
        %5190 = vst [vmem:[%s423 + $0x28] sm:$0xff] %v5182
        %5191 = vst [vmem:[%s423 + $0x30] sm:$0xff] %v5183
        %5192 = vst [vmem:[%s423 + $0x38] sm:$0xff] %v5184
        %s5193 = sand.u32 %s273, 1
        %s5194 = scalar_lea.sflag [#allocation5], %s5193
        %s5195 = sand.u32 %s273, 1
        %s5196 = smul.addr %s5195, 64
        %s5197 = scalar_lea.vmem [#allocation8], %s5196
        // Predicated region
        $region73: #{tpu_custom_call.1} parent=63 // pred_check
          %p5198 = pneg %p283
        $region74: #{tpu_custom_call.1} parent=63 // pred_check_branch
          %5200 = sbr.rel (%p5198) target = $region76
        $region75: #{tpu_custom_call.1} parent=63 // pred_region
          %5202 = vsyncadd %s5194, 0
          %s5203 = smul.addr %s29, 8
          %s5204 = smul.addr %s5203, 8
          %s5205 = scalar_lea.hbm %s11, %s5204
          %s5206 = sshll.u32 %s5197, 4
          %s5207 = int_to_ptr.vmem [resolvable:$true] %s5206
          %s5208 = sshll.u32 %s5205, 4
          %s5209 = int_to_ptr.hbm [resolvable:$true] %s5208
          %5214 = dma.vmem_to_hbm [thread:$0]  %s5207, 1024, %s5209, %s5194, 512, 512, 32
        $region76: #{tpu_custom_call.1} parent=63 // pred_fallthru
          _
      $region64: #{tpu_custom_call.1} parent=5 // pred_fallthru
        _
      %p5215 = scmp.le.s32.totalorder 2, %s24
      // Predicated region
      $region77: #{tpu_custom_call.1} parent=5 // pred_check
        %p5216 = pneg %p5215
      $region78: #{tpu_custom_call.1} parent=5 // pred_check_branch
        %5218 = sbr.rel (%p5216) target = $region80
      $region79: #{tpu_custom_call.1} parent=5 // pred_region
        %s5219 = ssub.s32 %s24, 2
        // Predicated region
        $region81: #{tpu_custom_call.1} parent=79 // pred_check
          %p5220 = pneg %p289
        $region82: #{tpu_custom_call.1} parent=79 // pred_check_branch
          %5222 = sbr.rel (%p5220) target = $region84
        $region83: #{tpu_custom_call.1} parent=79 // pred_region
          %s5223 = sand.u32 %s274, 1
          %s5224 = scalar_lea.sflag [#allocation5], %s5223
          %s5225 = sand.u32 %s274, 1
          %s5226 = smul.addr %s5225, 64
          %s5227 = scalar_lea.vmem [#allocation8], %s5226
          %5229 = dma.done %s5224, 1024
        $region84: #{tpu_custom_call.1} parent=79 // pred_fallthru
          _
      $region80: #{tpu_custom_call.1} parent=5 // pred_fallthru
        _
    $region6: #{tpu_custom_call.1} parent=1 // loop_footer
      %s28 = sadd.s32 1, %s24
    $region7: #{tpu_custom_call.1} parent=1 // loop_footer_branch
      %23 = sbr.rel target = $region3
    $region8: #{tpu_custom_call.1} parent=1 // loop_exit
      _
    %5230 = vsyncpa [#allocation4], 1
    %s5231 = scalar_lea.sflag [#allocation4], 1
    %5232 = vsyncpa %s5231, 1
    %5233 = vsyncpa [#allocation7], 1
    %5234 = vsyncpa [#allocation5], 1
    %s5235 = scalar_lea.sflag [#allocation5], 1
    %5236 = vsyncpa %s5235, 1

</llo_original>
